<compile_context>
chip_gen: v6e
topology: v6e:2x2x1
jax: 0.10.0
libtpu: 0.0.40
codegen_flags: <defaults>
</compile_context>

<pallas_src>
import math
import functools

import jax
import jax.numpy as jnp
from jax.experimental import pallas as pl
from jax.experimental.pallas import tpu as pltpu


# ----------------------------- in-kernel helpers ----------------------------

def _ln(x, g, b, eps=1e-5):
    # f32 LayerNorm (eps matches torch.nn.LayerNorm default)
    mu = jnp.mean(x, axis=-1, keepdims=True)
    var = jnp.mean((x - mu) ** 2, axis=-1, keepdims=True)
    return (x - mu) * jax.lax.rsqrt(var + eps) * g + b


# ----------------------------- fused kernels --------------------------------

def make_attn_block_kernel(n_heads, with_pos):
    """Fused [ +pos ] + LN1 + QKV + causal MHA + out-proj + residual.

    One grid step processes one batch element: x block is (1, L, D)."""
    def kernel(*refs):
        if with_pos:
            (x_ref, pos_ref, g1_ref, b1_ref,
             wi_ref, bi_ref, wo_ref, bo_ref, o_ref) = refs
        else:
            (x_ref, g1_ref, b1_ref,
             wi_ref, bi_ref, wo_ref, bo_ref, o_ref) = refs

        x = x_ref[0]                                    # (L, D) f32 residual stream
        if with_pos:
            x = x + pos_ref[...]                        # fused positional-embedding add
        L, D = x.shape
        dh = D // n_heads
        scale = 1.0 / math.sqrt(dh)

        h = _ln(x, g1_ref[...], b1_ref[...])            # f32 statistics
        qkv = jnp.dot(h.astype(jnp.bfloat16), wi_ref[...],
                      preferred_element_type=jnp.float32) + bi_ref[...]   # (L, 3D) f32

        # causal mask, shared across heads (diagonal unmasked -> no NaN rows)
        row = jax.lax.broadcasted_iota(jnp.int32, (L, L), 0)
        col = jax.lax.broadcasted_iota(jnp.int32, (L, L), 1)
        causal = col <= row

        head_outs = []
        for hh in range(n_heads):                       # static unroll over heads
            q = qkv[:, hh * dh:(hh + 1) * dh]
            k = qkv[:, D + hh * dh:D + (hh + 1) * dh]
            v = qkv[:, 2 * D + hh * dh:2 * D + (hh + 1) * dh]
            # contract last axes directly -> no explicit k.T transpose materialized
            s = jax.lax.dot_general(
                q.astype(jnp.bfloat16), k.astype(jnp.bfloat16),
                dimension_numbers=(((1,), (1,)), ((), ())),
                preferred_element_type=jnp.float32) * scale
            s = jnp.where(causal, s, -jnp.inf)
            m = jnp.max(s, axis=-1, keepdims=True)
            p = jnp.exp(s - m)
            p = p * pl.reciprocal(jnp.sum(p, axis=-1, keepdims=True), approx=True)
            head_outs.append(
                jnp.dot(p.astype(jnp.bfloat16), v.astype(jnp.bfloat16),
                        preferred_element_type=jnp.float32))
        attn = jnp.concatenate(head_outs, axis=-1)      # (L, D) head merge, in VMEM

        out = jnp.dot(attn.astype(jnp.bfloat16), wo_ref[...],
                      preferred_element_type=jnp.float32) + bo_ref[...]
        o_ref[0] = x + out                              # f32 residual add
    return kernel


def mlp_block_kernel(x_ref, g2_ref, b2_ref, wfc_ref, bfc_ref, wpj_ref, bpj_ref, o_ref):
    """Fused LN2 + FC + QuickGELU + proj + residual over a (TM, D) row tile."""
    x = x_ref[...]                                      # (TM, D) f32
    h = _ln(x, g2_ref[...], b2_ref[...])
    m = jnp.dot(h.astype(jnp.bfloat16), wfc_ref[...],
                preferred_element_type=jnp.float32) + bfc_ref[...]
    m = m * jax.nn.sigmoid(1.702 * m)                   # QuickGELU in f32
    m = jnp.dot(m.astype(jnp.bfloat16), wpj_ref[...],
                preferred_element_type=jnp.float32) + bpj_ref[...]
    o_ref[...] = x + m                                  # f32 residual add


def final_proj_kernel(x_ref, g_ref, b_ref, wp_ref, o_ref):
    """Fused ln_final + text_projection on the gathered EOT rows."""
    h = _ln(x_ref[...], g_ref[...], b_ref[...])
    o_ref[...] = jnp.dot(h.astype(jnp.bfloat16), wp_ref[...],
                         preferred_element_type=jnp.float32)


# ----------------------------- pallas_call wrappers -------------------------

def _choose_row_tile(m, target=512):
    # largest multiple-of-8 divisor of m that is <= target; else full extent
    for cand in range(min(target, m), 7, -1):
        if cand % 8 == 0 and m % cand == 0:
            return cand
    return m


def attn_block_fused(x, p, n_heads, pos=None):
    B, L, D = x.shape
    with_pos = pos is not None
    kernel = make_attn_block_kernel(n_heads, with_pos)

    in_specs = [pl.BlockSpec((1, L, D), lambda b: (b, 0, 0))]
    args = [x]
    if with_pos:
        in_specs.append(pl.BlockSpec((L, D), lambda b: (0, 0)))
        args.append(pos)
    in_specs += [
        pl.BlockSpec((1, D), lambda b: (0, 0)),        # ln1_g
        pl.BlockSpec((1, D), lambda b: (0, 0)),        # ln1_b
        pl.BlockSpec((D, 3 * D), lambda b: (0, 0)),    # w_in (bf16)
        pl.BlockSpec((1, 3 * D), lambda b: (0, 0)),    # b_in
        pl.BlockSpec((D, D), lambda b: (0, 0)),        # w_out (bf16)
        pl.BlockSpec((1, D), lambda b: (0, 0)),        # b_out
    ]
    args += [
        p["ln1_g"].reshape(1, D), p["ln1_b"].reshape(1, D),
        p["w_in"].astype(jnp.bfloat16), p["b_in"].reshape(1, 3 * D),
        p["w_out"].astype(jnp.bfloat16), p["b_out"].reshape(1, D),
    ]

    return pl.pallas_call(
        kernel,
        out_shape=jax.ShapeDtypeStruct((B, L, D), jnp.float32),
        grid=(B,),
        in_specs=in_specs,
        out_specs=pl.BlockSpec((1, L, D), lambda b: (b, 0, 0)),
        compiler_params=pltpu.CompilerParams(dimension_semantics=("parallel",)),
    )(*args)


def mlp_block_fused(x, p):
    B, L, D = x.shape
    M = B * L
    mlp_dim = p["w_fc"].shape[1]
    TM = _choose_row_tile(M)

    y = pl.pallas_call(
        mlp_block_kernel,
        out_shape=jax.ShapeDtypeStruct((M, D), jnp.float32),
        grid=(M // TM,),
        in_specs=[
            pl.BlockSpec((TM, D), lambda i: (i, 0)),
            pl.BlockSpec((1, D), lambda i: (0, 0)),
            pl.BlockSpec((1, D), lambda i: (0, 0)),
            pl.BlockSpec((D, mlp_dim), lambda i: (0, 0)),
            pl.BlockSpec((1, mlp_dim), lambda i: (0, 0)),
            pl.BlockSpec((mlp_dim, D), lambda i: (0, 0)),
            pl.BlockSpec((1, D), lambda i: (0, 0)),
        ],
        out_specs=pl.BlockSpec((TM, D), lambda i: (i, 0)),
        compiler_params=pltpu.CompilerParams(dimension_semantics=("parallel",)),
    )(x.reshape(M, D),
      p["ln2_g"].reshape(1, D), p["ln2_b"].reshape(1, D),
      p["w_fc"].astype(jnp.bfloat16), p["b_fc"].reshape(1, mlp_dim),
      p["w_proj"].astype(jnp.bfloat16), p["b_proj"].reshape(1, D))
    return y.reshape(B, L, D)


def final_projection(x_eot, g, b, w_proj):
    Bv, D = x_eot.shape
    P = w_proj.shape[1]
    P_pad = ((P + 127) // 128) * 128                   # lane-dense output stores
    wp = w_proj.astype(jnp.bfloat16)
    if P_pad != P:
        wp = jnp.pad(wp, ((0, 0), (0, P_pad - P)))

    y = pl.pallas_call(
        final_proj_kernel,
        out_shape=jax.ShapeDtypeStruct((Bv, P_pad), jnp.float32),
        grid=(1,),
        in_specs=[
            pl.BlockSpec((Bv, D), lambda i: (0, 0)),
            pl.BlockSpec((1, D), lambda i: (0, 0)),
            pl.BlockSpec((1, D), lambda i: (0, 0)),
            pl.BlockSpec((D, P_pad), lambda i: (0, 0)),
        ],
        out_specs=pl.BlockSpec((Bv, P_pad), lambda i: (0, 0)),
    )(x_eot, g.reshape(1, D), b.reshape(1, D), wp)
    return y[:, :P]


# ----------------------------- model forward --------------------------------

def text_encoder_forward(prompts, tokenized_prompts, params, n_heads):
    # prompts: (B, L, D) float32 ; tokenized_prompts: (B, L) int32
    B, L, D = prompts.shape
    layers = params["layers"]

    x = prompts
    if not layers:
        x = x + params["pos_emb"]
    for li, p in enumerate(layers):
        pos = params["pos_emb"] if li == 0 else None   # pos-add fused into layer 0
        x = attn_block_fused(x, p, n_heads, pos=pos)   # kernel 1 of the block
        x = mlp_block_fused(x, p)                      # kernel 2 of the block

    # EOT-token gather is data-dependent -> left as XLA glue (LayerNorm is
    # per-row, so gather-then-ln_final == ln_final-then-gather).
    eot = jnp.argmax(tokenized_prompts, axis=-1)
    x_eot = x[jnp.arange(B), eot]                      # (B, D)
    return final_projection(x_eot, params["lnf_g"], params["lnf_b"],
                            params["text_projection"])


# ----------------------------- reference (pure jnp, f32) ---------------------

def _ref_ln(x, g, b):
    mu = jnp.mean(x, -1, keepdims=True)
    var = jnp.mean((x - mu) ** 2, -1, keepdims=True)
    return (x - mu) / jnp.sqrt(var + 1e-5) * g + b


def ref_forward(prompts, tokenized_prompts, params, n_heads):
    B, L, D = prompts.shape
    dh = D // n_heads
    x = prompts + params["pos_emb"]
    for p in params["layers"]:
        h = _ref_ln(x, p["ln1_g"], p["ln1_b"])
        qkv = h @ p["w_in"] + p["b_in"]
        qkv = qkv.reshape(B, L, 3, n_heads, dh)
        q, k, v = (jnp.transpose(qkv[:, :, i], (0, 2, 1, 3)) for i in range(3))
        s = jnp.einsum("bhqd,bhkd->bhqk", q, k) / math.sqrt(dh)
        mask = jnp.tril(jnp.ones((L, L), bool))
        s = jnp.where(mask, s, -jnp.inf)
        a = jax.nn.softmax(s, axis=-1)
        o = jnp.einsum("bhqk,bhkd->bhqd", a, v)
        o = jnp.transpose(o, (0, 2, 1, 3)).reshape(B, L, D)
        x = x + (o @ p["w_out"] + p["b_out"])
        h2 = _ref_ln(x, p["ln2_g"], p["ln2_b"])
        m = h2 @ p["w_fc"] + p["b_fc"]
        m = m * jax.nn.sigmoid(1.702 * m)
        x = x + (m @ p["w_proj"] + p["b_proj"])
    x = _ref_ln(x, params["lnf_g"], params["lnf_b"])
    eot = jnp.argmax(tokenized_prompts, axis=-1)
    return x[jnp.arange(B), eot] @ params["text_projection"]


# ----------------------------- main ------------------------------------------

if __name__ == "__main__":
    B, L, D = 2, 8, 32          # batch, seq (n_ctx), transformer width
    H, LAYERS = 4, 2            # heads, layers
    MLP = 4 * D
    PROJ = 32                   # embed_dim of text_projection

    key = jax.random.PRNGKey(0)

    def nrm(k, shape, std=0.02):
        return (jax.random.normal(k, shape, jnp.float32) * std).astype(jnp.float32)

    keys = iter(jax.random.split(key, 8 + 10 * LAYERS))

    layers = []
    for _ in range(LAYERS):
        layers.append(dict(
            ln1_g=jnp.ones((D,), jnp.float32), ln1_b=jnp.zeros((D,), jnp.float32),
            w_in=nrm(next(keys), (D, 3 * D)),  b_in=jnp.zeros((3 * D,), jnp.float32),
            w_out=nrm(next(keys), (D, D)),     b_out=jnp.zeros((D,), jnp.float32),
            ln2_g=jnp.ones((D,), jnp.float32), ln2_b=jnp.zeros((D,), jnp.float32),
            w_fc=nrm(next(keys), (D, MLP)),    b_fc=jnp.zeros((MLP,), jnp.float32),
            w_proj=nrm(next(keys), (MLP, D)),  b_proj=jnp.zeros((D,), jnp.float32),
        ))

    params = dict(
        pos_emb=nrm(next(keys), (L, D), std=0.01),
        layers=layers,
        lnf_g=jnp.ones((D,), jnp.float32),
        lnf_b=jnp.zeros((D,), jnp.float32),
        text_projection=nrm(next(keys), (D, PROJ)),
    )

    prompts = nrm(next(keys), (B, L, D), std=0.5)                      # (B, L, D)
    tokenized_prompts = jax.random.randint(next(keys), (B, L), 0, 100, jnp.int32)
    # force a deterministic EOT position (highest token id) per sequence
    tokenized_prompts = tokenized_prompts.at[0, 5].set(1000).at[1, 7].set(1000)

    fwd = jax.jit(functools.partial(text_encoder_forward, n_heads=H))
    out = fwd(prompts, tokenized_prompts, params)
    out = jax.block_until_ready(out)

    ref = ref_forward(prompts, tokenized_prompts, params, H)
    assert out.shape == (B, PROJ), out.shape
    # bf16 matmul operands (f32 accumulation) vs pure-f32 reference -> slightly
    # looser tolerance than the all-f32 version.
    assert jnp.allclose(out, ref, rtol=2e-2, atol=5e-3), \
        float(jnp.max(jnp.abs(out - ref)))

    print("KERNEL_OK")
</pallas_src>

<mosaic_0001>
module attributes {stable_mosaic.version = 11 : i64} {
  func.func @mlp_block_kernel(%arg0: i32, %arg1: memref<16x32xf32, #tpu.memory_space<vmem>>, %arg2: memref<1x32xf32, #tpu.memory_space<vmem>>, %arg3: memref<1x32xf32, #tpu.memory_space<vmem>>, %arg4: memref<32x128xbf16, #tpu.memory_space<vmem>>, %arg5: memref<1x128xf32, #tpu.memory_space<vmem>>, %arg6: memref<128x32xbf16, #tpu.memory_space<vmem>>, %arg7: memref<1x32xf32, #tpu.memory_space<vmem>>, %arg8: memref<16x32xf32, #tpu.memory_space<vmem>>) attributes {dimension_semantics = [#tpu.dimension_semantics<parallel>], iteration_bounds = array<i64: 1>, scalar_prefetch = 0 : i64, scratch_operands = 0 : i64, tpu.core_type = #tpu.core_type<tc>, window_params = [{transform_indices = @transform_0, window_bounds = array<i64: 16, 32>}, {pipeline_mode = #tpu.pipeline_mode<synchronous>, transform_indices = @transform_1, window_bounds = array<i64: 1, 32>}, {pipeline_mode = #tpu.pipeline_mode<synchronous>, transform_indices = @transform_2, window_bounds = array<i64: 1, 32>}, {pipeline_mode = #tpu.pipeline_mode<synchronous>, transform_indices = @transform_3, window_bounds = array<i64: 32, 128>}, {pipeline_mode = #tpu.pipeline_mode<synchronous>, transform_indices = @transform_4, window_bounds = array<i64: 1, 128>}, {pipeline_mode = #tpu.pipeline_mode<synchronous>, transform_indices = @transform_5, window_bounds = array<i64: 128, 32>}, {pipeline_mode = #tpu.pipeline_mode<synchronous>, transform_indices = @transform_6, window_bounds = array<i64: 1, 32>}, {transform_indices = @transform_7, window_bounds = array<i64: 16, 32>}]} {
    %c0 = arith.constant 0 : index
    %c0_0 = arith.constant 0 : index
    %0 = vector.load %arg1[%c0, %c0_0] : memref<16x32xf32, #tpu.memory_space<vmem>>, vector<16x32xf32>
    %c0_1 = arith.constant 0 : index
    %c0_2 = arith.constant 0 : index
    %1 = vector.load %arg2[%c0_1, %c0_2] : memref<1x32xf32, #tpu.memory_space<vmem>>, vector<1x32xf32>
    %c0_3 = arith.constant 0 : index
    %c0_4 = arith.constant 0 : index
    %2 = vector.load %arg3[%c0_3, %c0_4] : memref<1x32xf32, #tpu.memory_space<vmem>>, vector<1x32xf32>
    %cst = arith.constant dense<0.000000e+00> : vector<16xf32>
    %3 = vector.multi_reduction <add>, %0, %cst [1] : vector<16x32xf32> to vector<16xf32>
    %4 = vector.shape_cast %3 : vector<16xf32> to vector<16x1xf32>
    %cst_5 = arith.constant 3.200000e+01 : f32
    %5 = vector.broadcast %cst_5 : f32 to vector<16x1xf32>
    %6 = arith.divf %4, %5 : vector<16x1xf32>
    %7 = vector.broadcast %6 : vector<16x1xf32> to vector<16x32xf32>
    %8 = arith.subf %0, %7 : vector<16x32xf32>
    %9 = arith.mulf %8, %8 : vector<16x32xf32>
    %cst_6 = arith.constant dense<0.000000e+00> : vector<16xf32>
    %10 = vector.multi_reduction <add>, %9, %cst_6 [1] : vector<16x32xf32> to vector<16xf32>
    %11 = vector.shape_cast %10 : vector<16xf32> to vector<16x1xf32>
    %cst_7 = arith.constant 3.200000e+01 : f32
    %12 = vector.broadcast %cst_7 : f32 to vector<16x1xf32>
    %13 = arith.divf %11, %12 : vector<16x1xf32>
    %14 = vector.broadcast %6 : vector<16x1xf32> to vector<16x32xf32>
    %15 = arith.subf %0, %14 : vector<16x32xf32>
    %cst_8 = arith.constant 9.99999974E-6 : f32
    %16 = vector.broadcast %cst_8 : f32 to vector<16x1xf32>
    %17 = arith.addf %13, %16 : vector<16x1xf32>
    %18 = math.rsqrt %17 : vector<16x1xf32>
    %19 = vector.broadcast %18 : vector<16x1xf32> to vector<16x32xf32>
    %20 = arith.mulf %15, %19 : vector<16x32xf32>
    %21 = vector.broadcast %1 : vector<1x32xf32> to vector<16x32xf32>
    %22 = arith.mulf %20, %21 : vector<16x32xf32>
    %23 = vector.broadcast %2 : vector<1x32xf32> to vector<16x32xf32>
    %24 = arith.addf %22, %23 : vector<16x32xf32>
    %25 = arith.truncf %24 : vector<16x32xf32> to vector<16x32xbf16>
    %c0_9 = arith.constant 0 : index
    %c0_10 = arith.constant 0 : index
    %26 = vector.load %arg4[%c0_9, %c0_10] : memref<32x128xbf16, #tpu.memory_space<vmem>>, vector<32x128xbf16>
    %cst_11 = arith.constant dense<0.000000e+00> : vector<16x128xf32>
    %27 = tpu.matmul %25, %26, %cst_11 {dimension_numbers = #tpu.dot_dimension_numbers<[1], [0], [0], [1], [0, 0, 1, 1], [], []>} : vector<16x32xbf16>, vector<32x128xbf16>, vector<16x128xf32> -> vector<16x128xf32>
    %c0_12 = arith.constant 0 : index
    %c0_13 = arith.constant 0 : index
    %28 = vector.load %arg5[%c0_12, %c0_13] : memref<1x128xf32, #tpu.memory_space<vmem>>, vector<1x128xf32>
    %29 = vector.broadcast %28 : vector<1x128xf32> to vector<16x128xf32>
    %30 = arith.addf %27, %29 : vector<16x128xf32>
    %cst_14 = arith.constant 1.702000e+00 : f32
    %31 = vector.broadcast %cst_14 : f32 to vector<16x128xf32>
    %32 = arith.mulf %31, %30 : vector<16x128xf32>
    %33 = arith.negf %32 : vector<16x128xf32>
    %34 = math.exp %33 : vector<16x128xf32>
    %cst_15 = arith.constant 1.000000e+00 : f32
    %35 = vector.broadcast %cst_15 : f32 to vector<16x128xf32>
    %36 = arith.addf %35, %34 : vector<16x128xf32>
    %37 = arith.divf %35, %36 : vector<16x128xf32>
    %38 = arith.mulf %30, %37 : vector<16x128xf32>
    %39 = arith.truncf %38 : vector<16x128xf32> to vector<16x128xbf16>
    %c0_16 = arith.constant 0 : index
    %c0_17 = arith.constant 0 : index
    %40 = vector.load %arg6[%c0_16, %c0_17] : memref<128x32xbf16, #tpu.memory_space<vmem>>, vector<128x32xbf16>
    %cst_18 = arith.constant dense<0.000000e+00> : vector<16x32xf32>
    %41 = tpu.matmul %39, %40, %cst_18 {dimension_numbers = #tpu.dot_dimension_numbers<[1], [0], [0], [1], [0, 0, 1, 1], [], []>} : vector<16x128xbf16>, vector<128x32xbf16>, vector<16x32xf32> -> vector<16x32xf32>
    %c0_19 = arith.constant 0 : index
    %c0_20 = arith.constant 0 : index
    %42 = vector.load %arg7[%c0_19, %c0_20] : memref<1x32xf32, #tpu.memory_space<vmem>>, vector<1x32xf32>
    %43 = vector.broadcast %42 : vector<1x32xf32> to vector<16x32xf32>
    %44 = arith.addf %41, %43 : vector<16x32xf32>
    %45 = arith.addf %0, %44 : vector<16x32xf32>
    %c0_21 = arith.constant 0 : index
    %c0_22 = arith.constant 0 : index
    %46 = vector.load %arg8[%c0_21, %c0_22] : memref<16x32xf32, #tpu.memory_space<vmem>>, vector<16x32xf32>
    tpu.vector_store %arg8[%c0_21, %c0_22], %45 {strides = array<i32>} : memref<16x32xf32, #tpu.memory_space<vmem>>, vector<16x32xf32>,
    return
  }
  func.func @transform_0(%arg0: i32) -> (i32, i32) {
    %c0_i32 = arith.constant 0 : i32
    %c0_i32_0 = arith.constant 0 : i32
    return %arg0, %c0_i32 : i32, i32
  }
  func.func @transform_1(%arg0: i32) -> (i32, i32) {
    %c0_i32 = arith.constant 0 : i32
    %c0_i32_0 = arith.constant 0 : i32
    %c0_i32_1 = arith.constant 0 : i32
    return %c0_i32, %c0_i32_0 : i32, i32
  }
  func.func @transform_2(%arg0: i32) -> (i32, i32) {
    %c0_i32 = arith.constant 0 : i32
    %c0_i32_0 = arith.constant 0 : i32
    %c0_i32_1 = arith.constant 0 : i32
    return %c0_i32, %c0_i32_0 : i32, i32
  }
  func.func @transform_3(%arg0: i32) -> (i32, i32) {
    %c0_i32 = arith.constant 0 : i32
    %c0_i32_0 = arith.constant 0 : i32
    %c0_i32_1 = arith.constant 0 : i32
    return %c0_i32, %c0_i32_0 : i32, i32
  }
  func.func @transform_4(%arg0: i32) -> (i32, i32) {
    %c0_i32 = arith.constant 0 : i32
    %c0_i32_0 = arith.constant 0 : i32
    %c0_i32_1 = arith.constant 0 : i32
    return %c0_i32, %c0_i32_0 : i32, i32
  }
  func.func @transform_5(%arg0: i32) -> (i32, i32) {
    %c0_i32 = arith.constant 0 : i32
    %c0_i32_0 = arith.constant 0 : i32
    %c0_i32_1 = arith.constant 0 : i32
    return %c0_i32, %c0_i32_0 : i32, i32
  }
  func.func @transform_6(%arg0: i32) -> (i32, i32) {
    %c0_i32 = arith.constant 0 : i32
    %c0_i32_0 = arith.constant 0 : i32
    %c0_i32_1 = arith.constant 0 : i32
    return %c0_i32, %c0_i32_0 : i32, i32
  }
  func.func @transform_7(%arg0: i32) -> (i32, i32) {
    %c0_i32 = arith.constant 0 : i32
    %c0_i32_0 = arith.constant 0 : i32
    return %arg0, %c0_i32 : i32, i32
  }
}

module attributes {stable_mosaic.version = 11 : i64} {
  func.func @kernel(%arg0: i32, %arg1: memref<1x8x32xf32, #tpu.memory_space<vmem>>, %arg2: memref<8x32xf32, #tpu.memory_space<vmem>>, %arg3: memref<1x32xf32, #tpu.memory_space<vmem>>, %arg4: memref<1x32xf32, #tpu.memory_space<vmem>>, %arg5: memref<32x96xbf16, #tpu.memory_space<vmem>>, %arg6: memref<1x96xf32, #tpu.memory_space<vmem>>, %arg7: memref<32x32xbf16, #tpu.memory_space<vmem>>, %arg8: memref<1x32xf32, #tpu.memory_space<vmem>>, %arg9: memref<1x8x32xf32, #tpu.memory_space<vmem>>) attributes {dimension_semantics = [#tpu.dimension_semantics<parallel>], iteration_bounds = array<i64: 2>, scalar_prefetch = 0 : i64, scratch_operands = 0 : i64, tpu.core_type = #tpu.core_type<tc>, window_params = [{transform_indices = @transform_0, window_bounds = array<i64: 1, 8, 32>}, {pipeline_mode = #tpu.pipeline_mode<synchronous>, transform_indices = @transform_1, window_bounds = array<i64: 8, 32>}, {pipeline_mode = #tpu.pipeline_mode<synchronous>, transform_indices = @transform_2, window_bounds = array<i64: 1, 32>}, {pipeline_mode = #tpu.pipeline_mode<synchronous>, transform_indices = @transform_3, window_bounds = array<i64: 1, 32>}, {pipeline_mode = #tpu.pipeline_mode<synchronous>, transform_indices = @transform_4, window_bounds = array<i64: 32, 96>}, {pipeline_mode = #tpu.pipeline_mode<synchronous>, transform_indices = @transform_5, window_bounds = array<i64: 1, 96>}, {pipeline_mode = #tpu.pipeline_mode<synchronous>, transform_indices = @transform_6, window_bounds = array<i64: 32, 32>}, {pipeline_mode = #tpu.pipeline_mode<synchronous>, transform_indices = @transform_7, window_bounds = array<i64: 1, 32>}, {transform_indices = @transform_8, window_bounds = array<i64: 1, 8, 32>}]} {
    %c0 = arith.constant 0 : index
    %c0_0 = arith.constant 0 : index
    %c0_1 = arith.constant 0 : index
    %0 = vector.load %arg1[%c0, %c0_0, %c0_1] : memref<1x8x32xf32, #tpu.memory_space<vmem>>, vector<1x8x32xf32>
    %1 = vector.shape_cast %0 : vector<1x8x32xf32> to vector<8x32xf32>
    %c0_2 = arith.constant 0 : index
    %c0_3 = arith.constant 0 : index
    %2 = vector.load %arg2[%c0_2, %c0_3] : memref<8x32xf32, #tpu.memory_space<vmem>>, vector<8x32xf32>
    %3 = arith.addf %1, %2 : vector<8x32xf32>
    %c0_4 = arith.constant 0 : index
    %c0_5 = arith.constant 0 : index
    %4 = vector.load %arg3[%c0_4, %c0_5] : memref<1x32xf32, #tpu.memory_space<vmem>>, vector<1x32xf32>
    %c0_6 = arith.constant 0 : index
    %c0_7 = arith.constant 0 : index
    %5 = vector.load %arg4[%c0_6, %c0_7] : memref<1x32xf32, #tpu.memory_space<vmem>>, vector<1x32xf32>
    %cst = arith.constant dense<0.000000e+00> : vector<8xf32>
    %6 = vector.multi_reduction <add>, %3, %cst [1] : vector<8x32xf32> to vector<8xf32>
    %7 = vector.shape_cast %6 : vector<8xf32> to vector<8x1xf32>
    %cst_8 = arith.constant 3.200000e+01 : f32
    %8 = vector.broadcast %cst_8 : f32 to vector<8x1xf32>
    %9 = arith.divf %7, %8 : vector<8x1xf32>
    %10 = vector.broadcast %9 : vector<8x1xf32> to vector<8x32xf32>
    %11 = arith.subf %3, %10 : vector<8x32xf32>
    %12 = arith.mulf %11, %11 : vector<8x32xf32>
    %cst_9 = arith.constant dense<0.000000e+00> : vector<8xf32>
    %13 = vector.multi_reduction <add>, %12, %cst_9 [1] : vector<8x32xf32> to vector<8xf32>
    %14 = vector.shape_cast %13 : vector<8xf32> to vector<8x1xf32>
    %cst_10 = arith.constant 3.200000e+01 : f32
    %15 = vector.broadcast %cst_10 : f32 to vector<8x1xf32>
    %16 = arith.divf %14, %15 : vector<8x1xf32>
    %17 = vector.broadcast %9 : vector<8x1xf32> to vector<8x32xf32>
    %18 = arith.subf %3, %17 : vector<8x32xf32>
    %cst_11 = arith.constant 9.99999974E-6 : f32
    %19 = vector.broadcast %cst_11 : f32 to vector<8x1xf32>
    %20 = arith.addf %16, %19 : vector<8x1xf32>
    %21 = math.rsqrt %20 : vector<8x1xf32>
    %22 = vector.broadcast %21 : vector<8x1xf32> to vector<8x32xf32>
    %23 = arith.mulf %18, %22 : vector<8x32xf32>
    %24 = vector.broadcast %4 : vector<1x32xf32> to vector<8x32xf32>
    %25 = arith.mulf %23, %24 : vector<8x32xf32>
    %26 = vector.broadcast %5 : vector<1x32xf32> to vector<8x32xf32>
    %27 = arith.addf %25, %26 : vector<8x32xf32>
    %28 = arith.truncf %27 : vector<8x32xf32> to vector<8x32xbf16>
    %c0_12 = arith.constant 0 : index
    %c0_13 = arith.constant 0 : index
    %29 = vector.load %arg5[%c0_12, %c0_13] : memref<32x96xbf16, #tpu.memory_space<vmem>>, vector<32x96xbf16>
    %cst_14 = arith.constant dense<0.000000e+00> : vector<8x96xf32>
    %30 = tpu.matmul %28, %29, %cst_14 {dimension_numbers = #tpu.dot_dimension_numbers<[1], [0], [0], [1], [0, 0, 1, 1], [], []>} : vector<8x32xbf16>, vector<32x96xbf16>, vector<8x96xf32> -> vector<8x96xf32>
    %c0_15 = arith.constant 0 : index
    %c0_16 = arith.constant 0 : index
    %31 = vector.load %arg6[%c0_15, %c0_16] : memref<1x96xf32, #tpu.memory_space<vmem>>, vector<1x96xf32>
    %32 = vector.broadcast %31 : vector<1x96xf32> to vector<8x96xf32>
    %33 = arith.addf %30, %32 : vector<8x96xf32>
    %34 = tpu.iota {dimensions = array<i32: 0>} : vector<8x8xi32>
    %35 = tpu.iota {dimensions = array<i32: 1>} : vector<8x8xi32>
    %36 = arith.cmpi sle, %35, %34 : vector<8x8xi32>
    %37 = vector.extract_strided_slice %33 {offsets = [0, 0], sizes = [8, 8], strides = [1, 1]} : vector<8x96xf32> to vector<8x8xf32>
    %38 = vector.extract_strided_slice %33 {offsets = [0, 32], sizes = [8, 8], strides = [1, 1]} : vector<8x96xf32> to vector<8x8xf32>
    %39 = vector.extract_strided_slice %33 {offsets = [0, 64], sizes = [8, 8], strides = [1, 1]} : vector<8x96xf32> to vector<8x8xf32>
    %40 = arith.truncf %37 : vector<8x8xf32> to vector<8x8xbf16>
    %41 = arith.truncf %38 : vector<8x8xf32> to vector<8x8xbf16>
    %cst_17 = arith.constant dense<0.000000e+00> : vector<8x8xf32>
    %42 = tpu.matmul %40, %41, %cst_17 {dimension_numbers = #tpu.dot_dimension_numbers<[1], [1], [0], [0], [0, 0, 1, 0], [], []>} : vector<8x8xbf16>, vector<8x8xbf16>, vector<8x8xf32> -> vector<8x8xf32>
    %cst_18 = arith.constant 0.353553385 : f32
    %43 = vector.broadcast %cst_18 : f32 to vector<8x8xf32>
    %44 = arith.mulf %42, %43 : vector<8x8xf32>
    %cst_19 = arith.constant 0xFF800000 : f32
    %45 = vector.broadcast %cst_19 : f32 to vector<8x8xf32>
    %46 = arith.select %36, %44, %45 : vector<8x8xi1>, vector<8x8xf32>
    %cst_20 = arith.constant dense<0xFF800000> : vector<8xf32>
    %47 = vector.multi_reduction <maximumf>, %46, %cst_20 [1] : vector<8x8xf32> to vector<8xf32>
    %48 = vector.shape_cast %47 : vector<8xf32> to vector<8x1xf32>
    %49 = vector.broadcast %48 : vector<8x1xf32> to vector<8x8xf32>
    %50 = arith.subf %46, %49 : vector<8x8xf32>
    %51 = math.exp %50 : vector<8x8xf32>
    %cst_21 = arith.constant dense<0.000000e+00> : vector<8xf32>
    %52 = vector.multi_reduction <add>, %51, %cst_21 [1] : vector<8x8xf32> to vector<8xf32>
    %53 = vector.shape_cast %52 : vector<8xf32> to vector<8x1xf32>
    %54 = tpu.reciprocal %53 {approx = true} : vector<8x1xf32> -> vector<8x1xf32>
    %55 = vector.broadcast %54 : vector<8x1xf32> to vector<8x8xf32>
    %56 = arith.mulf %51, %55 : vector<8x8xf32>
    %57 = arith.truncf %56 : vector<8x8xf32> to vector<8x8xbf16>
    %58 = arith.truncf %39 : vector<8x8xf32> to vector<8x8xbf16>
    %cst_22 = arith.constant dense<0.000000e+00> : vector<8x8xf32>
    %59 = tpu.matmul %57, %58, %cst_22 {dimension_numbers = #tpu.dot_dimension_numbers<[1], [0], [0], [1], [0, 0, 1, 1], [], []>} : vector<8x8xbf16>, vector<8x8xbf16>, vector<8x8xf32> -> vector<8x8xf32>
    %60 = vector.extract_strided_slice %33 {offsets = [0, 8], sizes = [8, 8], strides = [1, 1]} : vector<8x96xf32> to vector<8x8xf32>
    %61 = vector.extract_strided_slice %33 {offsets = [0, 40], sizes = [8, 8], strides = [1, 1]} : vector<8x96xf32> to vector<8x8xf32>
    %62 = vector.extract_strided_slice %33 {offsets = [0, 72], sizes = [8, 8], strides = [1, 1]} : vector<8x96xf32> to vector<8x8xf32>
    %63 = arith.truncf %60 : vector<8x8xf32> to vector<8x8xbf16>
    %64 = arith.truncf %61 : vector<8x8xf32> to vector<8x8xbf16>
    %cst_23 = arith.constant dense<0.000000e+00> : vector<8x8xf32>
    %65 = tpu.matmul %63, %64, %cst_23 {dimension_numbers = #tpu.dot_dimension_numbers<[1], [1], [0], [0], [0, 0, 1, 0], [], []>} : vector<8x8xbf16>, vector<8x8xbf16>, vector<8x8xf32> -> vector<8x8xf32>
    %cst_24 = arith.constant 0.353553385 : f32
    %66 = vector.broadcast %cst_24 : f32 to vector<8x8xf32>
    %67 = arith.mulf %65, %66 : vector<8x8xf32>
    %cst_25 = arith.constant 0xFF800000 : f32
    %68 = vector.broadcast %cst_25 : f32 to vector<8x8xf32>
    %69 = arith.select %36, %67, %68 : vector<8x8xi1>, vector<8x8xf32>
    %cst_26 = arith.constant dense<0xFF800000> : vector<8xf32>
    %70 = vector.multi_reduction <maximumf>, %69, %cst_26 [1] : vector<8x8xf32> to vector<8xf32>
    %71 = vector.shape_cast %70 : vector<8xf32> to vector<8x1xf32>
    %72 = vector.broadcast %71 : vector<8x1xf32> to vector<8x8xf32>
    %73 = arith.subf %69, %72 : vector<8x8xf32>
    %74 = math.exp %73 : vector<8x8xf32>
    %cst_27 = arith.constant dense<0.000000e+00> : vector<8xf32>
    %75 = vector.multi_reduction <add>, %74, %cst_27 [1] : vector<8x8xf32> to vector<8xf32>
    %76 = vector.shape_cast %75 : vector<8xf32> to vector<8x1xf32>
    %77 = tpu.reciprocal %76 {approx = true} : vector<8x1xf32> -> vector<8x1xf32>
    %78 = vector.broadcast %77 : vector<8x1xf32> to vector<8x8xf32>
    %79 = arith.mulf %74, %78 : vector<8x8xf32>
    %80 = arith.truncf %79 : vector<8x8xf32> to vector<8x8xbf16>
    %81 = arith.truncf %62 : vector<8x8xf32> to vector<8x8xbf16>
    %cst_28 = arith.constant dense<0.000000e+00> : vector<8x8xf32>
    %82 = tpu.matmul %80, %81, %cst_28 {dimension_numbers = #tpu.dot_dimension_numbers<[1], [0], [0], [1], [0, 0, 1, 1], [], []>} : vector<8x8xbf16>, vector<8x8xbf16>, vector<8x8xf32> -> vector<8x8xf32>
    %83 = vector.extract_strided_slice %33 {offsets = [0, 16], sizes = [8, 8], strides = [1, 1]} : vector<8x96xf32> to vector<8x8xf32>
    %84 = vector.extract_strided_slice %33 {offsets = [0, 48], sizes = [8, 8], strides = [1, 1]} : vector<8x96xf32> to vector<8x8xf32>
    %85 = vector.extract_strided_slice %33 {offsets = [0, 80], sizes = [8, 8], strides = [1, 1]} : vector<8x96xf32> to vector<8x8xf32>
    %86 = arith.truncf %83 : vector<8x8xf32> to vector<8x8xbf16>
    %87 = arith.truncf %84 : vector<8x8xf32> to vector<8x8xbf16>
    %cst_29 = arith.constant dense<0.000000e+00> : vector<8x8xf32>
    %88 = tpu.matmul %86, %87, %cst_29 {dimension_numbers = #tpu.dot_dimension_numbers<[1], [1], [0], [0], [0, 0, 1, 0], [], []>} : vector<8x8xbf16>, vector<8x8xbf16>, vector<8x8xf32> -> vector<8x8xf32>
    %cst_30 = arith.constant 0.353553385 : f32
    %89 = vector.broadcast %cst_30 : f32 to vector<8x8xf32>
    %90 = arith.mulf %88, %89 : vector<8x8xf32>
    %cst_31 = arith.constant 0xFF800000 : f32
    %91 = vector.broadcast %cst_31 : f32 to vector<8x8xf32>
    %92 = arith.select %36, %90, %91 : vector<8x8xi1>, vector<8x8xf32>
    %cst_32 = arith.constant dense<0xFF800000> : vector<8xf32>
    %93 = vector.multi_reduction <maximumf>, %92, %cst_32 [1] : vector<8x8xf32> to vector<8xf32>
    %94 = vector.shape_cast %93 : vector<8xf32> to vector<8x1xf32>
    %95 = vector.broadcast %94 : vector<8x1xf32> to vector<8x8xf32>
    %96 = arith.subf %92, %95 : vector<8x8xf32>
    %97 = math.exp %96 : vector<8x8xf32>
    %cst_33 = arith.constant dense<0.000000e+00> : vector<8xf32>
    %98 = vector.multi_reduction <add>, %97, %cst_33 [1] : vector<8x8xf32> to vector<8xf32>
    %99 = vector.shape_cast %98 : vector<8xf32> to vector<8x1xf32>
    %100 = tpu.reciprocal %99 {approx = true} : vector<8x1xf32> -> vector<8x1xf32>
    %101 = vector.broadcast %100 : vector<8x1xf32> to vector<8x8xf32>
    %102 = arith.mulf %97, %101 : vector<8x8xf32>
    %103 = arith.truncf %102 : vector<8x8xf32> to vector<8x8xbf16>
    %104 = arith.truncf %85 : vector<8x8xf32> to vector<8x8xbf16>
    %cst_34 = arith.constant dense<0.000000e+00> : vector<8x8xf32>
    %105 = tpu.matmul %103, %104, %cst_34 {dimension_numbers = #tpu.dot_dimension_numbers<[1], [0], [0], [1], [0, 0, 1, 1], [], []>} : vector<8x8xbf16>, vector<8x8xbf16>, vector<8x8xf32> -> vector<8x8xf32>
    %106 = vector.extract_strided_slice %33 {offsets = [0, 24], sizes = [8, 8], strides = [1, 1]} : vector<8x96xf32> to vector<8x8xf32>
    %107 = vector.extract_strided_slice %33 {offsets = [0, 56], sizes = [8, 8], strides = [1, 1]} : vector<8x96xf32> to vector<8x8xf32>
    %108 = vector.extract_strided_slice %33 {offsets = [0, 88], sizes = [8, 8], strides = [1, 1]} : vector<8x96xf32> to vector<8x8xf32>
    %109 = arith.truncf %106 : vector<8x8xf32> to vector<8x8xbf16>
    %110 = arith.truncf %107 : vector<8x8xf32> to vector<8x8xbf16>
    %cst_35 = arith.constant dense<0.000000e+00> : vector<8x8xf32>
    %111 = tpu.matmul %109, %110, %cst_35 {dimension_numbers = #tpu.dot_dimension_numbers<[1], [1], [0], [0], [0, 0, 1, 0], [], []>} : vector<8x8xbf16>, vector<8x8xbf16>, vector<8x8xf32> -> vector<8x8xf32>
    %cst_36 = arith.constant 0.353553385 : f32
    %112 = vector.broadcast %cst_36 : f32 to vector<8x8xf32>
    %113 = arith.mulf %111, %112 : vector<8x8xf32>
    %cst_37 = arith.constant 0xFF800000 : f32
    %114 = vector.broadcast %cst_37 : f32 to vector<8x8xf32>
    %115 = arith.select %36, %113, %114 : vector<8x8xi1>, vector<8x8xf32>
    %cst_38 = arith.constant dense<0xFF800000> : vector<8xf32>
    %116 = vector.multi_reduction <maximumf>, %115, %cst_38 [1] : vector<8x8xf32> to vector<8xf32>
    %117 = vector.shape_cast %116 : vector<8xf32> to vector<8x1xf32>
    %118 = vector.broadcast %117 : vector<8x1xf32> to vector<8x8xf32>
    %119 = arith.subf %115, %118 : vector<8x8xf32>
    %120 = math.exp %119 : vector<8x8xf32>
    %cst_39 = arith.constant dense<0.000000e+00> : vector<8xf32>
    %121 = vector.multi_reduction <add>, %120, %cst_39 [1] : vector<8x8xf32> to vector<8xf32>
    %122 = vector.shape_cast %121 : vector<8xf32> to vector<8x1xf32>
    %123 = tpu.reciprocal %122 {approx = true} : vector<8x1xf32> -> vector<8x1xf32>
    %124 = vector.broadcast %123 : vector<8x1xf32> to vector<8x8xf32>
    %125 = arith.mulf %120, %124 : vector<8x8xf32>
    %126 = arith.truncf %125 : vector<8x8xf32> to vector<8x8xbf16>
    %127 = arith.truncf %108 : vector<8x8xf32> to vector<8x8xbf16>
    %cst_40 = arith.constant dense<0.000000e+00> : vector<8x8xf32>
    %128 = tpu.matmul %126, %127, %cst_40 {dimension_numbers = #tpu.dot_dimension_numbers<[1], [0], [0], [1], [0, 0, 1, 1], [], []>} : vector<8x8xbf16>, vector<8x8xbf16>, vector<8x8xf32> -> vector<8x8xf32>
    %129 = tpu.concatenate %59, %82, %105, %128 in 1 : vector<8x8xf32>, vector<8x8xf32>, vector<8x8xf32>, vector<8x8xf32> -> vector<8x32xf32>
    %130 = arith.truncf %129 : vector<8x32xf32> to vector<8x32xbf16>
    %c0_41 = arith.constant 0 : index
    %c0_42 = arith.constant 0 : index
    %131 = vector.load %arg7[%c0_41, %c0_42] : memref<32x32xbf16, #tpu.memory_space<vmem>>, vector<32x32xbf16>
    %cst_43 = arith.constant dense<0.000000e+00> : vector<8x32xf32>
    %132 = tpu.matmul %130, %131, %cst_43 {dimension_numbers = #tpu.dot_dimension_numbers<[1], [0], [0], [1], [0, 0, 1, 1], [], []>} : vector<8x32xbf16>, vector<32x32xbf16>, vector<8x32xf32> -> vector<8x32xf32>
    %c0_44 = arith.constant 0 : index
    %c0_45 = arith.constant 0 : index
    %133 = vector.load %arg8[%c0_44, %c0_45] : memref<1x32xf32, #tpu.memory_space<vmem>>, vector<1x32xf32>
    %134 = vector.broadcast %133 : vector<1x32xf32> to vector<8x32xf32>
    %135 = arith.addf %132, %134 : vector<8x32xf32>
    %136 = arith.addf %3, %135 : vector<8x32xf32>
    %c0_46 = arith.constant 0 : index
    %c0_47 = arith.constant 0 : index
    %c0_48 = arith.constant 0 : index
    %137 = vector.load %arg9[%c0_46, %c0_47, %c0_48] : memref<1x8x32xf32, #tpu.memory_space<vmem>>, vector<1x8x32xf32>
    %138 = vector.shape_cast %137 : vector<1x8x32xf32> to vector<8x32xf32>
    %139 = vector.shape_cast %136 : vector<8x32xf32> to vector<1x8x32xf32>
    tpu.vector_store %arg9[%c0_46, %c0_47, %c0_48], %139 {strides = array<i32>} : memref<1x8x32xf32, #tpu.memory_space<vmem>>, vector<1x8x32xf32>,
    return
  }
  func.func @transform_0(%arg0: i32) -> (i32, i32, i32) {
    %c0_i32 = arith.constant 0 : i32
    %c0_i32_0 = arith.constant 0 : i32
    %c0_i32_1 = arith.constant 0 : i32
    return %arg0, %c0_i32, %c0_i32_0 : i32, i32, i32
  }
  func.func @transform_1(%arg0: i32) -> (i32, i32) {
    %c0_i32 = arith.constant 0 : i32
    %c0_i32_0 = arith.constant 0 : i32
    %c0_i32_1 = arith.constant 0 : i32
    return %c0_i32, %c0_i32_0 : i32, i32
  }
  func.func @transform_2(%arg0: i32) -> (i32, i32) {
    %c0_i32 = arith.constant 0 : i32
    %c0_i32_0 = arith.constant 0 : i32
    %c0_i32_1 = arith.constant 0 : i32
    return %c0_i32, %c0_i32_0 : i32, i32
  }
  func.func @transform_3(%arg0: i32) -> (i32, i32) {
    %c0_i32 = arith.constant 0 : i32
    %c0_i32_0 = arith.constant 0 : i32
    %c0_i32_1 = arith.constant 0 : i32
    return %c0_i32, %c0_i32_0 : i32, i32
  }
  func.func @transform_4(%arg0: i32) -> (i32, i32) {
    %c0_i32 = arith.constant 0 : i32
    %c0_i32_0 = arith.constant 0 : i32
    %c0_i32_1 = arith.constant 0 : i32
    return %c0_i32, %c0_i32_0 : i32, i32
  }
  func.func @transform_5(%arg0: i32) -> (i32, i32) {
    %c0_i32 = arith.constant 0 : i32
    %c0_i32_0 = arith.constant 0 : i32
    %c0_i32_1 = arith.constant 0 : i32
    return %c0_i32, %c0_i32_0 : i32, i32
  }
  func.func @transform_6(%arg0: i32) -> (i32, i32) {
    %c0_i32 = arith.constant 0 : i32
    %c0_i32_0 = arith.constant 0 : i32
    %c0_i32_1 = arith.constant 0 : i32
    return %c0_i32, %c0_i32_0 : i32, i32
  }
  func.func @transform_7(%arg0: i32) -> (i32, i32) {
    %c0_i32 = arith.constant 0 : i32
    %c0_i32_0 = arith.constant 0 : i32
    %c0_i32_1 = arith.constant 0 : i32
    return %c0_i32, %c0_i32_0 : i32, i32
  }
  func.func @transform_8(%arg0: i32) -> (i32, i32, i32) {
    %c0_i32 = arith.constant 0 : i32
    %c0_i32_0 = arith.constant 0 : i32
    %c0_i32_1 = arith.constant 0 : i32
    return %arg0, %c0_i32, %c0_i32_0 : i32, i32, i32
  }
}

module attributes {stable_mosaic.version = 11 : i64} {
  func.func @kernel(%arg0: i32, %arg1: memref<1x8x32xf32, #tpu.memory_space<vmem>>, %arg2: memref<1x32xf32, #tpu.memory_space<vmem>>, %arg3: memref<1x32xf32, #tpu.memory_space<vmem>>, %arg4: memref<32x96xbf16, #tpu.memory_space<vmem>>, %arg5: memref<1x96xf32, #tpu.memory_space<vmem>>, %arg6: memref<32x32xbf16, #tpu.memory_space<vmem>>, %arg7: memref<1x32xf32, #tpu.memory_space<vmem>>, %arg8: memref<1x8x32xf32, #tpu.memory_space<vmem>>) attributes {dimension_semantics = [#tpu.dimension_semantics<parallel>], iteration_bounds = array<i64: 2>, scalar_prefetch = 0 : i64, scratch_operands = 0 : i64, tpu.core_type = #tpu.core_type<tc>, window_params = [{transform_indices = @transform_0, window_bounds = array<i64: 1, 8, 32>}, {pipeline_mode = #tpu.pipeline_mode<synchronous>, transform_indices = @transform_1, window_bounds = array<i64: 1, 32>}, {pipeline_mode = #tpu.pipeline_mode<synchronous>, transform_indices = @transform_2, window_bounds = array<i64: 1, 32>}, {pipeline_mode = #tpu.pipeline_mode<synchronous>, transform_indices = @transform_3, window_bounds = array<i64: 32, 96>}, {pipeline_mode = #tpu.pipeline_mode<synchronous>, transform_indices = @transform_4, window_bounds = array<i64: 1, 96>}, {pipeline_mode = #tpu.pipeline_mode<synchronous>, transform_indices = @transform_5, window_bounds = array<i64: 32, 32>}, {pipeline_mode = #tpu.pipeline_mode<synchronous>, transform_indices = @transform_6, window_bounds = array<i64: 1, 32>}, {transform_indices = @transform_7, window_bounds = array<i64: 1, 8, 32>}]} {
    %c0 = arith.constant 0 : index
    %c0_0 = arith.constant 0 : index
    %c0_1 = arith.constant 0 : index
    %0 = vector.load %arg1[%c0, %c0_0, %c0_1] : memref<1x8x32xf32, #tpu.memory_space<vmem>>, vector<1x8x32xf32>
    %1 = vector.shape_cast %0 : vector<1x8x32xf32> to vector<8x32xf32>
    %c0_2 = arith.constant 0 : index
    %c0_3 = arith.constant 0 : index
    %2 = vector.load %arg2[%c0_2, %c0_3] : memref<1x32xf32, #tpu.memory_space<vmem>>, vector<1x32xf32>
    %c0_4 = arith.constant 0 : index
    %c0_5 = arith.constant 0 : index
    %3 = vector.load %arg3[%c0_4, %c0_5] : memref<1x32xf32, #tpu.memory_space<vmem>>, vector<1x32xf32>
    %cst = arith.constant dense<0.000000e+00> : vector<8xf32>
    %4 = vector.multi_reduction <add>, %1, %cst [1] : vector<8x32xf32> to vector<8xf32>
    %5 = vector.shape_cast %4 : vector<8xf32> to vector<8x1xf32>
    %cst_6 = arith.constant 3.200000e+01 : f32
    %6 = vector.broadcast %cst_6 : f32 to vector<8x1xf32>
    %7 = arith.divf %5, %6 : vector<8x1xf32>
    %8 = vector.broadcast %7 : vector<8x1xf32> to vector<8x32xf32>
    %9 = arith.subf %1, %8 : vector<8x32xf32>
    %10 = arith.mulf %9, %9 : vector<8x32xf32>
    %cst_7 = arith.constant dense<0.000000e+00> : vector<8xf32>
    %11 = vector.multi_reduction <add>, %10, %cst_7 [1] : vector<8x32xf32> to vector<8xf32>
    %12 = vector.shape_cast %11 : vector<8xf32> to vector<8x1xf32>
    %cst_8 = arith.constant 3.200000e+01 : f32
    %13 = vector.broadcast %cst_8 : f32 to vector<8x1xf32>
    %14 = arith.divf %12, %13 : vector<8x1xf32>
    %15 = vector.broadcast %7 : vector<8x1xf32> to vector<8x32xf32>
    %16 = arith.subf %1, %15 : vector<8x32xf32>
    %cst_9 = arith.constant 9.99999974E-6 : f32
    %17 = vector.broadcast %cst_9 : f32 to vector<8x1xf32>
    %18 = arith.addf %14, %17 : vector<8x1xf32>
    %19 = math.rsqrt %18 : vector<8x1xf32>
    %20 = vector.broadcast %19 : vector<8x1xf32> to vector<8x32xf32>
    %21 = arith.mulf %16, %20 : vector<8x32xf32>
    %22 = vector.broadcast %2 : vector<1x32xf32> to vector<8x32xf32>
    %23 = arith.mulf %21, %22 : vector<8x32xf32>
    %24 = vector.broadcast %3 : vector<1x32xf32> to vector<8x32xf32>
    %25 = arith.addf %23, %24 : vector<8x32xf32>
    %26 = arith.truncf %25 : vector<8x32xf32> to vector<8x32xbf16>
    %c0_10 = arith.constant 0 : index
    %c0_11 = arith.constant 0 : index
    %27 = vector.load %arg4[%c0_10, %c0_11] : memref<32x96xbf16, #tpu.memory_space<vmem>>, vector<32x96xbf16>
    %cst_12 = arith.constant dense<0.000000e+00> : vector<8x96xf32>
    %28 = tpu.matmul %26, %27, %cst_12 {dimension_numbers = #tpu.dot_dimension_numbers<[1], [0], [0], [1], [0, 0, 1, 1], [], []>} : vector<8x32xbf16>, vector<32x96xbf16>, vector<8x96xf32> -> vector<8x96xf32>
    %c0_13 = arith.constant 0 : index
    %c0_14 = arith.constant 0 : index
    %29 = vector.load %arg5[%c0_13, %c0_14] : memref<1x96xf32, #tpu.memory_space<vmem>>, vector<1x96xf32>
    %30 = vector.broadcast %29 : vector<1x96xf32> to vector<8x96xf32>
    %31 = arith.addf %28, %30 : vector<8x96xf32>
    %32 = tpu.iota {dimensions = array<i32: 0>} : vector<8x8xi32>
    %33 = tpu.iota {dimensions = array<i32: 1>} : vector<8x8xi32>
    %34 = arith.cmpi sle, %33, %32 : vector<8x8xi32>
    %35 = vector.extract_strided_slice %31 {offsets = [0, 0], sizes = [8, 8], strides = [1, 1]} : vector<8x96xf32> to vector<8x8xf32>
    %36 = vector.extract_strided_slice %31 {offsets = [0, 32], sizes = [8, 8], strides = [1, 1]} : vector<8x96xf32> to vector<8x8xf32>
    %37 = vector.extract_strided_slice %31 {offsets = [0, 64], sizes = [8, 8], strides = [1, 1]} : vector<8x96xf32> to vector<8x8xf32>
    %38 = arith.truncf %35 : vector<8x8xf32> to vector<8x8xbf16>
    %39 = arith.truncf %36 : vector<8x8xf32> to vector<8x8xbf16>
    %cst_15 = arith.constant dense<0.000000e+00> : vector<8x8xf32>
    %40 = tpu.matmul %38, %39, %cst_15 {dimension_numbers = #tpu.dot_dimension_numbers<[1], [1], [0], [0], [0, 0, 1, 0], [], []>} : vector<8x8xbf16>, vector<8x8xbf16>, vector<8x8xf32> -> vector<8x8xf32>
    %cst_16 = arith.constant 0.353553385 : f32
    %41 = vector.broadcast %cst_16 : f32 to vector<8x8xf32>
    %42 = arith.mulf %40, %41 : vector<8x8xf32>
    %cst_17 = arith.constant 0xFF800000 : f32
    %43 = vector.broadcast %cst_17 : f32 to vector<8x8xf32>
    %44 = arith.select %34, %42, %43 : vector<8x8xi1>, vector<8x8xf32>
    %cst_18 = arith.constant dense<0xFF800000> : vector<8xf32>
    %45 = vector.multi_reduction <maximumf>, %44, %cst_18 [1] : vector<8x8xf32> to vector<8xf32>
    %46 = vector.shape_cast %45 : vector<8xf32> to vector<8x1xf32>
    %47 = vector.broadcast %46 : vector<8x1xf32> to vector<8x8xf32>
    %48 = arith.subf %44, %47 : vector<8x8xf32>
    %49 = math.exp %48 : vector<8x8xf32>
    %cst_19 = arith.constant dense<0.000000e+00> : vector<8xf32>
    %50 = vector.multi_reduction <add>, %49, %cst_19 [1] : vector<8x8xf32> to vector<8xf32>
    %51 = vector.shape_cast %50 : vector<8xf32> to vector<8x1xf32>
    %52 = tpu.reciprocal %51 {approx = true} : vector<8x1xf32> -> vector<8x1xf32>
    %53 = vector.broadcast %52 : vector<8x1xf32> to vector<8x8xf32>
    %54 = arith.mulf %49, %53 : vector<8x8xf32>
    %55 = arith.truncf %54 : vector<8x8xf32> to vector<8x8xbf16>
    %56 = arith.truncf %37 : vector<8x8xf32> to vector<8x8xbf16>
    %cst_20 = arith.constant dense<0.000000e+00> : vector<8x8xf32>
    %57 = tpu.matmul %55, %56, %cst_20 {dimension_numbers = #tpu.dot_dimension_numbers<[1], [0], [0], [1], [0, 0, 1, 1], [], []>} : vector<8x8xbf16>, vector<8x8xbf16>, vector<8x8xf32> -> vector<8x8xf32>
    %58 = vector.extract_strided_slice %31 {offsets = [0, 8], sizes = [8, 8], strides = [1, 1]} : vector<8x96xf32> to vector<8x8xf32>
    %59 = vector.extract_strided_slice %31 {offsets = [0, 40], sizes = [8, 8], strides = [1, 1]} : vector<8x96xf32> to vector<8x8xf32>
    %60 = vector.extract_strided_slice %31 {offsets = [0, 72], sizes = [8, 8], strides = [1, 1]} : vector<8x96xf32> to vector<8x8xf32>
    %61 = arith.truncf %58 : vector<8x8xf32> to vector<8x8xbf16>
    %62 = arith.truncf %59 : vector<8x8xf32> to vector<8x8xbf16>
    %cst_21 = arith.constant dense<0.000000e+00> : vector<8x8xf32>
    %63 = tpu.matmul %61, %62, %cst_21 {dimension_numbers = #tpu.dot_dimension_numbers<[1], [1], [0], [0], [0, 0, 1, 0], [], []>} : vector<8x8xbf16>, vector<8x8xbf16>, vector<8x8xf32> -> vector<8x8xf32>
    %cst_22 = arith.constant 0.353553385 : f32
    %64 = vector.broadcast %cst_22 : f32 to vector<8x8xf32>
    %65 = arith.mulf %63, %64 : vector<8x8xf32>
    %cst_23 = arith.constant 0xFF800000 : f32
    %66 = vector.broadcast %cst_23 : f32 to vector<8x8xf32>
    %67 = arith.select %34, %65, %66 : vector<8x8xi1>, vector<8x8xf32>
    %cst_24 = arith.constant dense<0xFF800000> : vector<8xf32>
    %68 = vector.multi_reduction <maximumf>, %67, %cst_24 [1] : vector<8x8xf32> to vector<8xf32>
    %69 = vector.shape_cast %68 : vector<8xf32> to vector<8x1xf32>
    %70 = vector.broadcast %69 : vector<8x1xf32> to vector<8x8xf32>
    %71 = arith.subf %67, %70 : vector<8x8xf32>
    %72 = math.exp %71 : vector<8x8xf32>
    %cst_25 = arith.constant dense<0.000000e+00> : vector<8xf32>
    %73 = vector.multi_reduction <add>, %72, %cst_25 [1] : vector<8x8xf32> to vector<8xf32>
    %74 = vector.shape_cast %73 : vector<8xf32> to vector<8x1xf32>
    %75 = tpu.reciprocal %74 {approx = true} : vector<8x1xf32> -> vector<8x1xf32>
    %76 = vector.broadcast %75 : vector<8x1xf32> to vector<8x8xf32>
    %77 = arith.mulf %72, %76 : vector<8x8xf32>
    %78 = arith.truncf %77 : vector<8x8xf32> to vector<8x8xbf16>
    %79 = arith.truncf %60 : vector<8x8xf32> to vector<8x8xbf16>
    %cst_26 = arith.constant dense<0.000000e+00> : vector<8x8xf32>
    %80 = tpu.matmul %78, %79, %cst_26 {dimension_numbers = #tpu.dot_dimension_numbers<[1], [0], [0], [1], [0, 0, 1, 1], [], []>} : vector<8x8xbf16>, vector<8x8xbf16>, vector<8x8xf32> -> vector<8x8xf32>
    %81 = vector.extract_strided_slice %31 {offsets = [0, 16], sizes = [8, 8], strides = [1, 1]} : vector<8x96xf32> to vector<8x8xf32>
    %82 = vector.extract_strided_slice %31 {offsets = [0, 48], sizes = [8, 8], strides = [1, 1]} : vector<8x96xf32> to vector<8x8xf32>
    %83 = vector.extract_strided_slice %31 {offsets = [0, 80], sizes = [8, 8], strides = [1, 1]} : vector<8x96xf32> to vector<8x8xf32>
    %84 = arith.truncf %81 : vector<8x8xf32> to vector<8x8xbf16>
    %85 = arith.truncf %82 : vector<8x8xf32> to vector<8x8xbf16>
    %cst_27 = arith.constant dense<0.000000e+00> : vector<8x8xf32>
    %86 = tpu.matmul %84, %85, %cst_27 {dimension_numbers = #tpu.dot_dimension_numbers<[1], [1], [0], [0], [0, 0, 1, 0], [], []>} : vector<8x8xbf16>, vector<8x8xbf16>, vector<8x8xf32> -> vector<8x8xf32>
    %cst_28 = arith.constant 0.353553385 : f32
    %87 = vector.broadcast %cst_28 : f32 to vector<8x8xf32>
    %88 = arith.mulf %86, %87 : vector<8x8xf32>
    %cst_29 = arith.constant 0xFF800000 : f32
    %89 = vector.broadcast %cst_29 : f32 to vector<8x8xf32>
    %90 = arith.select %34, %88, %89 : vector<8x8xi1>, vector<8x8xf32>
    %cst_30 = arith.constant dense<0xFF800000> : vector<8xf32>
    %91 = vector.multi_reduction <maximumf>, %90, %cst_30 [1] : vector<8x8xf32> to vector<8xf32>
    %92 = vector.shape_cast %91 : vector<8xf32> to vector<8x1xf32>
    %93 = vector.broadcast %92 : vector<8x1xf32> to vector<8x8xf32>
    %94 = arith.subf %90, %93 : vector<8x8xf32>
    %95 = math.exp %94 : vector<8x8xf32>
    %cst_31 = arith.constant dense<0.000000e+00> : vector<8xf32>
    %96 = vector.multi_reduction <add>, %95, %cst_31 [1] : vector<8x8xf32> to vector<8xf32>
    %97 = vector.shape_cast %96 : vector<8xf32> to vector<8x1xf32>
    %98 = tpu.reciprocal %97 {approx = true} : vector<8x1xf32> -> vector<8x1xf32>
    %99 = vector.broadcast %98 : vector<8x1xf32> to vector<8x8xf32>
    %100 = arith.mulf %95, %99 : vector<8x8xf32>
    %101 = arith.truncf %100 : vector<8x8xf32> to vector<8x8xbf16>
    %102 = arith.truncf %83 : vector<8x8xf32> to vector<8x8xbf16>
    %cst_32 = arith.constant dense<0.000000e+00> : vector<8x8xf32>
    %103 = tpu.matmul %101, %102, %cst_32 {dimension_numbers = #tpu.dot_dimension_numbers<[1], [0], [0], [1], [0, 0, 1, 1], [], []>} : vector<8x8xbf16>, vector<8x8xbf16>, vector<8x8xf32> -> vector<8x8xf32>
    %104 = vector.extract_strided_slice %31 {offsets = [0, 24], sizes = [8, 8], strides = [1, 1]} : vector<8x96xf32> to vector<8x8xf32>
    %105 = vector.extract_strided_slice %31 {offsets = [0, 56], sizes = [8, 8], strides = [1, 1]} : vector<8x96xf32> to vector<8x8xf32>
    %106 = vector.extract_strided_slice %31 {offsets = [0, 88], sizes = [8, 8], strides = [1, 1]} : vector<8x96xf32> to vector<8x8xf32>
    %107 = arith.truncf %104 : vector<8x8xf32> to vector<8x8xbf16>
    %108 = arith.truncf %105 : vector<8x8xf32> to vector<8x8xbf16>
    %cst_33 = arith.constant dense<0.000000e+00> : vector<8x8xf32>
    %109 = tpu.matmul %107, %108, %cst_33 {dimension_numbers = #tpu.dot_dimension_numbers<[1], [1], [0], [0], [0, 0, 1, 0], [], []>} : vector<8x8xbf16>, vector<8x8xbf16>, vector<8x8xf32> -> vector<8x8xf32>
    %cst_34 = arith.constant 0.353553385 : f32
    %110 = vector.broadcast %cst_34 : f32 to vector<8x8xf32>
    %111 = arith.mulf %109, %110 : vector<8x8xf32>
    %cst_35 = arith.constant 0xFF800000 : f32
    %112 = vector.broadcast %cst_35 : f32 to vector<8x8xf32>
    %113 = arith.select %34, %111, %112 : vector<8x8xi1>, vector<8x8xf32>
    %cst_36 = arith.constant dense<0xFF800000> : vector<8xf32>
    %114 = vector.multi_reduction <maximumf>, %113, %cst_36 [1] : vector<8x8xf32> to vector<8xf32>
    %115 = vector.shape_cast %114 : vector<8xf32> to vector<8x1xf32>
    %116 = vector.broadcast %115 : vector<8x1xf32> to vector<8x8xf32>
    %117 = arith.subf %113, %116 : vector<8x8xf32>
    %118 = math.exp %117 : vector<8x8xf32>
    %cst_37 = arith.constant dense<0.000000e+00> : vector<8xf32>
    %119 = vector.multi_reduction <add>, %118, %cst_37 [1] : vector<8x8xf32> to vector<8xf32>
    %120 = vector.shape_cast %119 : vector<8xf32> to vector<8x1xf32>
    %121 = tpu.reciprocal %120 {approx = true} : vector<8x1xf32> -> vector<8x1xf32>
    %122 = vector.broadcast %121 : vector<8x1xf32> to vector<8x8xf32>
    %123 = arith.mulf %118, %122 : vector<8x8xf32>
    %124 = arith.truncf %123 : vector<8x8xf32> to vector<8x8xbf16>
    %125 = arith.truncf %106 : vector<8x8xf32> to vector<8x8xbf16>
    %cst_38 = arith.constant dense<0.000000e+00> : vector<8x8xf32>
    %126 = tpu.matmul %124, %125, %cst_38 {dimension_numbers = #tpu.dot_dimension_numbers<[1], [0], [0], [1], [0, 0, 1, 1], [], []>} : vector<8x8xbf16>, vector<8x8xbf16>, vector<8x8xf32> -> vector<8x8xf32>
    %127 = tpu.concatenate %57, %80, %103, %126 in 1 : vector<8x8xf32>, vector<8x8xf32>, vector<8x8xf32>, vector<8x8xf32> -> vector<8x32xf32>
    %128 = arith.truncf %127 : vector<8x32xf32> to vector<8x32xbf16>
    %c0_39 = arith.constant 0 : index
    %c0_40 = arith.constant 0 : index
    %129 = vector.load %arg6[%c0_39, %c0_40] : memref<32x32xbf16, #tpu.memory_space<vmem>>, vector<32x32xbf16>
    %cst_41 = arith.constant dense<0.000000e+00> : vector<8x32xf32>
    %130 = tpu.matmul %128, %129, %cst_41 {dimension_numbers = #tpu.dot_dimension_numbers<[1], [0], [0], [1], [0, 0, 1, 1], [], []>} : vector<8x32xbf16>, vector<32x32xbf16>, vector<8x32xf32> -> vector<8x32xf32>
    %c0_42 = arith.constant 0 : index
    %c0_43 = arith.constant 0 : index
    %131 = vector.load %arg7[%c0_42, %c0_43] : memref<1x32xf32, #tpu.memory_space<vmem>>, vector<1x32xf32>
    %132 = vector.broadcast %131 : vector<1x32xf32> to vector<8x32xf32>
    %133 = arith.addf %130, %132 : vector<8x32xf32>
    %134 = arith.addf %1, %133 : vector<8x32xf32>
    %c0_44 = arith.constant 0 : index
    %c0_45 = arith.constant 0 : index
    %c0_46 = arith.constant 0 : index
    %135 = vector.load %arg8[%c0_44, %c0_45, %c0_46] : memref<1x8x32xf32, #tpu.memory_space<vmem>>, vector<1x8x32xf32>
    %136 = vector.shape_cast %135 : vector<1x8x32xf32> to vector<8x32xf32>
    %137 = vector.shape_cast %134 : vector<8x32xf32> to vector<1x8x32xf32>
    tpu.vector_store %arg8[%c0_44, %c0_45, %c0_46], %137 {strides = array<i32>} : memref<1x8x32xf32, #tpu.memory_space<vmem>>, vector<1x8x32xf32>,
    return
  }
  func.func @transform_0(%arg0: i32) -> (i32, i32, i32) {
    %c0_i32 = arith.constant 0 : i32
    %c0_i32_0 = arith.constant 0 : i32
    %c0_i32_1 = arith.constant 0 : i32
    return %arg0, %c0_i32, %c0_i32_0 : i32, i32, i32
  }
  func.func @transform_1(%arg0: i32) -> (i32, i32) {
    %c0_i32 = arith.constant 0 : i32
    %c0_i32_0 = arith.constant 0 : i32
    %c0_i32_1 = arith.constant 0 : i32
    return %c0_i32, %c0_i32_0 : i32, i32
  }
  func.func @transform_2(%arg0: i32) -> (i32, i32) {
    %c0_i32 = arith.constant 0 : i32
    %c0_i32_0 = arith.constant 0 : i32
    %c0_i32_1 = arith.constant 0 : i32
    return %c0_i32, %c0_i32_0 : i32, i32
  }
  func.func @transform_3(%arg0: i32) -> (i32, i32) {
    %c0_i32 = arith.constant 0 : i32
    %c0_i32_0 = arith.constant 0 : i32
    %c0_i32_1 = arith.constant 0 : i32
    return %c0_i32, %c0_i32_0 : i32, i32
  }
  func.func @transform_4(%arg0: i32) -> (i32, i32) {
    %c0_i32 = arith.constant 0 : i32
    %c0_i32_0 = arith.constant 0 : i32
    %c0_i32_1 = arith.constant 0 : i32
    return %c0_i32, %c0_i32_0 : i32, i32
  }
  func.func @transform_5(%arg0: i32) -> (i32, i32) {
    %c0_i32 = arith.constant 0 : i32
    %c0_i32_0 = arith.constant 0 : i32
    %c0_i32_1 = arith.constant 0 : i32
    return %c0_i32, %c0_i32_0 : i32, i32
  }
  func.func @transform_6(%arg0: i32) -> (i32, i32) {
    %c0_i32 = arith.constant 0 : i32
    %c0_i32_0 = arith.constant 0 : i32
    %c0_i32_1 = arith.constant 0 : i32
    return %c0_i32, %c0_i32_0 : i32, i32
  }
  func.func @transform_7(%arg0: i32) -> (i32, i32, i32) {
    %c0_i32 = arith.constant 0 : i32
    %c0_i32_0 = arith.constant 0 : i32
    %c0_i32_1 = arith.constant 0 : i32
    return %arg0, %c0_i32, %c0_i32_0 : i32, i32, i32
  }
}

module attributes {stable_mosaic.version = 11 : i64} {
  func.func @final_proj_kernel(%arg0: i32, %arg1: memref<2x32xf32, #tpu.memory_space<vmem>>, %arg2: memref<1x32xf32, #tpu.memory_space<vmem>>, %arg3: memref<1x32xf32, #tpu.memory_space<vmem>>, %arg4: memref<32x128xbf16, #tpu.memory_space<vmem>>, %arg5: memref<2x128xf32, #tpu.memory_space<vmem>>) attributes {dimension_semantics = [#tpu.dimension_semantics<arbitrary>], iteration_bounds = array<i64: 1>, scalar_prefetch = 0 : i64, scratch_operands = 0 : i64, tpu.core_type = #tpu.core_type<tc>, window_params = [{pipeline_mode = #tpu.pipeline_mode<synchronous>, transform_indices = @transform_0, window_bounds = array<i64: 2, 32>}, {pipeline_mode = #tpu.pipeline_mode<synchronous>, transform_indices = @transform_1, window_bounds = array<i64: 1, 32>}, {pipeline_mode = #tpu.pipeline_mode<synchronous>, transform_indices = @transform_2, window_bounds = array<i64: 1, 32>}, {pipeline_mode = #tpu.pipeline_mode<synchronous>, transform_indices = @transform_3, window_bounds = array<i64: 32, 128>}, {pipeline_mode = #tpu.pipeline_mode<synchronous>, transform_indices = @transform_4, window_bounds = array<i64: 2, 128>}]} {
    %c0 = arith.constant 0 : index
    %c0_0 = arith.constant 0 : index
    %0 = vector.load %arg1[%c0, %c0_0] : memref<2x32xf32, #tpu.memory_space<vmem>>, vector<2x32xf32>
    %c0_1 = arith.constant 0 : index
    %c0_2 = arith.constant 0 : index
    %1 = vector.load %arg2[%c0_1, %c0_2] : memref<1x32xf32, #tpu.memory_space<vmem>>, vector<1x32xf32>
    %c0_3 = arith.constant 0 : index
    %c0_4 = arith.constant 0 : index
    %2 = vector.load %arg3[%c0_3, %c0_4] : memref<1x32xf32, #tpu.memory_space<vmem>>, vector<1x32xf32>
    %cst = arith.constant dense<0.000000e+00> : vector<2xf32>
    %3 = vector.multi_reduction <add>, %0, %cst [1] : vector<2x32xf32> to vector<2xf32>
    %4 = vector.shape_cast %3 : vector<2xf32> to vector<2x1xf32>
    %cst_5 = arith.constant 3.200000e+01 : f32
    %5 = vector.broadcast %cst_5 : f32 to vector<2x1xf32>
    %6 = arith.divf %4, %5 : vector<2x1xf32>
    %7 = vector.broadcast %6 : vector<2x1xf32> to vector<2x32xf32>
    %8 = arith.subf %0, %7 : vector<2x32xf32>
    %9 = arith.mulf %8, %8 : vector<2x32xf32>
    %cst_6 = arith.constant dense<0.000000e+00> : vector<2xf32>
    %10 = vector.multi_reduction <add>, %9, %cst_6 [1] : vector<2x32xf32> to vector<2xf32>
    %11 = vector.shape_cast %10 : vector<2xf32> to vector<2x1xf32>
    %cst_7 = arith.constant 3.200000e+01 : f32
    %12 = vector.broadcast %cst_7 : f32 to vector<2x1xf32>
    %13 = arith.divf %11, %12 : vector<2x1xf32>
    %14 = vector.broadcast %6 : vector<2x1xf32> to vector<2x32xf32>
    %15 = arith.subf %0, %14 : vector<2x32xf32>
    %cst_8 = arith.constant 9.99999974E-6 : f32
    %16 = vector.broadcast %cst_8 : f32 to vector<2x1xf32>
    %17 = arith.addf %13, %16 : vector<2x1xf32>
    %18 = math.rsqrt %17 : vector<2x1xf32>
    %19 = vector.broadcast %18 : vector<2x1xf32> to vector<2x32xf32>
    %20 = arith.mulf %15, %19 : vector<2x32xf32>
    %21 = vector.broadcast %1 : vector<1x32xf32> to vector<2x32xf32>
    %22 = arith.mulf %20, %21 : vector<2x32xf32>
    %23 = vector.broadcast %2 : vector<1x32xf32> to vector<2x32xf32>
    %24 = arith.addf %22, %23 : vector<2x32xf32>
    %25 = arith.truncf %24 : vector<2x32xf32> to vector<2x32xbf16>
    %c0_9 = arith.constant 0 : index
    %c0_10 = arith.constant 0 : index
    %26 = vector.load %arg4[%c0_9, %c0_10] : memref<32x128xbf16, #tpu.memory_space<vmem>>, vector<32x128xbf16>
    %cst_11 = arith.constant dense<0.000000e+00> : vector<2x128xf32>
    %27 = tpu.matmul %25, %26, %cst_11 {dimension_numbers = #tpu.dot_dimension_numbers<[1], [0], [0], [1], [0, 0, 1, 1], [], []>} : vector<2x32xbf16>, vector<32x128xbf16>, vector<2x128xf32> -> vector<2x128xf32>
    %c0_12 = arith.constant 0 : index
    %c0_13 = arith.constant 0 : index
    %28 = vector.load %arg5[%c0_12, %c0_13] : memref<2x128xf32, #tpu.memory_space<vmem>>, vector<2x128xf32>
    tpu.vector_store %arg5[%c0_12, %c0_13], %27 {strides = array<i32>} : memref<2x128xf32, #tpu.memory_space<vmem>>, vector<2x128xf32>,
    return
  }
  func.func @transform_0(%arg0: i32) -> (i32, i32) {
    %c0_i32 = arith.constant 0 : i32
    %c0_i32_0 = arith.constant 0 : i32
    %c0_i32_1 = arith.constant 0 : i32
    return %c0_i32, %c0_i32_0 : i32, i32
  }
  func.func @transform_1(%arg0: i32) -> (i32, i32) {
    %c0_i32 = arith.constant 0 : i32
    %c0_i32_0 = arith.constant 0 : i32
    %c0_i32_1 = arith.constant 0 : i32
    return %c0_i32, %c0_i32_0 : i32, i32
  }
  func.func @transform_2(%arg0: i32) -> (i32, i32) {
    %c0_i32 = arith.constant 0 : i32
    %c0_i32_0 = arith.constant 0 : i32
    %c0_i32_1 = arith.constant 0 : i32
    return %c0_i32, %c0_i32_0 : i32, i32
  }
  func.func @transform_3(%arg0: i32) -> (i32, i32) {
    %c0_i32 = arith.constant 0 : i32
    %c0_i32_0 = arith.constant 0 : i32
    %c0_i32_1 = arith.constant 0 : i32
    return %c0_i32, %c0_i32_0 : i32, i32
  }
  func.func @transform_4(%arg0: i32) -> (i32, i32) {
    %c0_i32 = arith.constant 0 : i32
    %c0_i32_0 = arith.constant 0 : i32
    %c0_i32_1 = arith.constant 0 : i32
    return %c0_i32, %c0_i32_0 : i32, i32
  }
}

</mosaic_0001>

<llo_original>
// kernel: text_encoder_forward.6
$region0: #{text_encoder_forward.6}
  #allocation0 [shape = 'u32[]', space=smem, size = 0x4, offset = 0x4, fixed_abs, tag = 'smem constant byte address 0x4 - core index']
  #allocation1 [shape = 'u32[144,128]{1,0:T(1,128)}', space=vmem, size = 0x12000, scoped, tag = 'internal scratch']
  %s0 = inlined_call_operand.vmem [shape: f32[16,32], index: 0, kind: input, shape index: {}]
  %s1 = inlined_call_operand.vmem [shape: f32[1,32], index: 1, kind: input, shape index: {}]
  %s2 = inlined_call_operand.vmem [shape: f32[1,32], index: 2, kind: input, shape index: {}]
  %s3 = inlined_call_operand.vmem [shape: bf16[32,128], index: 3, kind: input, shape index: {}]
  %s4 = inlined_call_operand.vmem [shape: f32[1,128], index: 4, kind: input, shape index: {}]
  %s5 = inlined_call_operand.vmem [shape: bf16[128,32], index: 5, kind: input, shape index: {}]
  %s6 = inlined_call_operand.vmem [shape: f32[1,32], index: 6, kind: input, shape index: {}]
  %s7 = inlined_call_operand.vmem [shape: f32[16,32], index: 7, kind: output, shape index: {}]
  %s8 = sld [smem:[#allocation0]]
  $region38: #{text_encoder_forward.6} parent=0
    _
  %s10 = ssub.s32 1, %s8
  %s11 = scalar_select 0, %s10, %s8
  // Predicated region
  $region2: #{text_encoder_forward.6} parent=0 // pred_check
    _
  $region3: #{text_encoder_forward.6} parent=0 // pred_check_branch
    %13 = sbr.rel (0) target = $region5
  $region4: #{text_encoder_forward.6} parent=0 // pred_region
    _
  $region5: #{text_encoder_forward.6} parent=0 // pred_fallthru
    _
  // Predicated region
  $region6: #{text_encoder_forward.6} parent=0 // pred_check
    _
  $region7: #{text_encoder_forward.6} parent=0 // pred_check_branch
    %15 = sbr.rel (0) target = $region9
  $region8: #{text_encoder_forward.6} parent=0 // pred_region
    _
  $region9: #{text_encoder_forward.6} parent=0 // pred_fallthru
    _
  // Predicated region
  $region10: #{text_encoder_forward.6} parent=0 // pred_check
    _
  $region11: #{text_encoder_forward.6} parent=0 // pred_check_branch
    %17 = sbr.rel (0) target = $region13
  $region12: #{text_encoder_forward.6} parent=0 // pred_region
    _
  $region13: #{text_encoder_forward.6} parent=0 // pred_fallthru
    _
  // Predicated region
  $region14: #{text_encoder_forward.6} parent=0 // pred_check
    _
  $region15: #{text_encoder_forward.6} parent=0 // pred_check_branch
    %19 = sbr.rel (0) target = $region17
  $region16: #{text_encoder_forward.6} parent=0 // pred_region
    _
  $region17: #{text_encoder_forward.6} parent=0 // pred_fallthru
    _
  // Predicated region
  $region18: #{text_encoder_forward.6} parent=0 // pred_check
    _
  $region19: #{text_encoder_forward.6} parent=0 // pred_check_branch
    %21 = sbr.rel (0) target = $region21
  $region20: #{text_encoder_forward.6} parent=0 // pred_region
    _
  $region21: #{text_encoder_forward.6} parent=0 // pred_fallthru
    _
  // Predicated region
  $region22: #{text_encoder_forward.6} parent=0 // pred_check
    _
  $region23: #{text_encoder_forward.6} parent=0 // pred_check_branch
    %23 = sbr.rel (0) target = $region25
  $region24: #{text_encoder_forward.6} parent=0 // pred_region
    _
  $region25: #{text_encoder_forward.6} parent=0 // pred_fallthru
    _
  // Predicated region
  $region26: #{text_encoder_forward.6} parent=0 // pred_check
    _
  $region27: #{text_encoder_forward.6} parent=0 // pred_check_branch
    %25 = sbr.rel (0) target = $region29
  $region28: #{text_encoder_forward.6} parent=0 // pred_region
    _
  $region29: #{text_encoder_forward.6} parent=0 // pred_fallthru
    _
  %v27 = vld [vmem:[%s0] sm:$0xff]
  %v28 = vld [vmem:[%s0 + $0x8] sm:$0xff]
  %v29 = vld [vmem:[%s1] sm:$0x1]
  %v30 = vld [vmem:[%s2] sm:$0x1]
  %vm31 = vcmask 261120
  %v32 = vsel %vm31, %v27, 0.0
  %33 = vadd.xlane.f32.xlu0 %v32
  %v34 = vpop.xlane.xlu0 %33
  %v35 = vsel %vm31, %v28, 0.0
  %36 = vadd.xlane.f32.xlu0 %v35
  %v37 = vpop.xlane.xlu0 %36
  %v38 = vrcp.pop 32.0
  %v39 = vmul.f32 %v34, %v38
  %v40 = vmul.f32 %v37, %v38
  %v41 = vsub.f32 %v27, %v39
  %v42 = vsub.f32 %v28, %v40
  %v43 = vmul.f32 %v41, %v41
  %v44 = vmul.f32 %v42, %v42
  %v45 = vsel %vm31, %v43, 0.0
  %46 = vadd.xlane.f32.xlu0 %v45
  %v47 = vpop.xlane.xlu0 %46
  %v48 = vsel %vm31, %v44, 0.0
  %49 = vadd.xlane.f32.xlu0 %v48
  %v50 = vpop.xlane.xlu0 %49
  %v51 = vmul.f32 %v47, %v38
  %v52 = vmul.f32 %v50, %v38
  %v53 = vadd.f32 %v51, 1e-05
  %v54 = vadd.f32 %v52, 1e-05
  %v55 = vrsqrt.pop %v53
  %v56 = vrsqrt.pop %v54
  %v57 = vmul.f32 %v41, %v55
  %v58 = vmul.f32 %v42, %v56
  %v60 = vlaneseq
  %v61 = vshrl.u32 %v60, 7
  %v62 = vsub.s32 0, %v61
  %v63 = vrot.slane %v29, %v62
  %v65 = vmul.f32 %v57, %v63
  %v66 = vmul.f32 %v58, %v63
  %v68 = vlaneseq
  %v69 = vshrl.u32 %v68, 7
  %v70 = vsub.s32 0, %v69
  %v71 = vrot.slane %v30, %v70
  %v73 = vadd.f32 %v65, %v71
  %v74 = vadd.f32 %v66, %v71
  %v75 = vpack.c.bf16 %v74, %v73
  %v76 = vld [vmem:[%s3] sm:$0xf]
  %v77 = vld [vmem:[%s3 + $0x4] sm:$0xf]
  %v78 = vld [vmem:[%s3 + $0x8] sm:$0xf]
  %v79 = vld [vmem:[%s3 + $0xc] sm:$0xf]
  %v80 = vld [vmem:[%s4] sm:$0x1]
  %v82 = vlaneseq
  %v83 = vshrl.u32 %v82, 7
  %v84 = vsub.s32 0, %v83
  %v85 = vrot.slane %v80, %v84
  %v91 = vunpack.c.l.b16 %v76
  %v92 = vunpack.c.l.b16 %v77
  %v93 = vunpack.c.l.b16 %v78
  %v94 = vunpack.c.l.b16 %v79
  %v95 = vpack.c.b16 %v92, %v91
  %v96 = vpack.c.b16 %v94, %v93
  %v100 = vsel %vm31, %v75, 0
  %102 = vmatprep.subr.bf16.mxu0 0
  %103 = vmatpush1.bf16.msra.mxu0 0
  %104 = vmatprep.subr.bf16.mxu0 0
  %105 = vmatpush1.bf16.msra.mxu0 0
  %106 = vmatprep.subr.bf16.mxu0 0
  %107 = vmatpush1.bf16.msra.mxu0 0
  %108 = vmatprep.subr.bf16.mxu0 0
  %109 = vmatpush1.bf16.msra.mxu0 0
  %110 = vmatprep.subr.bf16.mxu0 0
  %111 = vmatpush1.bf16.msra.mxu0 0
  %112 = vmatprep.subr.bf16.mxu0 0
  %113 = vmatpush1.bf16.msra.mxu0 0
  %114 = vmatprep.subr.bf16.mxu0 0
  %115 = vmatpush1.bf16.msra.mxu0 %v96
  %116 = vmatprep.subr.bf16.mxu0 0
  %117 = vmatpush1.bf16.msra.mxu0 %v95
  %118 = vmatprep.subr.bf16.mxu0 0
  %119 = vmatpush2.bf16.msra.mxu0 0
  %120 = vmatprep.subr.bf16.mxu0 0
  %121 = vmatpush2.bf16.msra.mxu0 0
  %122 = vmatprep.subr.bf16.mxu0 0
  %123 = vmatpush2.bf16.msra.mxu0 0
  %124 = vmatprep.subr.bf16.mxu0 0
  %125 = vmatpush2.bf16.msra.mxu0 0
  %126 = vmatprep.subr.bf16.mxu0 0
  %127 = vmatpush2.bf16.msra.mxu0 0
  %128 = vmatprep.subr.bf16.mxu0 0
  %129 = vmatpush2.bf16.msra.mxu0 0
  %130 = vmatprep.subr.bf16.mxu0 0
  %131 = vmatpush2.bf16.msra.mxu0 0
  %132 = vmatprep.subr.bf16.mxu0 0
  %133 = vmatpush2.bf16.msra.mxu0 0
  %134 = vmatprep.mubr.bf16.mxu0 0
  %135 = vmatmul.mubr.bf16.gmra.mxu0 %v100
  %v136 = vpop.f32.mrf.mxu0
  %v137 = vadd.f32 %v85, %v136
  %v138 = vpop.f32.mrf.mxu0
  %v139 = vpop.f32.mrf.mxu0
  %v140 = vadd.f32 %v85, %v139
  %v141 = vpop.f32.mrf.mxu0
  %142 = vdwg.mxu0
  %v143 = vmul.f32 %v137, 1.702
  %v144 = vmul.f32 %v140, 1.702
  %v145 = vxor.u32 %v143, 2147483648
  %v146 = vxor.u32 %v144, 2147483648
  %v147 = vmul.f32 %v145, 1.442695
  %v148 = vpow.pop %v147
  %v149 = vmul.f32 %v146, 1.442695
  %v150 = vpow.pop %v149
  %v151 = vadd.f32 %v148, 1.0
  %v152 = vadd.f32 %v150, 1.0
  %v153 = vrcp.pop %v151
  %v154 = vmul.f32 1.0, %v153
  %v155 = vrcp.pop %v152
  %v156 = vmul.f32 1.0, %v155
  %v157 = vmul.f32 %v137, %v154
  %v158 = vmul.f32 %v140, %v156
  %v159 = vpack.c.bf16 %v158, %v157
  %v160 = vld [vmem:[%s5] sm:$0xf]
  %v161 = vld [vmem:[%s5 + $0x4] sm:$0xf]
  %v162 = vld [vmem:[%s5 + $0x8] sm:$0xf]
  %v163 = vld [vmem:[%s5 + $0xc] sm:$0xf]
  %v164 = vld [vmem:[%s5 + $0x10] sm:$0xf]
  %v165 = vld [vmem:[%s5 + $0x14] sm:$0xf]
  %v166 = vld [vmem:[%s5 + $0x18] sm:$0xf]
  %v167 = vld [vmem:[%s5 + $0x1c] sm:$0xf]
  %v168 = vld [vmem:[%s5 + $0x20] sm:$0xf]
  %v169 = vld [vmem:[%s5 + $0x24] sm:$0xf]
  %v170 = vld [vmem:[%s5 + $0x28] sm:$0xf]
  %v171 = vld [vmem:[%s5 + $0x2c] sm:$0xf]
  %v172 = vld [vmem:[%s5 + $0x30] sm:$0xf]
  %v173 = vld [vmem:[%s5 + $0x34] sm:$0xf]
  %v174 = vld [vmem:[%s5 + $0x38] sm:$0xf]
  %v175 = vld [vmem:[%s5 + $0x3c] sm:$0xf]
  %v176 = vld [vmem:[%s6] sm:$0x1]
  %v178 = vlaneseq
  %v179 = vshrl.u32 %v178, 7
  %v180 = vsub.s32 0, %v179
  %v181 = vrot.slane %v176, %v180
  %v199 = vunpack.c.l.b16 %v160
  %v200 = vunpack.c.l.b16 %v161
  %v201 = vunpack.c.l.b16 %v162
  %v202 = vunpack.c.l.b16 %v163
  %v203 = vunpack.c.l.b16 %v164
  %v204 = vunpack.c.l.b16 %v165
  %v205 = vunpack.c.l.b16 %v166
  %v206 = vunpack.c.l.b16 %v167
  %v207 = vunpack.c.l.b16 %v168
  %v208 = vunpack.c.l.b16 %v169
  %v209 = vunpack.c.l.b16 %v170
  %v210 = vunpack.c.l.b16 %v171
  %v211 = vunpack.c.l.b16 %v172
  %v212 = vunpack.c.l.b16 %v173
  %v213 = vunpack.c.l.b16 %v174
  %v214 = vunpack.c.l.b16 %v175
  %v215 = vpack.c.b16 %v200, %v199
  %v216 = vpack.c.b16 %v202, %v201
  %v217 = vpack.c.b16 %v204, %v203
  %v218 = vpack.c.b16 %v206, %v205
  %v219 = vpack.c.b16 %v208, %v207
  %v220 = vpack.c.b16 %v210, %v209
  %v221 = vpack.c.b16 %v212, %v211
  %v222 = vpack.c.b16 %v214, %v213
  %231 = vmatprep.subr.bf16.mxu0 0
  %232 = vmatpush1.bf16.msra.mxu0 %v222
  %233 = vmatprep.subr.bf16.mxu0 0
  %234 = vmatpush1.bf16.msra.mxu0 %v221
  %235 = vmatprep.subr.bf16.mxu0 0
  %236 = vmatpush1.bf16.msra.mxu0 %v220
  %237 = vmatprep.subr.bf16.mxu0 0
  %238 = vmatpush1.bf16.msra.mxu0 %v219
  %239 = vmatprep.subr.bf16.mxu0 0
  %240 = vmatpush1.bf16.msra.mxu0 %v218
  %241 = vmatprep.subr.bf16.mxu0 0
  %242 = vmatpush1.bf16.msra.mxu0 %v217
  %243 = vmatprep.subr.bf16.mxu0 0
  %244 = vmatpush1.bf16.msra.mxu0 %v216
  %245 = vmatprep.subr.bf16.mxu0 0
  %246 = vmatpush1.bf16.msra.mxu0 %v215
  %247 = vmatprep.subr.bf16.mxu0 0
  %248 = vmatpush2.bf16.msra.mxu0 0
  %249 = vmatprep.subr.bf16.mxu0 0
  %250 = vmatpush2.bf16.msra.mxu0 0
  %251 = vmatprep.subr.bf16.mxu0 0
  %252 = vmatpush2.bf16.msra.mxu0 0
  %253 = vmatprep.subr.bf16.mxu0 0
  %254 = vmatpush2.bf16.msra.mxu0 0
  %255 = vmatprep.subr.bf16.mxu0 0
  %256 = vmatpush2.bf16.msra.mxu0 0
  %257 = vmatprep.subr.bf16.mxu0 0
  %258 = vmatpush2.bf16.msra.mxu0 0
  %259 = vmatprep.subr.bf16.mxu0 0
  %260 = vmatpush2.bf16.msra.mxu0 0
  %261 = vmatprep.subr.bf16.mxu0 0
  %262 = vmatpush2.bf16.msra.mxu0 0
  %263 = vmatprep.mubr.bf16.mxu0 0
  %264 = vmatmul.mubr.bf16.gmra.mxu0 %v159
  %v265 = vpop.f32.mrf.mxu0
  %v266 = vadd.f32 %v181, %v265
  %v267 = vpop.f32.mrf.mxu0
  %v268 = vpop.f32.mrf.mxu0
  %v269 = vadd.f32 %v181, %v268
  %v270 = vpop.f32.mrf.mxu0
  %271 = vdwg.mxu0
  %v272 = vadd.f32 %v27, %v266
  %v273 = vadd.f32 %v28, %v269
  %274 = vst.msk [vmem:[%s7] sm:$0xff] %vm31, %v272
  %275 = vst.msk [vmem:[%s7 + $0x8] sm:$0xff] %vm31, %v273
  // Predicated region
  $region30: #{text_encoder_forward.6} parent=0 // pred_check
    _
  $region31: #{text_encoder_forward.6} parent=0 // pred_check_branch
    %277 = sbr.rel (0) target = $region33
  $region32: #{text_encoder_forward.6} parent=0 // pred_region
    _
  $region33: #{text_encoder_forward.6} parent=0 // pred_fallthru
    _
  // Predicated region
  $region34: #{text_encoder_forward.6} parent=0 // pred_check
    _
  $region35: #{text_encoder_forward.6} parent=0 // pred_check_branch
    %279 = sbr.rel (0) target = $region37
  $region36: #{text_encoder_forward.6} parent=0 // pred_region
    _
  $region37: #{text_encoder_forward.6} parent=0 // pred_fallthru
    _

// kernel: text_encoder_forward.9
$region0: #{text_encoder_forward.9}
  #allocation0 [shape = 'u32[]', space=smem, size = 0x4, offset = 0x4, fixed_abs, tag = 'smem constant byte address 0x4 - core index']
  #allocation1 [shape = 'u32[144,128]{1,0:T(1,128)}', space=vmem, size = 0x12000, scoped, tag = 'internal scratch']
  %s0 = inlined_call_operand.vmem [shape: f32[2,32], index: 0, kind: input, shape index: {}]
  %s1 = inlined_call_operand.vmem [shape: f32[1,32], index: 1, kind: input, shape index: {}]
  %s2 = inlined_call_operand.vmem [shape: f32[1,32], index: 2, kind: input, shape index: {}]
  %s3 = inlined_call_operand.vmem [shape: bf16[32,128], index: 3, kind: input, shape index: {}]
  %s4 = inlined_call_operand.hbm [shape: f32[2,128], index: 4, kind: output, shape index: {}]
  %s5 = sld [smem:[#allocation0]]
  $region26: #{text_encoder_forward.9} parent=0
    _
  %s7 = ssub.s32 1, %s5
  %s8 = scalar_select 0, %s7, %s5
  $region1: #{text_encoder_forward.9} parent=0
    #allocation2 [shape = 'u8[1024]{0}', space=vmem, size = 0x400, scoped, tag = 'output window, operand 0, single buffered']
    #allocation3 [shape = 's32[1]{0}', space=sflag, size = 0x4, scoped, tag = 'scoped memory for text_encoder_forward.9']
    %9 = vsyncpa [#allocation3], 0
    // Predicated region
    $region2: #{text_encoder_forward.9} parent=1 // pred_check
      _
    $region3: #{text_encoder_forward.9} parent=1 // pred_check_branch
      %11 = sbr.rel (0) target = $region5
    $region4: #{text_encoder_forward.9} parent=1 // pred_region
      _
    $region5: #{text_encoder_forward.9} parent=1 // pred_fallthru
      _
    // Predicated region
    $region6: #{text_encoder_forward.9} parent=1 // pred_check
      _
    $region7: #{text_encoder_forward.9} parent=1 // pred_check_branch
      %13 = sbr.rel (0) target = $region9
    $region8: #{text_encoder_forward.9} parent=1 // pred_region
      _
    $region9: #{text_encoder_forward.9} parent=1 // pred_fallthru
      _
    // Predicated region
    $region10: #{text_encoder_forward.9} parent=1 // pred_check
      _
    $region11: #{text_encoder_forward.9} parent=1 // pred_check_branch
      %15 = sbr.rel (0) target = $region13
    $region12: #{text_encoder_forward.9} parent=1 // pred_region
      _
    $region13: #{text_encoder_forward.9} parent=1 // pred_fallthru
      _
    // Predicated region
    $region14: #{text_encoder_forward.9} parent=1 // pred_check
      _
    $region15: #{text_encoder_forward.9} parent=1 // pred_check_branch
      %17 = sbr.rel (0) target = $region17
    $region16: #{text_encoder_forward.9} parent=1 // pred_region
      _
    $region17: #{text_encoder_forward.9} parent=1 // pred_fallthru
      _
    %v19 = vld [vmem:[%s0] sm:$0x3]
    %v20 = vld [vmem:[%s1] sm:$0x1]
    %v21 = vld [vmem:[%s2] sm:$0x1]
    %vm22 = vcmask 254976
    %v23 = vsel %vm22, %v19, 0.0
    %24 = vadd.xlane.f32.xlu0 %v23
    %v25 = vpop.xlane.xlu0 %24
    %v26 = vrcp.pop 32.0
    %v27 = vmul.f32 %v25, %v26
    %v28 = vsub.f32 %v19, %v27
    %v29 = vmul.f32 %v28, %v28
    %v30 = vsel %vm22, %v29, 0.0
    %31 = vadd.xlane.f32.xlu0 %v30
    %v32 = vpop.xlane.xlu0 %31
    %v33 = vmul.f32 %v32, %v26
    %v34 = vadd.f32 %v33, 1e-05
    %v35 = vrsqrt.pop %v34
    %v36 = vmul.f32 %v28, %v35
    %v38 = vlaneseq
    %v39 = vshrl.u32 %v38, 7
    %v40 = vsub.s32 0, %v39
    %v41 = vrot.slane %v20, %v40
    %v43 = vmul.f32 %v36, %v41
    %v45 = vlaneseq
    %v46 = vshrl.u32 %v45, 7
    %v47 = vsub.s32 0, %v46
    %v48 = vrot.slane %v21, %v47
    %v50 = vadd.f32 %v43, %v48
    %v51 = vpack.c.bf16 %v50, %v50
    %v52 = vld [vmem:[%s3] sm:$0xf]
    %v53 = vld [vmem:[%s3 + $0x4] sm:$0xf]
    %v54 = vld [vmem:[%s3 + $0x8] sm:$0xf]
    %v55 = vld [vmem:[%s3 + $0xc] sm:$0xf]
    %v60 = vunpack.c.l.b16 %v52
    %v61 = vunpack.c.l.b16 %v53
    %v62 = vunpack.c.l.b16 %v54
    %v63 = vunpack.c.l.b16 %v55
    %v64 = vpack.c.b16 %v61, %v60
    %v65 = vpack.c.b16 %v63, %v62
    %vm68 = vcmask 261120
    %v70 = vsel %vm68, %v51, 0
    %72 = vmatprep.subr.bf16.mxu0 0
    %73 = vmatpush1.bf16.msra.mxu0 0
    %74 = vmatprep.subr.bf16.mxu0 0
    %75 = vmatpush1.bf16.msra.mxu0 0
    %76 = vmatprep.subr.bf16.mxu0 0
    %77 = vmatpush1.bf16.msra.mxu0 0
    %78 = vmatprep.subr.bf16.mxu0 0
    %79 = vmatpush1.bf16.msra.mxu0 0
    %80 = vmatprep.subr.bf16.mxu0 0
    %81 = vmatpush1.bf16.msra.mxu0 0
    %82 = vmatprep.subr.bf16.mxu0 0
    %83 = vmatpush1.bf16.msra.mxu0 0
    %84 = vmatprep.subr.bf16.mxu0 0
    %85 = vmatpush1.bf16.msra.mxu0 %v65
    %86 = vmatprep.subr.bf16.mxu0 0
    %87 = vmatpush1.bf16.msra.mxu0 %v64
    %88 = vmatprep.subr.bf16.mxu0 0
    %89 = vmatpush2.bf16.msra.mxu0 0
    %90 = vmatprep.subr.bf16.mxu0 0
    %91 = vmatpush2.bf16.msra.mxu0 0
    %92 = vmatprep.subr.bf16.mxu0 0
    %93 = vmatpush2.bf16.msra.mxu0 0
    %94 = vmatprep.subr.bf16.mxu0 0
    %95 = vmatpush2.bf16.msra.mxu0 0
    %96 = vmatprep.subr.bf16.mxu0 0
    %97 = vmatpush2.bf16.msra.mxu0 0
    %98 = vmatprep.subr.bf16.mxu0 0
    %99 = vmatpush2.bf16.msra.mxu0 0
    %100 = vmatprep.subr.bf16.mxu0 0
    %101 = vmatpush2.bf16.msra.mxu0 0
    %102 = vmatprep.subr.bf16.mxu0 0
    %103 = vmatpush2.bf16.msra.mxu0 0
    %104 = vmatprep.mubr.bf16.mxu0 0
    %105 = vmatmul.mubr.bf16.gmra.mxu0 %v70
    %v106 = vpop.f32.mrf.mxu0
    %v107 = vadd.f32 0.0, %v106
    %v108 = vpop.f32.mrf.mxu0
    %v109 = vpop.f32.mrf.mxu0
    %v110 = vpop.f32.mrf.mxu0
    %111 = vdwg.mxu0
    %112 = vst [vmem:[#allocation2] sm:$0x3] %v107
    // Predicated region
    $region18: #{text_encoder_forward.9} parent=1 // pred_check
      _
    $region19: #{text_encoder_forward.9} parent=1 // pred_check_branch
      %114 = sbr.rel (0) target = $region21
    $region20: #{text_encoder_forward.9} parent=1 // pred_region
      %s116 = ssub.s32 32, 32
      %117 = vsyncadd [#allocation3], %s116
      %s119 = sshll.u32 [#allocation2], 4
      %s120 = int_to_ptr.vmem [resolvable:$true] %s119
      %122 = dma.vmem_to_hbm [thread:$0]  %s120, 32, %s4, [#allocation3]
    $region21: #{text_encoder_forward.9} parent=1 // pred_fallthru
      _
    // Predicated region
    $region22: #{text_encoder_forward.9} parent=1 // pred_check
      _
    $region23: #{text_encoder_forward.9} parent=1 // pred_check_branch
      %124 = sbr.rel (0) target = $region25
    $region24: #{text_encoder_forward.9} parent=1 // pred_region
      %125 = dma.done [#allocation3], 32
    $region25: #{text_encoder_forward.9} parent=1 // pred_fallthru
      _
    %126 = vsyncpa [#allocation3], 1

// kernel: text_encoder_forward.5
$region0: #{text_encoder_forward.5}
  #allocation0 [shape = 'u32[]', space=smem, size = 0x4, offset = 0x4, fixed_abs, tag = 'smem constant byte address 0x4 - core index']
  #allocation1 [shape = 'u32[144,128]{1,0:T(1,128)}', space=vmem, size = 0x12000, scoped, tag = 'internal scratch']
  %s0 = inlined_call_operand.vmem [shape: f32[2,8,32], index: 0, kind: input, shape index: {}]
  %s1 = inlined_call_operand.vmem [shape: f32[8,32], index: 1, kind: input, shape index: {}]
  %s2 = inlined_call_operand.vmem [shape: f32[1,32], index: 2, kind: input, shape index: {}]
  %s3 = inlined_call_operand.vmem [shape: f32[1,32], index: 3, kind: input, shape index: {}]
  %s4 = inlined_call_operand.vmem [shape: bf16[32,96], index: 4, kind: input, shape index: {}]
  %s5 = inlined_call_operand.vmem [shape: f32[1,96], index: 5, kind: input, shape index: {}]
  %s6 = inlined_call_operand.vmem [shape: bf16[32,32], index: 6, kind: input, shape index: {}]
  %s7 = inlined_call_operand.vmem [shape: f32[1,32], index: 7, kind: input, shape index: {}]
  %s8 = inlined_call_operand.vmem [shape: f32[2,8,32], index: 8, kind: output, shape index: {}]
  %s9 = sld [smem:[#allocation0]]
  $region65: #{text_encoder_forward.5} parent=0
    _
  %s11 = ssub.s32 1, %s9
  %s12 = scalar_select 0, %s11, %s9
  loop: start=0, step=1, limit=4
  $region2: #{text_encoder_forward.5} parent=0 // loop_pre_header
    _
  $region3: #{text_encoder_forward.5} parent=0 // loop_header
    %s14 = sphi 0, %s18
    %p15 = scmp.ge.s32.totalorder %s14, 4
    %s24 = sphi 0, %s26
    %s27 = sphi 0, %s24
    %s28 = sphi 0, %s27
    %s44 = sphi 0, %s28
    %s48 = sphi 0, %s48
    %s50 = sphi 0, %s48
    %s51 = sphi 0, %s50
    %s65 = sphi 0, %s51
    %s69 = sphi 0, %s69
    %s71 = sphi 0, %s69
    %s72 = sphi 0, %s71
    %s86 = sphi 0, %s72
    %s90 = sphi 0, %s90
    %s92 = sphi 0, %s90
    %s93 = sphi 0, %s92
    %s107 = sphi 0, %s93
    %s111 = sphi 0, %s111
    %s113 = sphi 0, %s111
    %s114 = sphi 0, %s113
    %s128 = sphi 0, %s114
    %s132 = sphi 0, %s132
    %s134 = sphi 0, %s132
    %s135 = sphi 0, %s134
    %s149 = sphi 0, %s135
    %s153 = sphi 0, %s153
    %s155 = sphi 0, %s153
    %s156 = sphi 0, %s155
    %s170 = sphi 0, %s156
    %s174 = sphi 0, %s174
    %s176 = sphi 0, %s174
    %s177 = sphi 0, %s176
    %s191 = sphi 0, %s177
    %s197 = sphi 0, %s199
    %s200 = sphi 0, %s197
    %s201 = sphi 0, %s200
    %s217 = sphi 0, %s201
  $region4: #{text_encoder_forward.5} parent=0 // loop_header_branch
    %17 = sbr.rel (%p15) target = $region8
  $region5: #{text_encoder_forward.5} parent=0 // loop_body
    %s19 = ssub.s32 %s14, 1
    %s20 = ssub.s32 %s14, 2
    %s21 = sadd.s32 %s14, 1
    %s22 = ssub.s32 %s14, %s21
    %p23 = scmp.eq.s32.totalorder %s22, 0
    %s25 = sadd.s32 %s24, 1
    %s26 = scalar_select %p23, %s24, %s25
    %p29 = pneg %p23
    %p30 = scmp.eq.s32.totalorder %s14, 1
    %p31 = por %p29, %p30
    %p32 = scmp.ne.s32.totalorder %s24, %s27
    %p33 = scmp.eq.s32.totalorder %s14, 0
    %p34 = por %p32, %p33
    %p35 = scmp.ne.s32.totalorder %s24, %s27
    %p36 = scmp.eq.s32.totalorder %s19, 1
    %p37 = por %p35, %p36
    %p38 = scmp.ne.s32.totalorder %s27, %s28
    %p39 = scmp.eq.s32.totalorder %s19, 0
    %p40 = por %p38, %p39
    %p41 = scmp.ne.s32.totalorder %s27, %s28
    %p42 = scmp.eq.s32.totalorder %s20, 1
    %p43 = por %p41, %p42
    %p45 = scmp.ne.s32.totalorder %s28, %s44
    %p46 = scmp.eq.s32.totalorder %s20, 0
    %p47 = por %p45, %p46
    %s49 = sadd.s32 %s48, 1
    %p52 = scmp.eq.s32.totalorder %s14, 1
    %p53 = scmp.ne.s32.totalorder %s48, %s50
    %p54 = scmp.eq.s32.totalorder %s14, 0
    %p55 = por %p53, %p54
    %p56 = scmp.ne.s32.totalorder %s48, %s50
    %p57 = scmp.eq.s32.totalorder %s19, 1
    %p58 = por %p56, %p57
    %p59 = scmp.ne.s32.totalorder %s50, %s51
    %p60 = scmp.eq.s32.totalorder %s19, 0
    %p61 = por %p59, %p60
    %p62 = scmp.ne.s32.totalorder %s50, %s51
    %p63 = scmp.eq.s32.totalorder %s20, 1
    %p64 = por %p62, %p63
    %p66 = scmp.ne.s32.totalorder %s51, %s65
    %p67 = scmp.eq.s32.totalorder %s20, 0
    %p68 = por %p66, %p67
    %s70 = sadd.s32 %s69, 1
    %p73 = scmp.eq.s32.totalorder %s14, 1
    %p74 = scmp.ne.s32.totalorder %s69, %s71
    %p75 = scmp.eq.s32.totalorder %s14, 0
    %p76 = por %p74, %p75
    %p77 = scmp.ne.s32.totalorder %s69, %s71
    %p78 = scmp.eq.s32.totalorder %s19, 1
    %p79 = por %p77, %p78
    %p80 = scmp.ne.s32.totalorder %s71, %s72
    %p81 = scmp.eq.s32.totalorder %s19, 0
    %p82 = por %p80, %p81
    %p83 = scmp.ne.s32.totalorder %s71, %s72
    %p84 = scmp.eq.s32.totalorder %s20, 1
    %p85 = por %p83, %p84
    %p87 = scmp.ne.s32.totalorder %s72, %s86
    %p88 = scmp.eq.s32.totalorder %s20, 0
    %p89 = por %p87, %p88
    %s91 = sadd.s32 %s90, 1
    %p94 = scmp.eq.s32.totalorder %s14, 1
    %p95 = scmp.ne.s32.totalorder %s90, %s92
    %p96 = scmp.eq.s32.totalorder %s14, 0
    %p97 = por %p95, %p96
    %p98 = scmp.ne.s32.totalorder %s90, %s92
    %p99 = scmp.eq.s32.totalorder %s19, 1
    %p100 = por %p98, %p99
    %p101 = scmp.ne.s32.totalorder %s92, %s93
    %p102 = scmp.eq.s32.totalorder %s19, 0
    %p103 = por %p101, %p102
    %p104 = scmp.ne.s32.totalorder %s92, %s93
    %p105 = scmp.eq.s32.totalorder %s20, 1
    %p106 = por %p104, %p105
    %p108 = scmp.ne.s32.totalorder %s93, %s107
    %p109 = scmp.eq.s32.totalorder %s20, 0
    %p110 = por %p108, %p109
    %s112 = sadd.s32 %s111, 1
    %p115 = scmp.eq.s32.totalorder %s14, 1
    %p116 = scmp.ne.s32.totalorder %s111, %s113
    %p117 = scmp.eq.s32.totalorder %s14, 0
    %p118 = por %p116, %p117
    %p119 = scmp.ne.s32.totalorder %s111, %s113
    %p120 = scmp.eq.s32.totalorder %s19, 1
    %p121 = por %p119, %p120
    %p122 = scmp.ne.s32.totalorder %s113, %s114
    %p123 = scmp.eq.s32.totalorder %s19, 0
    %p124 = por %p122, %p123
    %p125 = scmp.ne.s32.totalorder %s113, %s114
    %p126 = scmp.eq.s32.totalorder %s20, 1
    %p127 = por %p125, %p126
    %p129 = scmp.ne.s32.totalorder %s114, %s128
    %p130 = scmp.eq.s32.totalorder %s20, 0
    %p131 = por %p129, %p130
    %s133 = sadd.s32 %s132, 1
    %p136 = scmp.eq.s32.totalorder %s14, 1
    %p137 = scmp.ne.s32.totalorder %s132, %s134
    %p138 = scmp.eq.s32.totalorder %s14, 0
    %p139 = por %p137, %p138
    %p140 = scmp.ne.s32.totalorder %s132, %s134
    %p141 = scmp.eq.s32.totalorder %s19, 1
    %p142 = por %p140, %p141
    %p143 = scmp.ne.s32.totalorder %s134, %s135
    %p144 = scmp.eq.s32.totalorder %s19, 0
    %p145 = por %p143, %p144
    %p146 = scmp.ne.s32.totalorder %s134, %s135
    %p147 = scmp.eq.s32.totalorder %s20, 1
    %p148 = por %p146, %p147
    %p150 = scmp.ne.s32.totalorder %s135, %s149
    %p151 = scmp.eq.s32.totalorder %s20, 0
    %p152 = por %p150, %p151
    %s154 = sadd.s32 %s153, 1
    %p157 = scmp.eq.s32.totalorder %s14, 1
    %p158 = scmp.ne.s32.totalorder %s153, %s155
    %p159 = scmp.eq.s32.totalorder %s14, 0
    %p160 = por %p158, %p159
    %p161 = scmp.ne.s32.totalorder %s153, %s155
    %p162 = scmp.eq.s32.totalorder %s19, 1
    %p163 = por %p161, %p162
    %p164 = scmp.ne.s32.totalorder %s155, %s156
    %p165 = scmp.eq.s32.totalorder %s19, 0
    %p166 = por %p164, %p165
    %p167 = scmp.ne.s32.totalorder %s155, %s156
    %p168 = scmp.eq.s32.totalorder %s20, 1
    %p169 = por %p167, %p168
    %p171 = scmp.ne.s32.totalorder %s156, %s170
    %p172 = scmp.eq.s32.totalorder %s20, 0
    %p173 = por %p171, %p172
    %s175 = sadd.s32 %s174, 1
    %p178 = scmp.eq.s32.totalorder %s14, 1
    %p179 = scmp.ne.s32.totalorder %s174, %s176
    %p180 = scmp.eq.s32.totalorder %s14, 0
    %p181 = por %p179, %p180
    %p182 = scmp.ne.s32.totalorder %s174, %s176
    %p183 = scmp.eq.s32.totalorder %s19, 1
    %p184 = por %p182, %p183
    %p185 = scmp.ne.s32.totalorder %s176, %s177
    %p186 = scmp.eq.s32.totalorder %s19, 0
    %p187 = por %p185, %p186
    %p188 = scmp.ne.s32.totalorder %s176, %s177
    %p189 = scmp.eq.s32.totalorder %s20, 1
    %p190 = por %p188, %p189
    %p192 = scmp.ne.s32.totalorder %s177, %s191
    %p193 = scmp.eq.s32.totalorder %s20, 0
    %p194 = por %p192, %p193
    %s195 = ssub.s32 %s14, %s21
    %p196 = scmp.eq.s32.totalorder %s195, 0
    %s198 = sadd.s32 %s197, 1
    %s199 = scalar_select %p196, %s197, %s198
    %p202 = pneg %p196
    %p203 = scmp.eq.s32.totalorder %s14, 1
    %p204 = por %p202, %p203
    %p205 = scmp.ne.s32.totalorder %s197, %s200
    %p206 = scmp.eq.s32.totalorder %s14, 0
    %p207 = por %p205, %p206
    %p208 = scmp.ne.s32.totalorder %s197, %s200
    %p209 = scmp.eq.s32.totalorder %s19, 1
    %p210 = por %p208, %p209
    %p211 = scmp.ne.s32.totalorder %s200, %s201
    %p212 = scmp.eq.s32.totalorder %s19, 0
    %p213 = por %p211, %p212
    %p214 = scmp.ne.s32.totalorder %s200, %s201
    %p215 = scmp.eq.s32.totalorder %s20, 1
    %p216 = por %p214, %p215
    %p218 = scmp.ne.s32.totalorder %s201, %s217
    %p219 = scmp.eq.s32.totalorder %s20, 0
    %p220 = por %p218, %p219
    %p221 = scmp.le.s32.totalorder 1, %s14
    %p222 = scmp.lt.s32.totalorder %s14, 3
    %p223 = pnand %p221, %p222
    %p224 = pneg %p223
    // Predicated region
    $region9: #{text_encoder_forward.5} parent=5 // pred_check
      _
    $region10: #{text_encoder_forward.5} parent=5 // pred_check_branch
      %226 = sbr.rel (%p223) target = $region12
    $region11: #{text_encoder_forward.5} parent=5 // pred_region
      %s227 = ssub.s32 %s14, 1
      // Predicated region
      $region13: #{text_encoder_forward.5} parent=11 // pred_check
        %p228 = pneg %p61
      $region14: #{text_encoder_forward.5} parent=11 // pred_check_branch
        %230 = sbr.rel (%p228) target = $region16
      $region15: #{text_encoder_forward.5} parent=11 // pred_region
        _
      $region16: #{text_encoder_forward.5} parent=11 // pred_fallthru
        _
      // Predicated region
      $region17: #{text_encoder_forward.5} parent=11 // pred_check
        %p231 = pneg %p82
      $region18: #{text_encoder_forward.5} parent=11 // pred_check_branch
        %233 = sbr.rel (%p231) target = $region20
      $region19: #{text_encoder_forward.5} parent=11 // pred_region
        _
      $region20: #{text_encoder_forward.5} parent=11 // pred_fallthru
        _
      // Predicated region
      $region21: #{text_encoder_forward.5} parent=11 // pred_check
        %p234 = pneg %p103
      $region22: #{text_encoder_forward.5} parent=11 // pred_check_branch
        %236 = sbr.rel (%p234) target = $region24
      $region23: #{text_encoder_forward.5} parent=11 // pred_region
        _
      $region24: #{text_encoder_forward.5} parent=11 // pred_fallthru
        _
      // Predicated region
      $region25: #{text_encoder_forward.5} parent=11 // pred_check
        %p237 = pneg %p124
      $region26: #{text_encoder_forward.5} parent=11 // pred_check_branch
        %239 = sbr.rel (%p237) target = $region28
      $region27: #{text_encoder_forward.5} parent=11 // pred_region
        _
      $region28: #{text_encoder_forward.5} parent=11 // pred_fallthru
        _
      // Predicated region
      $region29: #{text_encoder_forward.5} parent=11 // pred_check
        %p240 = pneg %p145
      $region30: #{text_encoder_forward.5} parent=11 // pred_check_branch
        %242 = sbr.rel (%p240) target = $region32
      $region31: #{text_encoder_forward.5} parent=11 // pred_region
        _
      $region32: #{text_encoder_forward.5} parent=11 // pred_fallthru
        _
      // Predicated region
      $region33: #{text_encoder_forward.5} parent=11 // pred_check
        %p243 = pneg %p166
      $region34: #{text_encoder_forward.5} parent=11 // pred_check_branch
        %245 = sbr.rel (%p243) target = $region36
      $region35: #{text_encoder_forward.5} parent=11 // pred_region
        _
      $region36: #{text_encoder_forward.5} parent=11 // pred_fallthru
        _
      // Predicated region
      $region37: #{text_encoder_forward.5} parent=11 // pred_check
        %p246 = pneg %p187
      $region38: #{text_encoder_forward.5} parent=11 // pred_check_branch
        %248 = sbr.rel (%p246) target = $region40
      $region39: #{text_encoder_forward.5} parent=11 // pred_region
        _
      $region40: #{text_encoder_forward.5} parent=11 // pred_fallthru
        _
    $region12: #{text_encoder_forward.5} parent=5 // pred_fallthru
      _
    %p249 = scmp.lt.s32.totalorder %s14, 2
    // Predicated region
    $region41: #{text_encoder_forward.5} parent=5 // pred_check
      %p250 = pneg %p249
    $region42: #{text_encoder_forward.5} parent=5 // pred_check_branch
      %252 = sbr.rel (%p250) target = $region44
    $region43: #{text_encoder_forward.5} parent=5 // pred_region
      // Predicated region
      $region45: #{text_encoder_forward.5} parent=43 // pred_check
        %p253 = pneg %p34
      $region46: #{text_encoder_forward.5} parent=43 // pred_check_branch
        %255 = sbr.rel (%p253) target = $region48
      $region47: #{text_encoder_forward.5} parent=43 // pred_region
        %p256 = scmp.lt.s32.totalorder %s14, 1
        %s257 = scalar_select %p256, %s14, 1
        %s258 = smul.addr %s257, 8
        %s259 = scalar_lea.vmem %s0, %s258
      $region48: #{text_encoder_forward.5} parent=43 // pred_fallthru
        _
    $region44: #{text_encoder_forward.5} parent=5 // pred_fallthru
      _
    %p260 = scmp.le.s32.totalorder 1, %s14
    %p261 = scmp.lt.s32.totalorder %s14, 3
    %p262 = pnand %p260, %p261
    %p263 = pneg %p262
    // Predicated region
    $region49: #{text_encoder_forward.5} parent=5 // pred_check
      _
    $region50: #{text_encoder_forward.5} parent=5 // pred_check_branch
      %265 = sbr.rel (%p262) target = $region52
    $region51: #{text_encoder_forward.5} parent=5 // pred_region
      %s266 = ssub.s32 %s14, 1
      %p267 = scmp.lt.s32.totalorder %s19, 1
      %s268 = scalar_select %p267, %s19, 1
      %s269 = smul.addr %s268, 8
      %s270 = scalar_lea.vmem %s0, %s269
      %p271 = pneg %p40
      %p272 = pneg %p37
      %p273 = pneg %p61
      %p274 = pneg %p58
      %p275 = pneg %p82
      %p276 = pneg %p79
      %p277 = pneg %p103
      %p278 = pneg %p100
      %p279 = pneg %p124
      %p280 = pneg %p121
      %p281 = pneg %p145
      %p282 = pneg %p142
      %p283 = pneg %p166
      %p284 = pneg %p163
      %p285 = pneg %p187
      %p286 = pneg %p184
      %p287 = pneg %p213
      %p288 = pneg %p210
      %p289 = scmp.lt.s32.totalorder %s19, 1
      %s290 = scalar_select %p289, %s19, 1
      %s291 = smul.addr %s290, 8
      %s292 = scalar_lea.vmem %s8, %s291
      %p293 = scmp.lt.s32.totalorder %s19, 1
      %s294 = scalar_select %p293, %s19, 1
      %s295 = smul.addr %s294, 8
      %s296 = scalar_lea.vmem %s0, %s295
      %p297 = scmp.lt.s32.totalorder %s19, 1
      %s298 = scalar_select %p297, %s19, 1
      %s299 = smul.addr %s298, 8
      %s300 = scalar_lea.vmem %s8, %s299
      %v302 = vld [vmem:[%s296] sm:$0xff]
      %v303 = vld [vmem:[%s1] sm:$0xff]
      %v304 = vadd.f32 %v302, %v303
      %v305 = vld [vmem:[%s2] sm:$0x1]
      %v306 = vld [vmem:[%s3] sm:$0x1]
      %vm307 = vcmask 261120
      %v308 = vsel %vm307, %v304, 0.0
      %309 = vadd.xlane.f32.xlu0 %v308
      %v310 = vpop.xlane.xlu0 %309
      %v311 = vrcp.pop 32.0
      %v312 = vmul.f32 %v310, %v311
      %v313 = vsub.f32 %v304, %v312
      %v314 = vmul.f32 %v313, %v313
      %v315 = vsel %vm307, %v314, 0.0
      %316 = vadd.xlane.f32.xlu0 %v315
      %v317 = vpop.xlane.xlu0 %316
      %v318 = vmul.f32 %v317, %v311
      %v319 = vadd.f32 %v318, 1e-05
      %v320 = vrsqrt.pop %v319
      %v321 = vmul.f32 %v313, %v320
      %v323 = vlaneseq
      %v324 = vshrl.u32 %v323, 7
      %v325 = vsub.s32 0, %v324
      %v326 = vrot.slane %v305, %v325
      %v328 = vmul.f32 %v321, %v326
      %v330 = vlaneseq
      %v331 = vshrl.u32 %v330, 7
      %v332 = vsub.s32 0, %v331
      %v333 = vrot.slane %v306, %v332
      %v335 = vadd.f32 %v328, %v333
      %v336 = vpack.c.bf16 %v335, %v335
      %v337 = vld [vmem:[%s4] sm:$0xf]
      %v338 = vld [vmem:[%s4 + $0x4] sm:$0xf]
      %v339 = vld [vmem:[%s4 + $0x8] sm:$0xf]
      %v340 = vld [vmem:[%s4 + $0xc] sm:$0xf]
      %v341 = vld [vmem:[%s5] sm:$0x1]
      %v343 = vlaneseq
      %v344 = vshrl.u32 %v343, 7
      %v345 = vsub.s32 0, %v344
      %v346 = vrot.slane %v341, %v345
      %v352 = vunpack.c.l.b16 %v337
      %v353 = vunpack.c.l.b16 %v338
      %v354 = vunpack.c.l.b16 %v339
      %v355 = vunpack.c.l.b16 %v340
      %v356 = vpack.c.b16 %v353, %v352
      %v357 = vpack.c.b16 %v355, %v354
      %v361 = vsel %vm307, %v336, 0
      %363 = vmatprep.subr.bf16.mxu0 0
      %364 = vmatpush1.bf16.msra.mxu0 0
      %365 = vmatprep.subr.bf16.mxu0 0
      %366 = vmatpush1.bf16.msra.mxu0 0
      %367 = vmatprep.subr.bf16.mxu0 0
      %368 = vmatpush1.bf16.msra.mxu0 0
      %369 = vmatprep.subr.bf16.mxu0 0
      %370 = vmatpush1.bf16.msra.mxu0 0
      %371 = vmatprep.subr.bf16.mxu0 0
      %372 = vmatpush1.bf16.msra.mxu0 0
      %373 = vmatprep.subr.bf16.mxu0 0
      %374 = vmatpush1.bf16.msra.mxu0 0
      %375 = vmatprep.subr.bf16.mxu0 0
      %376 = vmatpush1.bf16.msra.mxu0 %v357
      %377 = vmatprep.subr.bf16.mxu0 0
      %378 = vmatpush1.bf16.msra.mxu0 %v356
      %379 = vmatprep.subr.bf16.mxu0 0
      %380 = vmatpush2.bf16.msra.mxu0 0
      %381 = vmatprep.subr.bf16.mxu0 0
      %382 = vmatpush2.bf16.msra.mxu0 0
      %383 = vmatprep.subr.bf16.mxu0 0
      %384 = vmatpush2.bf16.msra.mxu0 0
      %385 = vmatprep.subr.bf16.mxu0 0
      %386 = vmatpush2.bf16.msra.mxu0 0
      %387 = vmatprep.subr.bf16.mxu0 0
      %388 = vmatpush2.bf16.msra.mxu0 0
      %389 = vmatprep.subr.bf16.mxu0 0
      %390 = vmatpush2.bf16.msra.mxu0 0
      %391 = vmatprep.subr.bf16.mxu0 0
      %392 = vmatpush2.bf16.msra.mxu0 0
      %393 = vmatprep.subr.bf16.mxu0 0
      %394 = vmatpush2.bf16.msra.mxu0 0
      %395 = vmatprep.mubr.bf16.mxu0 0
      %396 = vmatmul.mubr.bf16.gmra.mxu0 %v361
      %v397 = vpop.f32.mrf.mxu0
      %v398 = vadd.f32 %v346, %v397
      %v399 = vpop.f32.mrf.mxu0
      %v400 = vpop.f32.mrf.mxu0
      %v401 = vpop.f32.mrf.mxu0
      %402 = vdwg.mxu0
      %v403 = vlaneseq
      %v404 = vshrl.u32 %v403, 7
      %v405 = vlaneseq
      %v406 = vand.u32 %v405, 127
      %vm407 = vcmp.le.s32.totalorder %v406, %v404
      %v408 = vpack.c.bf16 %v398, %v398
      %410 = vrot.lane.b32.xlu0 %v408, 96
      %v411 = vpop.permute.xlu0 %410
      %vm412 = vcmask 64512
      %v414 = vsel %vm412, %v408, 0
      %v417 = vsel %vm412, %v411, 0
      %419 = vmatprep.subr.bf16.mxu0 0
      %420 = vmatpush1.bf16.xpose.msra.mxu0 0
      %421 = vmatprep.subr.bf16.mxu0 0
      %422 = vmatpush1.bf16.xpose.msra.mxu0 0
      %423 = vmatprep.subr.bf16.mxu0 0
      %424 = vmatpush1.bf16.xpose.msra.mxu0 0
      %425 = vmatprep.subr.bf16.mxu0 0
      %426 = vmatpush1.bf16.xpose.msra.mxu0 0
      %427 = vmatprep.subr.bf16.mxu0 0
      %428 = vmatpush1.bf16.xpose.msra.mxu0 0
      %429 = vmatprep.subr.bf16.mxu0 0
      %430 = vmatpush1.bf16.xpose.msra.mxu0 0
      %431 = vmatprep.subr.bf16.mxu0 0
      %432 = vmatpush1.bf16.xpose.msra.mxu0 0
      %433 = vmatprep.subr.bf16.mxu0 0
      %434 = vmatpush1.bf16.xpose.msra.mxu0 %v417
      %435 = vmatprep.subr.bf16.mxu0 0
      %436 = vmatpush2.bf16.xpose.msra.mxu0 0
      %437 = vmatprep.subr.bf16.mxu0 0
      %438 = vmatpush2.bf16.xpose.msra.mxu0 0
      %439 = vmatprep.subr.bf16.mxu0 0
      %440 = vmatpush2.bf16.xpose.msra.mxu0 0
      %441 = vmatprep.subr.bf16.mxu0 0
      %442 = vmatpush2.bf16.xpose.msra.mxu0 0
      %443 = vmatprep.subr.bf16.mxu0 0
      %444 = vmatpush2.bf16.xpose.msra.mxu0 0
      %445 = vmatprep.subr.bf16.mxu0 0
      %446 = vmatpush2.bf16.xpose.msra.mxu0 0
      %447 = vmatprep.subr.bf16.mxu0 0
      %448 = vmatpush2.bf16.xpose.msra.mxu0 0
      %449 = vmatprep.subr.bf16.mxu0 0
      %450 = vmatpush2.bf16.xpose.msra.mxu0 0
      %451 = vmatprep.mubr.bf16.mxu0 0
      %452 = vmatmul.mubr.bf16.gmra.mxu0 %v414
      %v453 = vpop.f32.mrf.mxu0
      %v454 = vadd.f32 0.0, %v453
      %v455 = vpop.f32.mrf.mxu0
      %v456 = vpop.f32.mrf.mxu0
      %v457 = vpop.f32.mrf.mxu0
      %458 = vdwg.mxu0
      %v459 = vmul.f32 %v454, 0.35355338
      %v460 = vsel %vm407, %v459, -inf
      %v461 = vsel %vm412, %v460, -inf
      %462 = vmax.xlane.f32.xlu0 %v461
      %v463 = vpop.xlane.xlu0 %462
      %v464 = vsub.f32 %v460, %v463
      %v465 = vmul.f32 %v464, 1.442695
      %v466 = vpow.pop %v465
      %v467 = vsel %vm412, %v466, 0.0
      %468 = vadd.xlane.f32.xlu0 %v467
      %v469 = vpop.xlane.xlu0 %468
      %v470 = vrcp.pop %v469
      %v471 = vmul.f32 %v466, %v470
      %v472 = vpack.c.bf16 %v471, %v471
      %473 = vrot.lane.b32.xlu0 %v408, 64
      %v474 = vpop.permute.xlu0 %473
      %v476 = vsel %vm412, %v472, 0
      %vm478 = vcmask 1043456
      %v480 = vsel %vm478, %v474, 0
      %482 = vmatprep.subr.bf16.mxu0 0
      %483 = vmatpush1.bf16.msra.mxu0 0
      %484 = vmatprep.subr.bf16.mxu0 0
      %485 = vmatpush1.bf16.msra.mxu0 0
      %486 = vmatprep.subr.bf16.mxu0 0
      %487 = vmatpush1.bf16.msra.mxu0 0
      %488 = vmatprep.subr.bf16.mxu0 0
      %489 = vmatpush1.bf16.msra.mxu0 0
      %490 = vmatprep.subr.bf16.mxu0 0
      %491 = vmatpush1.bf16.msra.mxu0 0
      %492 = vmatprep.subr.bf16.mxu0 0
      %493 = vmatpush1.bf16.msra.mxu0 0
      %494 = vmatprep.subr.bf16.mxu0 0
      %495 = vmatpush1.bf16.msra.mxu0 0
      %496 = vmatprep.subr.bf16.mxu0 0
      %497 = vmatpush1.bf16.msra.mxu0 %v480
      %498 = vmatprep.subr.bf16.mxu0 0
      %499 = vmatpush2.bf16.msra.mxu0 0
      %500 = vmatprep.subr.bf16.mxu0 0
      %501 = vmatpush2.bf16.msra.mxu0 0
      %502 = vmatprep.subr.bf16.mxu0 0
      %503 = vmatpush2.bf16.msra.mxu0 0
      %504 = vmatprep.subr.bf16.mxu0 0
      %505 = vmatpush2.bf16.msra.mxu0 0
      %506 = vmatprep.subr.bf16.mxu0 0
      %507 = vmatpush2.bf16.msra.mxu0 0
      %508 = vmatprep.subr.bf16.mxu0 0
      %509 = vmatpush2.bf16.msra.mxu0 0
      %510 = vmatprep.subr.bf16.mxu0 0
      %511 = vmatpush2.bf16.msra.mxu0 0
      %512 = vmatprep.subr.bf16.mxu0 0
      %513 = vmatpush2.bf16.msra.mxu0 0
      %514 = vmatprep.mubr.bf16.mxu0 0
      %515 = vmatmul.mubr.bf16.gmra.mxu0 %v476
      %v516 = vpop.f32.mrf.mxu0
      %v517 = vadd.f32 0.0, %v516
      %v518 = vpop.f32.mrf.mxu0
      %v519 = vpop.f32.mrf.mxu0
      %v520 = vpop.f32.mrf.mxu0
      %521 = vdwg.mxu0
      %522 = vrot.lane.b32.xlu0 %v408, 120
      %v523 = vpop.permute.xlu0 %522
      %524 = vrot.lane.b32.xlu0 %v408, 88
      %v525 = vpop.permute.xlu0 %524
      %v527 = vsel %vm412, %v523, 0
      %v530 = vsel %vm412, %v525, 0
      %532 = vmatprep.subr.bf16.mxu0 0
      %533 = vmatpush1.bf16.xpose.msra.mxu0 0
      %534 = vmatprep.subr.bf16.mxu0 0
      %535 = vmatpush1.bf16.xpose.msra.mxu0 0
      %536 = vmatprep.subr.bf16.mxu0 0
      %537 = vmatpush1.bf16.xpose.msra.mxu0 0
      %538 = vmatprep.subr.bf16.mxu0 0
      %539 = vmatpush1.bf16.xpose.msra.mxu0 0
      %540 = vmatprep.subr.bf16.mxu0 0
      %541 = vmatpush1.bf16.xpose.msra.mxu0 0
      %542 = vmatprep.subr.bf16.mxu0 0
      %543 = vmatpush1.bf16.xpose.msra.mxu0 0
      %544 = vmatprep.subr.bf16.mxu0 0
      %545 = vmatpush1.bf16.xpose.msra.mxu0 0
      %546 = vmatprep.subr.bf16.mxu0 0
      %547 = vmatpush1.bf16.xpose.msra.mxu0 %v530
      %548 = vmatprep.subr.bf16.mxu0 0
      %549 = vmatpush2.bf16.xpose.msra.mxu0 0
      %550 = vmatprep.subr.bf16.mxu0 0
      %551 = vmatpush2.bf16.xpose.msra.mxu0 0
      %552 = vmatprep.subr.bf16.mxu0 0
      %553 = vmatpush2.bf16.xpose.msra.mxu0 0
      %554 = vmatprep.subr.bf16.mxu0 0
      %555 = vmatpush2.bf16.xpose.msra.mxu0 0
      %556 = vmatprep.subr.bf16.mxu0 0
      %557 = vmatpush2.bf16.xpose.msra.mxu0 0
      %558 = vmatprep.subr.bf16.mxu0 0
      %559 = vmatpush2.bf16.xpose.msra.mxu0 0
      %560 = vmatprep.subr.bf16.mxu0 0
      %561 = vmatpush2.bf16.xpose.msra.mxu0 0
      %562 = vmatprep.subr.bf16.mxu0 0
      %563 = vmatpush2.bf16.xpose.msra.mxu0 0
      %564 = vmatprep.mubr.bf16.mxu0 0
      %565 = vmatmul.mubr.bf16.gmra.mxu0 %v527
      %v566 = vpop.f32.mrf.mxu0
      %v567 = vadd.f32 0.0, %v566
      %v568 = vpop.f32.mrf.mxu0
      %v569 = vpop.f32.mrf.mxu0
      %v570 = vpop.f32.mrf.mxu0
      %571 = vdwg.mxu0
      %v572 = vmul.f32 %v567, 0.35355338
      %v573 = vsel %vm407, %v572, -inf
      %v574 = vsel %vm412, %v573, -inf
      %575 = vmax.xlane.f32.xlu0 %v574
      %v576 = vpop.xlane.xlu0 %575
      %v577 = vsub.f32 %v573, %v576
      %v578 = vmul.f32 %v577, 1.442695
      %v579 = vpow.pop %v578
      %v580 = vsel %vm412, %v579, 0.0
      %581 = vadd.xlane.f32.xlu0 %v580
      %v582 = vpop.xlane.xlu0 %581
      %v583 = vrcp.pop %v582
      %v584 = vmul.f32 %v579, %v583
      %v585 = vpack.c.bf16 %v584, %v584
      %586 = vrot.lane.b32.xlu0 %v408, 56
      %v587 = vpop.permute.xlu0 %586
      %v589 = vsel %vm412, %v585, 0
      %v592 = vsel %vm478, %v587, 0
      %594 = vmatprep.subr.bf16.mxu0 0
      %595 = vmatpush1.bf16.msra.mxu0 0
      %596 = vmatprep.subr.bf16.mxu0 0
      %597 = vmatpush1.bf16.msra.mxu0 0
      %598 = vmatprep.subr.bf16.mxu0 0
      %599 = vmatpush1.bf16.msra.mxu0 0
      %600 = vmatprep.subr.bf16.mxu0 0
      %601 = vmatpush1.bf16.msra.mxu0 0
      %602 = vmatprep.subr.bf16.mxu0 0
      %603 = vmatpush1.bf16.msra.mxu0 0
      %604 = vmatprep.subr.bf16.mxu0 0
      %605 = vmatpush1.bf16.msra.mxu0 0
      %606 = vmatprep.subr.bf16.mxu0 0
      %607 = vmatpush1.bf16.msra.mxu0 0
      %608 = vmatprep.subr.bf16.mxu0 0
      %609 = vmatpush1.bf16.msra.mxu0 %v592
      %610 = vmatprep.subr.bf16.mxu0 0
      %611 = vmatpush2.bf16.msra.mxu0 0
      %612 = vmatprep.subr.bf16.mxu0 0
      %613 = vmatpush2.bf16.msra.mxu0 0
      %614 = vmatprep.subr.bf16.mxu0 0
      %615 = vmatpush2.bf16.msra.mxu0 0
      %616 = vmatprep.subr.bf16.mxu0 0
      %617 = vmatpush2.bf16.msra.mxu0 0
      %618 = vmatprep.subr.bf16.mxu0 0
      %619 = vmatpush2.bf16.msra.mxu0 0
      %620 = vmatprep.subr.bf16.mxu0 0
      %621 = vmatpush2.bf16.msra.mxu0 0
      %622 = vmatprep.subr.bf16.mxu0 0
      %623 = vmatpush2.bf16.msra.mxu0 0
      %624 = vmatprep.subr.bf16.mxu0 0
      %625 = vmatpush2.bf16.msra.mxu0 0
      %626 = vmatprep.mubr.bf16.mxu0 0
      %627 = vmatmul.mubr.bf16.gmra.mxu0 %v589
      %v628 = vpop.f32.mrf.mxu0
      %v629 = vadd.f32 0.0, %v628
      %v630 = vpop.f32.mrf.mxu0
      %v631 = vpop.f32.mrf.mxu0
      %v632 = vpop.f32.mrf.mxu0
      %633 = vdwg.mxu0
      %634 = vrot.lane.b32.xlu0 %v408, 112
      %v635 = vpop.permute.xlu0 %634
      %636 = vrot.lane.b32.xlu0 %v408, 80
      %v637 = vpop.permute.xlu0 %636
      %v639 = vsel %vm412, %v635, 0
      %v642 = vsel %vm412, %v637, 0
      %644 = vmatprep.subr.bf16.mxu0 0
      %645 = vmatpush1.bf16.xpose.msra.mxu0 0
      %646 = vmatprep.subr.bf16.mxu0 0
      %647 = vmatpush1.bf16.xpose.msra.mxu0 0
      %648 = vmatprep.subr.bf16.mxu0 0
      %649 = vmatpush1.bf16.xpose.msra.mxu0 0
      %650 = vmatprep.subr.bf16.mxu0 0
      %651 = vmatpush1.bf16.xpose.msra.mxu0 0
      %652 = vmatprep.subr.bf16.mxu0 0
      %653 = vmatpush1.bf16.xpose.msra.mxu0 0
      %654 = vmatprep.subr.bf16.mxu0 0
      %655 = vmatpush1.bf16.xpose.msra.mxu0 0
      %656 = vmatprep.subr.bf16.mxu0 0
      %657 = vmatpush1.bf16.xpose.msra.mxu0 0
      %658 = vmatprep.subr.bf16.mxu0 0
      %659 = vmatpush1.bf16.xpose.msra.mxu0 %v642
      %660 = vmatprep.subr.bf16.mxu0 0
      %661 = vmatpush2.bf16.xpose.msra.mxu0 0
      %662 = vmatprep.subr.bf16.mxu0 0
      %663 = vmatpush2.bf16.xpose.msra.mxu0 0
      %664 = vmatprep.subr.bf16.mxu0 0
      %665 = vmatpush2.bf16.xpose.msra.mxu0 0
      %666 = vmatprep.subr.bf16.mxu0 0
      %667 = vmatpush2.bf16.xpose.msra.mxu0 0
      %668 = vmatprep.subr.bf16.mxu0 0
      %669 = vmatpush2.bf16.xpose.msra.mxu0 0
      %670 = vmatprep.subr.bf16.mxu0 0
      %671 = vmatpush2.bf16.xpose.msra.mxu0 0
      %672 = vmatprep.subr.bf16.mxu0 0
      %673 = vmatpush2.bf16.xpose.msra.mxu0 0
      %674 = vmatprep.subr.bf16.mxu0 0
      %675 = vmatpush2.bf16.xpose.msra.mxu0 0
      %676 = vmatprep.mubr.bf16.mxu0 0
      %677 = vmatmul.mubr.bf16.gmra.mxu0 %v639
      %v678 = vpop.f32.mrf.mxu0
      %v679 = vadd.f32 0.0, %v678
      %v680 = vpop.f32.mrf.mxu0
      %v681 = vpop.f32.mrf.mxu0
      %v682 = vpop.f32.mrf.mxu0
      %683 = vdwg.mxu0
      %v684 = vmul.f32 %v679, 0.35355338
      %v685 = vsel %vm407, %v684, -inf
      %v686 = vsel %vm412, %v685, -inf
      %687 = vmax.xlane.f32.xlu0 %v686
      %v688 = vpop.xlane.xlu0 %687
      %v689 = vsub.f32 %v685, %v688
      %v690 = vmul.f32 %v689, 1.442695
      %v691 = vpow.pop %v690
      %v692 = vsel %vm412, %v691, 0.0
      %693 = vadd.xlane.f32.xlu0 %v692
      %v694 = vpop.xlane.xlu0 %693
      %v695 = vrcp.pop %v694
      %v696 = vmul.f32 %v691, %v695
      %v697 = vpack.c.bf16 %v696, %v696
      %698 = vrot.lane.b32.xlu0 %v408, 48
      %v699 = vpop.permute.xlu0 %698
      %v701 = vsel %vm412, %v697, 0
      %v704 = vsel %vm478, %v699, 0
      %706 = vmatprep.subr.bf16.mxu0 0
      %707 = vmatpush1.bf16.msra.mxu0 0
      %708 = vmatprep.subr.bf16.mxu0 0
      %709 = vmatpush1.bf16.msra.mxu0 0
      %710 = vmatprep.subr.bf16.mxu0 0
      %711 = vmatpush1.bf16.msra.mxu0 0
      %712 = vmatprep.subr.bf16.mxu0 0
      %713 = vmatpush1.bf16.msra.mxu0 0
      %714 = vmatprep.subr.bf16.mxu0 0
      %715 = vmatpush1.bf16.msra.mxu0 0
      %716 = vmatprep.subr.bf16.mxu0 0
      %717 = vmatpush1.bf16.msra.mxu0 0
      %718 = vmatprep.subr.bf16.mxu0 0
      %719 = vmatpush1.bf16.msra.mxu0 0
      %720 = vmatprep.subr.bf16.mxu0 0
      %721 = vmatpush1.bf16.msra.mxu0 %v704
      %722 = vmatprep.subr.bf16.mxu0 0
      %723 = vmatpush2.bf16.msra.mxu0 0
      %724 = vmatprep.subr.bf16.mxu0 0
      %725 = vmatpush2.bf16.msra.mxu0 0
      %726 = vmatprep.subr.bf16.mxu0 0
      %727 = vmatpush2.bf16.msra.mxu0 0
      %728 = vmatprep.subr.bf16.mxu0 0
      %729 = vmatpush2.bf16.msra.mxu0 0
      %730 = vmatprep.subr.bf16.mxu0 0
      %731 = vmatpush2.bf16.msra.mxu0 0
      %732 = vmatprep.subr.bf16.mxu0 0
      %733 = vmatpush2.bf16.msra.mxu0 0
      %734 = vmatprep.subr.bf16.mxu0 0
      %735 = vmatpush2.bf16.msra.mxu0 0
      %736 = vmatprep.subr.bf16.mxu0 0
      %737 = vmatpush2.bf16.msra.mxu0 0
      %738 = vmatprep.mubr.bf16.mxu0 0
      %739 = vmatmul.mubr.bf16.gmra.mxu0 %v701
      %v740 = vpop.f32.mrf.mxu0
      %v741 = vadd.f32 0.0, %v740
      %v742 = vpop.f32.mrf.mxu0
      %v743 = vpop.f32.mrf.mxu0
      %v744 = vpop.f32.mrf.mxu0
      %745 = vdwg.mxu0
      %746 = vrot.lane.b32.xlu0 %v408, 104
      %v747 = vpop.permute.xlu0 %746
      %748 = vrot.lane.b32.xlu0 %v408, 72
      %v749 = vpop.permute.xlu0 %748
      %v751 = vsel %vm412, %v747, 0
      %v754 = vsel %vm412, %v749, 0
      %756 = vmatprep.subr.bf16.mxu0 0
      %757 = vmatpush1.bf16.xpose.msra.mxu0 0
      %758 = vmatprep.subr.bf16.mxu0 0
      %759 = vmatpush1.bf16.xpose.msra.mxu0 0
      %760 = vmatprep.subr.bf16.mxu0 0
      %761 = vmatpush1.bf16.xpose.msra.mxu0 0
      %762 = vmatprep.subr.bf16.mxu0 0
      %763 = vmatpush1.bf16.xpose.msra.mxu0 0
      %764 = vmatprep.subr.bf16.mxu0 0
      %765 = vmatpush1.bf16.xpose.msra.mxu0 0
      %766 = vmatprep.subr.bf16.mxu0 0
      %767 = vmatpush1.bf16.xpose.msra.mxu0 0
      %768 = vmatprep.subr.bf16.mxu0 0
      %769 = vmatpush1.bf16.xpose.msra.mxu0 0
      %770 = vmatprep.subr.bf16.mxu0 0
      %771 = vmatpush1.bf16.xpose.msra.mxu0 %v754
      %772 = vmatprep.subr.bf16.mxu0 0
      %773 = vmatpush2.bf16.xpose.msra.mxu0 0
      %774 = vmatprep.subr.bf16.mxu0 0
      %775 = vmatpush2.bf16.xpose.msra.mxu0 0
      %776 = vmatprep.subr.bf16.mxu0 0
      %777 = vmatpush2.bf16.xpose.msra.mxu0 0
      %778 = vmatprep.subr.bf16.mxu0 0
      %779 = vmatpush2.bf16.xpose.msra.mxu0 0
      %780 = vmatprep.subr.bf16.mxu0 0
      %781 = vmatpush2.bf16.xpose.msra.mxu0 0
      %782 = vmatprep.subr.bf16.mxu0 0
      %783 = vmatpush2.bf16.xpose.msra.mxu0 0
      %784 = vmatprep.subr.bf16.mxu0 0
      %785 = vmatpush2.bf16.xpose.msra.mxu0 0
      %786 = vmatprep.subr.bf16.mxu0 0
      %787 = vmatpush2.bf16.xpose.msra.mxu0 0
      %788 = vmatprep.mubr.bf16.mxu0 0
      %789 = vmatmul.mubr.bf16.gmra.mxu0 %v751
      %v790 = vpop.f32.mrf.mxu0
      %v791 = vadd.f32 0.0, %v790
      %v792 = vpop.f32.mrf.mxu0
      %v793 = vpop.f32.mrf.mxu0
      %v794 = vpop.f32.mrf.mxu0
      %795 = vdwg.mxu0
      %v796 = vmul.f32 %v791, 0.35355338
      %v797 = vsel %vm407, %v796, -inf
      %v798 = vsel %vm412, %v797, -inf
      %799 = vmax.xlane.f32.xlu0 %v798
      %v800 = vpop.xlane.xlu0 %799
      %v801 = vsub.f32 %v797, %v800
      %v802 = vmul.f32 %v801, 1.442695
      %v803 = vpow.pop %v802
      %v804 = vsel %vm412, %v803, 0.0
      %805 = vadd.xlane.f32.xlu0 %v804
      %v806 = vpop.xlane.xlu0 %805
      %v807 = vrcp.pop %v806
      %v808 = vmul.f32 %v803, %v807
      %v809 = vpack.c.bf16 %v808, %v808
      %810 = vrot.lane.b32.xlu0 %v408, 40
      %v811 = vpop.permute.xlu0 %810
      %v813 = vsel %vm412, %v809, 0
      %v816 = vsel %vm478, %v811, 0
      %818 = vmatprep.subr.bf16.mxu0 0
      %819 = vmatpush1.bf16.msra.mxu0 0
      %820 = vmatprep.subr.bf16.mxu0 0
      %821 = vmatpush1.bf16.msra.mxu0 0
      %822 = vmatprep.subr.bf16.mxu0 0
      %823 = vmatpush1.bf16.msra.mxu0 0
      %824 = vmatprep.subr.bf16.mxu0 0
      %825 = vmatpush1.bf16.msra.mxu0 0
      %826 = vmatprep.subr.bf16.mxu0 0
      %827 = vmatpush1.bf16.msra.mxu0 0
      %828 = vmatprep.subr.bf16.mxu0 0
      %829 = vmatpush1.bf16.msra.mxu0 0
      %830 = vmatprep.subr.bf16.mxu0 0
      %831 = vmatpush1.bf16.msra.mxu0 0
      %832 = vmatprep.subr.bf16.mxu0 0
      %833 = vmatpush1.bf16.msra.mxu0 %v816
      %834 = vmatprep.subr.bf16.mxu0 0
      %835 = vmatpush2.bf16.msra.mxu0 0
      %836 = vmatprep.subr.bf16.mxu0 0
      %837 = vmatpush2.bf16.msra.mxu0 0
      %838 = vmatprep.subr.bf16.mxu0 0
      %839 = vmatpush2.bf16.msra.mxu0 0
      %840 = vmatprep.subr.bf16.mxu0 0
      %841 = vmatpush2.bf16.msra.mxu0 0
      %842 = vmatprep.subr.bf16.mxu0 0
      %843 = vmatpush2.bf16.msra.mxu0 0
      %844 = vmatprep.subr.bf16.mxu0 0
      %845 = vmatpush2.bf16.msra.mxu0 0
      %846 = vmatprep.subr.bf16.mxu0 0
      %847 = vmatpush2.bf16.msra.mxu0 0
      %848 = vmatprep.subr.bf16.mxu0 0
      %849 = vmatpush2.bf16.msra.mxu0 0
      %850 = vmatprep.mubr.bf16.mxu0 0
      %851 = vmatmul.mubr.bf16.gmra.mxu0 %v813
      %v852 = vpop.f32.mrf.mxu0
      %v853 = vadd.f32 0.0, %v852
      %v854 = vpop.f32.mrf.mxu0
      %v855 = vpop.f32.mrf.mxu0
      %v856 = vpop.f32.mrf.mxu0
      %857 = vdwg.mxu0
      %859 = vrot.lane.b32.xlu0 %v629, 8
      %v860 = vpop.permute.xlu0 %859
      %863 = vrot.lane.b32.xlu0 %v741, 16
      %v864 = vpop.permute.xlu0 %863
      %867 = vrot.lane.b32.xlu0 %v853, 24
      %v868 = vpop.permute.xlu0 %867
      %v870 = vsel %vm412, %v517, %v860
      %vm871 = vcmask 130048
      %v872 = vsel %vm871, %v870, %v864
      %vm873 = vcmask 195584
      %v874 = vsel %vm873, %v872, %v868
      %v875 = vpack.c.bf16 %v874, %v874
      %v876 = vld [vmem:[%s6] sm:$0xf]
      %v877 = vld [vmem:[%s6 + $0x4] sm:$0xf]
      %v878 = vld [vmem:[%s6 + $0x8] sm:$0xf]
      %v879 = vld [vmem:[%s6 + $0xc] sm:$0xf]
      %v880 = vld [vmem:[%s7] sm:$0x1]
      %v882 = vlaneseq
      %v883 = vshrl.u32 %v882, 7
      %v884 = vsub.s32 0, %v883
      %v885 = vrot.slane %v880, %v884
      %v891 = vunpack.c.l.b16 %v876
      %v892 = vunpack.c.l.b16 %v877
      %v893 = vunpack.c.l.b16 %v878
      %v894 = vunpack.c.l.b16 %v879
      %v895 = vpack.c.b16 %v892, %v891
      %v896 = vpack.c.b16 %v894, %v893
      %v900 = vsel %vm307, %v875, 0
      %902 = vmatprep.subr.bf16.mxu0 0
      %903 = vmatpush1.bf16.msra.mxu0 0
      %904 = vmatprep.subr.bf16.mxu0 0
      %905 = vmatpush1.bf16.msra.mxu0 0
      %906 = vmatprep.subr.bf16.mxu0 0
      %907 = vmatpush1.bf16.msra.mxu0 0
      %908 = vmatprep.subr.bf16.mxu0 0
      %909 = vmatpush1.bf16.msra.mxu0 0
      %910 = vmatprep.subr.bf16.mxu0 0
      %911 = vmatpush1.bf16.msra.mxu0 0
      %912 = vmatprep.subr.bf16.mxu0 0
      %913 = vmatpush1.bf16.msra.mxu0 0
      %914 = vmatprep.subr.bf16.mxu0 0
      %915 = vmatpush1.bf16.msra.mxu0 %v896
      %916 = vmatprep.subr.bf16.mxu0 0
      %917 = vmatpush1.bf16.msra.mxu0 %v895
      %918 = vmatprep.subr.bf16.mxu0 0
      %919 = vmatpush2.bf16.msra.mxu0 0
      %920 = vmatprep.subr.bf16.mxu0 0
      %921 = vmatpush2.bf16.msra.mxu0 0
      %922 = vmatprep.subr.bf16.mxu0 0
      %923 = vmatpush2.bf16.msra.mxu0 0
      %924 = vmatprep.subr.bf16.mxu0 0
      %925 = vmatpush2.bf16.msra.mxu0 0
      %926 = vmatprep.subr.bf16.mxu0 0
      %927 = vmatpush2.bf16.msra.mxu0 0
      %928 = vmatprep.subr.bf16.mxu0 0
      %929 = vmatpush2.bf16.msra.mxu0 0
      %930 = vmatprep.subr.bf16.mxu0 0
      %931 = vmatpush2.bf16.msra.mxu0 0
      %932 = vmatprep.subr.bf16.mxu0 0
      %933 = vmatpush2.bf16.msra.mxu0 0
      %934 = vmatprep.mubr.bf16.mxu0 0
      %935 = vmatmul.mubr.bf16.gmra.mxu0 %v900
      %v936 = vpop.f32.mrf.mxu0
      %v937 = vadd.f32 %v885, %v936
      %v938 = vpop.f32.mrf.mxu0
      %v939 = vpop.f32.mrf.mxu0
      %v940 = vpop.f32.mrf.mxu0
      %941 = vdwg.mxu0
      %v942 = vadd.f32 %v304, %v937
      %943 = vst.msk [vmem:[%s300] sm:$0xff] %vm307, %v942
      %p944 = scmp.lt.s32.totalorder %s19, 1
      %s945 = scalar_select %p944, %s19, 1
      %s946 = smul.addr %s945, 8
      %s947 = scalar_lea.vmem %s8, %s946
      // Predicated region
      $region53: #{text_encoder_forward.5} parent=51 // pred_check
        %p948 = pneg %p210
      $region54: #{text_encoder_forward.5} parent=51 // pred_check_branch
        %950 = sbr.rel (%p948) target = $region56
      $region55: #{text_encoder_forward.5} parent=51 // pred_region
        _
      $region56: #{text_encoder_forward.5} parent=51 // pred_fallthru
        _
    $region52: #{text_encoder_forward.5} parent=5 // pred_fallthru
      _
    %p951 = scmp.le.s32.totalorder 2, %s14
    // Predicated region
    $region57: #{text_encoder_forward.5} parent=5 // pred_check
      %p952 = pneg %p951
    $region58: #{text_encoder_forward.5} parent=5 // pred_check_branch
      %954 = sbr.rel (%p952) target = $region60
    $region59: #{text_encoder_forward.5} parent=5 // pred_region
      %s955 = ssub.s32 %s14, 2
      // Predicated region
      $region61: #{text_encoder_forward.5} parent=59 // pred_check
        %p956 = pneg %p216
      $region62: #{text_encoder_forward.5} parent=59 // pred_check_branch
        %958 = sbr.rel (%p956) target = $region64
      $region63: #{text_encoder_forward.5} parent=59 // pred_region
        %p959 = scmp.lt.s32.totalorder %s20, 1
        %s960 = scalar_select %p959, %s20, 1
        %s961 = smul.addr %s960, 8
        %s962 = scalar_lea.vmem %s8, %s961
      $region64: #{text_encoder_forward.5} parent=59 // pred_fallthru
        _
    $region60: #{text_encoder_forward.5} parent=5 // pred_fallthru
      _
  $region6: #{text_encoder_forward.5} parent=0 // loop_footer
    %s18 = sadd.s32 1, %s14
  $region7: #{text_encoder_forward.5} parent=0 // loop_footer_branch
    %13 = sbr.rel target = $region3
  $region8: #{text_encoder_forward.5} parent=0 // loop_exit
    _

// kernel: text_encoder_forward.7
$region0: #{text_encoder_forward.7}
  #allocation0 [shape = 'u32[]', space=smem, size = 0x4, offset = 0x4, fixed_abs, tag = 'smem constant byte address 0x4 - core index']
  #allocation1 [shape = 'u32[144,128]{1,0:T(1,128)}', space=vmem, size = 0x12000, scoped, tag = 'internal scratch']
  %s0 = inlined_call_operand.vmem [shape: f32[2,8,32], index: 0, kind: input, shape index: {}]
  %s1 = inlined_call_operand.vmem [shape: f32[1,32], index: 1, kind: input, shape index: {}]
  %s2 = inlined_call_operand.vmem [shape: f32[1,32], index: 2, kind: input, shape index: {}]
  %s3 = inlined_call_operand.vmem [shape: bf16[32,96], index: 3, kind: input, shape index: {}]
  %s4 = inlined_call_operand.vmem [shape: f32[1,96], index: 4, kind: input, shape index: {}]
  %s5 = inlined_call_operand.vmem [shape: bf16[32,32], index: 5, kind: input, shape index: {}]
  %s6 = inlined_call_operand.vmem [shape: f32[1,32], index: 6, kind: input, shape index: {}]
  %s7 = inlined_call_operand.vmem [shape: f32[2,8,32], index: 7, kind: output, shape index: {}]
  %s8 = sld [smem:[#allocation0]]
  $region61: #{text_encoder_forward.7} parent=0
    _
  %s10 = ssub.s32 1, %s8
  %s11 = scalar_select 0, %s10, %s8
  loop: start=0, step=1, limit=4
  $region2: #{text_encoder_forward.7} parent=0 // loop_pre_header
    _
  $region3: #{text_encoder_forward.7} parent=0 // loop_header
    %s13 = sphi 0, %s17
    %p14 = scmp.ge.s32.totalorder %s13, 4
    %s23 = sphi 0, %s25
    %s26 = sphi 0, %s23
    %s27 = sphi 0, %s26
    %s43 = sphi 0, %s27
    %s47 = sphi 0, %s47
    %s49 = sphi 0, %s47
    %s50 = sphi 0, %s49
    %s64 = sphi 0, %s50
    %s68 = sphi 0, %s68
    %s70 = sphi 0, %s68
    %s71 = sphi 0, %s70
    %s85 = sphi 0, %s71
    %s89 = sphi 0, %s89
    %s91 = sphi 0, %s89
    %s92 = sphi 0, %s91
    %s106 = sphi 0, %s92
    %s110 = sphi 0, %s110
    %s112 = sphi 0, %s110
    %s113 = sphi 0, %s112
    %s127 = sphi 0, %s113
    %s131 = sphi 0, %s131
    %s133 = sphi 0, %s131
    %s134 = sphi 0, %s133
    %s148 = sphi 0, %s134
    %s152 = sphi 0, %s152
    %s154 = sphi 0, %s152
    %s155 = sphi 0, %s154
    %s169 = sphi 0, %s155
    %s175 = sphi 0, %s177
    %s178 = sphi 0, %s175
    %s179 = sphi 0, %s178
    %s195 = sphi 0, %s179
  $region4: #{text_encoder_forward.7} parent=0 // loop_header_branch
    %16 = sbr.rel (%p14) target = $region8
  $region5: #{text_encoder_forward.7} parent=0 // loop_body
    %s18 = ssub.s32 %s13, 1
    %s19 = ssub.s32 %s13, 2
    %s20 = sadd.s32 %s13, 1
    %s21 = ssub.s32 %s13, %s20
    %p22 = scmp.eq.s32.totalorder %s21, 0
    %s24 = sadd.s32 %s23, 1
    %s25 = scalar_select %p22, %s23, %s24
    %p28 = pneg %p22
    %p29 = scmp.eq.s32.totalorder %s13, 1
    %p30 = por %p28, %p29
    %p31 = scmp.ne.s32.totalorder %s23, %s26
    %p32 = scmp.eq.s32.totalorder %s13, 0
    %p33 = por %p31, %p32
    %p34 = scmp.ne.s32.totalorder %s23, %s26
    %p35 = scmp.eq.s32.totalorder %s18, 1
    %p36 = por %p34, %p35
    %p37 = scmp.ne.s32.totalorder %s26, %s27
    %p38 = scmp.eq.s32.totalorder %s18, 0
    %p39 = por %p37, %p38
    %p40 = scmp.ne.s32.totalorder %s26, %s27
    %p41 = scmp.eq.s32.totalorder %s19, 1
    %p42 = por %p40, %p41
    %p44 = scmp.ne.s32.totalorder %s27, %s43
    %p45 = scmp.eq.s32.totalorder %s19, 0
    %p46 = por %p44, %p45
    %s48 = sadd.s32 %s47, 1
    %p51 = scmp.eq.s32.totalorder %s13, 1
    %p52 = scmp.ne.s32.totalorder %s47, %s49
    %p53 = scmp.eq.s32.totalorder %s13, 0
    %p54 = por %p52, %p53
    %p55 = scmp.ne.s32.totalorder %s47, %s49
    %p56 = scmp.eq.s32.totalorder %s18, 1
    %p57 = por %p55, %p56
    %p58 = scmp.ne.s32.totalorder %s49, %s50
    %p59 = scmp.eq.s32.totalorder %s18, 0
    %p60 = por %p58, %p59
    %p61 = scmp.ne.s32.totalorder %s49, %s50
    %p62 = scmp.eq.s32.totalorder %s19, 1
    %p63 = por %p61, %p62
    %p65 = scmp.ne.s32.totalorder %s50, %s64
    %p66 = scmp.eq.s32.totalorder %s19, 0
    %p67 = por %p65, %p66
    %s69 = sadd.s32 %s68, 1
    %p72 = scmp.eq.s32.totalorder %s13, 1
    %p73 = scmp.ne.s32.totalorder %s68, %s70
    %p74 = scmp.eq.s32.totalorder %s13, 0
    %p75 = por %p73, %p74
    %p76 = scmp.ne.s32.totalorder %s68, %s70
    %p77 = scmp.eq.s32.totalorder %s18, 1
    %p78 = por %p76, %p77
    %p79 = scmp.ne.s32.totalorder %s70, %s71
    %p80 = scmp.eq.s32.totalorder %s18, 0
    %p81 = por %p79, %p80
    %p82 = scmp.ne.s32.totalorder %s70, %s71
    %p83 = scmp.eq.s32.totalorder %s19, 1
    %p84 = por %p82, %p83
    %p86 = scmp.ne.s32.totalorder %s71, %s85
    %p87 = scmp.eq.s32.totalorder %s19, 0
    %p88 = por %p86, %p87
    %s90 = sadd.s32 %s89, 1
    %p93 = scmp.eq.s32.totalorder %s13, 1
    %p94 = scmp.ne.s32.totalorder %s89, %s91
    %p95 = scmp.eq.s32.totalorder %s13, 0
    %p96 = por %p94, %p95
    %p97 = scmp.ne.s32.totalorder %s89, %s91
    %p98 = scmp.eq.s32.totalorder %s18, 1
    %p99 = por %p97, %p98
    %p100 = scmp.ne.s32.totalorder %s91, %s92
    %p101 = scmp.eq.s32.totalorder %s18, 0
    %p102 = por %p100, %p101
    %p103 = scmp.ne.s32.totalorder %s91, %s92
    %p104 = scmp.eq.s32.totalorder %s19, 1
    %p105 = por %p103, %p104
    %p107 = scmp.ne.s32.totalorder %s92, %s106
    %p108 = scmp.eq.s32.totalorder %s19, 0
    %p109 = por %p107, %p108
    %s111 = sadd.s32 %s110, 1
    %p114 = scmp.eq.s32.totalorder %s13, 1
    %p115 = scmp.ne.s32.totalorder %s110, %s112
    %p116 = scmp.eq.s32.totalorder %s13, 0
    %p117 = por %p115, %p116
    %p118 = scmp.ne.s32.totalorder %s110, %s112
    %p119 = scmp.eq.s32.totalorder %s18, 1
    %p120 = por %p118, %p119
    %p121 = scmp.ne.s32.totalorder %s112, %s113
    %p122 = scmp.eq.s32.totalorder %s18, 0
    %p123 = por %p121, %p122
    %p124 = scmp.ne.s32.totalorder %s112, %s113
    %p125 = scmp.eq.s32.totalorder %s19, 1
    %p126 = por %p124, %p125
    %p128 = scmp.ne.s32.totalorder %s113, %s127
    %p129 = scmp.eq.s32.totalorder %s19, 0
    %p130 = por %p128, %p129
    %s132 = sadd.s32 %s131, 1
    %p135 = scmp.eq.s32.totalorder %s13, 1
    %p136 = scmp.ne.s32.totalorder %s131, %s133
    %p137 = scmp.eq.s32.totalorder %s13, 0
    %p138 = por %p136, %p137
    %p139 = scmp.ne.s32.totalorder %s131, %s133
    %p140 = scmp.eq.s32.totalorder %s18, 1
    %p141 = por %p139, %p140
    %p142 = scmp.ne.s32.totalorder %s133, %s134
    %p143 = scmp.eq.s32.totalorder %s18, 0
    %p144 = por %p142, %p143
    %p145 = scmp.ne.s32.totalorder %s133, %s134
    %p146 = scmp.eq.s32.totalorder %s19, 1
    %p147 = por %p145, %p146
    %p149 = scmp.ne.s32.totalorder %s134, %s148
    %p150 = scmp.eq.s32.totalorder %s19, 0
    %p151 = por %p149, %p150
    %s153 = sadd.s32 %s152, 1
    %p156 = scmp.eq.s32.totalorder %s13, 1
    %p157 = scmp.ne.s32.totalorder %s152, %s154
    %p158 = scmp.eq.s32.totalorder %s13, 0
    %p159 = por %p157, %p158
    %p160 = scmp.ne.s32.totalorder %s152, %s154
    %p161 = scmp.eq.s32.totalorder %s18, 1
    %p162 = por %p160, %p161
    %p163 = scmp.ne.s32.totalorder %s154, %s155
    %p164 = scmp.eq.s32.totalorder %s18, 0
    %p165 = por %p163, %p164
    %p166 = scmp.ne.s32.totalorder %s154, %s155
    %p167 = scmp.eq.s32.totalorder %s19, 1
    %p168 = por %p166, %p167
    %p170 = scmp.ne.s32.totalorder %s155, %s169
    %p171 = scmp.eq.s32.totalorder %s19, 0
    %p172 = por %p170, %p171
    %s173 = ssub.s32 %s13, %s20
    %p174 = scmp.eq.s32.totalorder %s173, 0
    %s176 = sadd.s32 %s175, 1
    %s177 = scalar_select %p174, %s175, %s176
    %p180 = pneg %p174
    %p181 = scmp.eq.s32.totalorder %s13, 1
    %p182 = por %p180, %p181
    %p183 = scmp.ne.s32.totalorder %s175, %s178
    %p184 = scmp.eq.s32.totalorder %s13, 0
    %p185 = por %p183, %p184
    %p186 = scmp.ne.s32.totalorder %s175, %s178
    %p187 = scmp.eq.s32.totalorder %s18, 1
    %p188 = por %p186, %p187
    %p189 = scmp.ne.s32.totalorder %s178, %s179
    %p190 = scmp.eq.s32.totalorder %s18, 0
    %p191 = por %p189, %p190
    %p192 = scmp.ne.s32.totalorder %s178, %s179
    %p193 = scmp.eq.s32.totalorder %s19, 1
    %p194 = por %p192, %p193
    %p196 = scmp.ne.s32.totalorder %s179, %s195
    %p197 = scmp.eq.s32.totalorder %s19, 0
    %p198 = por %p196, %p197
    %p199 = scmp.le.s32.totalorder 1, %s13
    %p200 = scmp.lt.s32.totalorder %s13, 3
    %p201 = pnand %p199, %p200
    %p202 = pneg %p201
    // Predicated region
    $region9: #{text_encoder_forward.7} parent=5 // pred_check
      _
    $region10: #{text_encoder_forward.7} parent=5 // pred_check_branch
      %204 = sbr.rel (%p201) target = $region12
    $region11: #{text_encoder_forward.7} parent=5 // pred_region
      %s205 = ssub.s32 %s13, 1
      // Predicated region
      $region13: #{text_encoder_forward.7} parent=11 // pred_check
        %p206 = pneg %p60
      $region14: #{text_encoder_forward.7} parent=11 // pred_check_branch
        %208 = sbr.rel (%p206) target = $region16
      $region15: #{text_encoder_forward.7} parent=11 // pred_region
        _
      $region16: #{text_encoder_forward.7} parent=11 // pred_fallthru
        _
      // Predicated region
      $region17: #{text_encoder_forward.7} parent=11 // pred_check
        %p209 = pneg %p81
      $region18: #{text_encoder_forward.7} parent=11 // pred_check_branch
        %211 = sbr.rel (%p209) target = $region20
      $region19: #{text_encoder_forward.7} parent=11 // pred_region
        _
      $region20: #{text_encoder_forward.7} parent=11 // pred_fallthru
        _
      // Predicated region
      $region21: #{text_encoder_forward.7} parent=11 // pred_check
        %p212 = pneg %p102
      $region22: #{text_encoder_forward.7} parent=11 // pred_check_branch
        %214 = sbr.rel (%p212) target = $region24
      $region23: #{text_encoder_forward.7} parent=11 // pred_region
        _
      $region24: #{text_encoder_forward.7} parent=11 // pred_fallthru
        _
      // Predicated region
      $region25: #{text_encoder_forward.7} parent=11 // pred_check
        %p215 = pneg %p123
      $region26: #{text_encoder_forward.7} parent=11 // pred_check_branch
        %217 = sbr.rel (%p215) target = $region28
      $region27: #{text_encoder_forward.7} parent=11 // pred_region
        _
      $region28: #{text_encoder_forward.7} parent=11 // pred_fallthru
        _
      // Predicated region
      $region29: #{text_encoder_forward.7} parent=11 // pred_check
        %p218 = pneg %p144
      $region30: #{text_encoder_forward.7} parent=11 // pred_check_branch
        %220 = sbr.rel (%p218) target = $region32
      $region31: #{text_encoder_forward.7} parent=11 // pred_region
        _
      $region32: #{text_encoder_forward.7} parent=11 // pred_fallthru
        _
      // Predicated region
      $region33: #{text_encoder_forward.7} parent=11 // pred_check
        %p221 = pneg %p165
      $region34: #{text_encoder_forward.7} parent=11 // pred_check_branch
        %223 = sbr.rel (%p221) target = $region36
      $region35: #{text_encoder_forward.7} parent=11 // pred_region
        _
      $region36: #{text_encoder_forward.7} parent=11 // pred_fallthru
        _
    $region12: #{text_encoder_forward.7} parent=5 // pred_fallthru
      _
    %p224 = scmp.lt.s32.totalorder %s13, 2
    // Predicated region
    $region37: #{text_encoder_forward.7} parent=5 // pred_check
      %p225 = pneg %p224
    $region38: #{text_encoder_forward.7} parent=5 // pred_check_branch
      %227 = sbr.rel (%p225) target = $region40
    $region39: #{text_encoder_forward.7} parent=5 // pred_region
      // Predicated region
      $region41: #{text_encoder_forward.7} parent=39 // pred_check
        %p228 = pneg %p33
      $region42: #{text_encoder_forward.7} parent=39 // pred_check_branch
        %230 = sbr.rel (%p228) target = $region44
      $region43: #{text_encoder_forward.7} parent=39 // pred_region
        %p231 = scmp.lt.s32.totalorder %s13, 1
        %s232 = scalar_select %p231, %s13, 1
        %s233 = smul.addr %s232, 8
        %s234 = scalar_lea.vmem %s0, %s233
      $region44: #{text_encoder_forward.7} parent=39 // pred_fallthru
        _
    $region40: #{text_encoder_forward.7} parent=5 // pred_fallthru
      _
    %p235 = scmp.le.s32.totalorder 1, %s13
    %p236 = scmp.lt.s32.totalorder %s13, 3
    %p237 = pnand %p235, %p236
    %p238 = pneg %p237
    // Predicated region
    $region45: #{text_encoder_forward.7} parent=5 // pred_check
      _
    $region46: #{text_encoder_forward.7} parent=5 // pred_check_branch
      %240 = sbr.rel (%p237) target = $region48
    $region47: #{text_encoder_forward.7} parent=5 // pred_region
      %s241 = ssub.s32 %s13, 1
      %p242 = scmp.lt.s32.totalorder %s18, 1
      %s243 = scalar_select %p242, %s18, 1
      %s244 = smul.addr %s243, 8
      %s245 = scalar_lea.vmem %s0, %s244
      %p246 = pneg %p39
      %p247 = pneg %p36
      %p248 = pneg %p60
      %p249 = pneg %p57
      %p250 = pneg %p81
      %p251 = pneg %p78
      %p252 = pneg %p102
      %p253 = pneg %p99
      %p254 = pneg %p123
      %p255 = pneg %p120
      %p256 = pneg %p144
      %p257 = pneg %p141
      %p258 = pneg %p165
      %p259 = pneg %p162
      %p260 = pneg %p191
      %p261 = pneg %p188
      %p262 = scmp.lt.s32.totalorder %s18, 1
      %s263 = scalar_select %p262, %s18, 1
      %s264 = smul.addr %s263, 8
      %s265 = scalar_lea.vmem %s7, %s264
      %p266 = scmp.lt.s32.totalorder %s18, 1
      %s267 = scalar_select %p266, %s18, 1
      %s268 = smul.addr %s267, 8
      %s269 = scalar_lea.vmem %s0, %s268
      %p270 = scmp.lt.s32.totalorder %s18, 1
      %s271 = scalar_select %p270, %s18, 1
      %s272 = smul.addr %s271, 8
      %s273 = scalar_lea.vmem %s7, %s272
      %v275 = vld [vmem:[%s269] sm:$0xff]
      %v276 = vld [vmem:[%s1] sm:$0x1]
      %v277 = vld [vmem:[%s2] sm:$0x1]
      %vm278 = vcmask 261120
      %v279 = vsel %vm278, %v275, 0.0
      %280 = vadd.xlane.f32.xlu0 %v279
      %v281 = vpop.xlane.xlu0 %280
      %v282 = vrcp.pop 32.0
      %v283 = vmul.f32 %v281, %v282
      %v284 = vsub.f32 %v275, %v283
      %v285 = vmul.f32 %v284, %v284
      %v286 = vsel %vm278, %v285, 0.0
      %287 = vadd.xlane.f32.xlu0 %v286
      %v288 = vpop.xlane.xlu0 %287
      %v289 = vmul.f32 %v288, %v282
      %v290 = vadd.f32 %v289, 1e-05
      %v291 = vrsqrt.pop %v290
      %v292 = vmul.f32 %v284, %v291
      %v294 = vlaneseq
      %v295 = vshrl.u32 %v294, 7
      %v296 = vsub.s32 0, %v295
      %v297 = vrot.slane %v276, %v296
      %v299 = vmul.f32 %v292, %v297
      %v301 = vlaneseq
      %v302 = vshrl.u32 %v301, 7
      %v303 = vsub.s32 0, %v302
      %v304 = vrot.slane %v277, %v303
      %v306 = vadd.f32 %v299, %v304
      %v307 = vpack.c.bf16 %v306, %v306
      %v308 = vld [vmem:[%s3] sm:$0xf]
      %v309 = vld [vmem:[%s3 + $0x4] sm:$0xf]
      %v310 = vld [vmem:[%s3 + $0x8] sm:$0xf]
      %v311 = vld [vmem:[%s3 + $0xc] sm:$0xf]
      %v312 = vld [vmem:[%s4] sm:$0x1]
      %v314 = vlaneseq
      %v315 = vshrl.u32 %v314, 7
      %v316 = vsub.s32 0, %v315
      %v317 = vrot.slane %v312, %v316
      %v323 = vunpack.c.l.b16 %v308
      %v324 = vunpack.c.l.b16 %v309
      %v325 = vunpack.c.l.b16 %v310
      %v326 = vunpack.c.l.b16 %v311
      %v327 = vpack.c.b16 %v324, %v323
      %v328 = vpack.c.b16 %v326, %v325
      %v332 = vsel %vm278, %v307, 0
      %334 = vmatprep.subr.bf16.mxu0 0
      %335 = vmatpush1.bf16.msra.mxu0 0
      %336 = vmatprep.subr.bf16.mxu0 0
      %337 = vmatpush1.bf16.msra.mxu0 0
      %338 = vmatprep.subr.bf16.mxu0 0
      %339 = vmatpush1.bf16.msra.mxu0 0
      %340 = vmatprep.subr.bf16.mxu0 0
      %341 = vmatpush1.bf16.msra.mxu0 0
      %342 = vmatprep.subr.bf16.mxu0 0
      %343 = vmatpush1.bf16.msra.mxu0 0
      %344 = vmatprep.subr.bf16.mxu0 0
      %345 = vmatpush1.bf16.msra.mxu0 0
      %346 = vmatprep.subr.bf16.mxu0 0
      %347 = vmatpush1.bf16.msra.mxu0 %v328
      %348 = vmatprep.subr.bf16.mxu0 0
      %349 = vmatpush1.bf16.msra.mxu0 %v327
      %350 = vmatprep.subr.bf16.mxu0 0
      %351 = vmatpush2.bf16.msra.mxu0 0
      %352 = vmatprep.subr.bf16.mxu0 0
      %353 = vmatpush2.bf16.msra.mxu0 0
      %354 = vmatprep.subr.bf16.mxu0 0
      %355 = vmatpush2.bf16.msra.mxu0 0
      %356 = vmatprep.subr.bf16.mxu0 0
      %357 = vmatpush2.bf16.msra.mxu0 0
      %358 = vmatprep.subr.bf16.mxu0 0
      %359 = vmatpush2.bf16.msra.mxu0 0
      %360 = vmatprep.subr.bf16.mxu0 0
      %361 = vmatpush2.bf16.msra.mxu0 0
      %362 = vmatprep.subr.bf16.mxu0 0
      %363 = vmatpush2.bf16.msra.mxu0 0
      %364 = vmatprep.subr.bf16.mxu0 0
      %365 = vmatpush2.bf16.msra.mxu0 0
      %366 = vmatprep.mubr.bf16.mxu0 0
      %367 = vmatmul.mubr.bf16.gmra.mxu0 %v332
      %v368 = vpop.f32.mrf.mxu0
      %v369 = vadd.f32 %v317, %v368
      %v370 = vpop.f32.mrf.mxu0
      %v371 = vpop.f32.mrf.mxu0
      %v372 = vpop.f32.mrf.mxu0
      %373 = vdwg.mxu0
      %v374 = vlaneseq
      %v375 = vshrl.u32 %v374, 7
      %v376 = vlaneseq
      %v377 = vand.u32 %v376, 127
      %vm378 = vcmp.le.s32.totalorder %v377, %v375
      %v379 = vpack.c.bf16 %v369, %v369
      %381 = vrot.lane.b32.xlu0 %v379, 96
      %v382 = vpop.permute.xlu0 %381
      %vm383 = vcmask 64512
      %v385 = vsel %vm383, %v379, 0
      %v388 = vsel %vm383, %v382, 0
      %390 = vmatprep.subr.bf16.mxu0 0
      %391 = vmatpush1.bf16.xpose.msra.mxu0 0
      %392 = vmatprep.subr.bf16.mxu0 0
      %393 = vmatpush1.bf16.xpose.msra.mxu0 0
      %394 = vmatprep.subr.bf16.mxu0 0
      %395 = vmatpush1.bf16.xpose.msra.mxu0 0
      %396 = vmatprep.subr.bf16.mxu0 0
      %397 = vmatpush1.bf16.xpose.msra.mxu0 0
      %398 = vmatprep.subr.bf16.mxu0 0
      %399 = vmatpush1.bf16.xpose.msra.mxu0 0
      %400 = vmatprep.subr.bf16.mxu0 0
      %401 = vmatpush1.bf16.xpose.msra.mxu0 0
      %402 = vmatprep.subr.bf16.mxu0 0
      %403 = vmatpush1.bf16.xpose.msra.mxu0 0
      %404 = vmatprep.subr.bf16.mxu0 0
      %405 = vmatpush1.bf16.xpose.msra.mxu0 %v388
      %406 = vmatprep.subr.bf16.mxu0 0
      %407 = vmatpush2.bf16.xpose.msra.mxu0 0
      %408 = vmatprep.subr.bf16.mxu0 0
      %409 = vmatpush2.bf16.xpose.msra.mxu0 0
      %410 = vmatprep.subr.bf16.mxu0 0
      %411 = vmatpush2.bf16.xpose.msra.mxu0 0
      %412 = vmatprep.subr.bf16.mxu0 0
      %413 = vmatpush2.bf16.xpose.msra.mxu0 0
      %414 = vmatprep.subr.bf16.mxu0 0
      %415 = vmatpush2.bf16.xpose.msra.mxu0 0
      %416 = vmatprep.subr.bf16.mxu0 0
      %417 = vmatpush2.bf16.xpose.msra.mxu0 0
      %418 = vmatprep.subr.bf16.mxu0 0
      %419 = vmatpush2.bf16.xpose.msra.mxu0 0
      %420 = vmatprep.subr.bf16.mxu0 0
      %421 = vmatpush2.bf16.xpose.msra.mxu0 0
      %422 = vmatprep.mubr.bf16.mxu0 0
      %423 = vmatmul.mubr.bf16.gmra.mxu0 %v385
      %v424 = vpop.f32.mrf.mxu0
      %v425 = vadd.f32 0.0, %v424
      %v426 = vpop.f32.mrf.mxu0
      %v427 = vpop.f32.mrf.mxu0
      %v428 = vpop.f32.mrf.mxu0
      %429 = vdwg.mxu0
      %v430 = vmul.f32 %v425, 0.35355338
      %v431 = vsel %vm378, %v430, -inf
      %v432 = vsel %vm383, %v431, -inf
      %433 = vmax.xlane.f32.xlu0 %v432
      %v434 = vpop.xlane.xlu0 %433
      %v435 = vsub.f32 %v431, %v434
      %v436 = vmul.f32 %v435, 1.442695
      %v437 = vpow.pop %v436
      %v438 = vsel %vm383, %v437, 0.0
      %439 = vadd.xlane.f32.xlu0 %v438
      %v440 = vpop.xlane.xlu0 %439
      %v441 = vrcp.pop %v440
      %v442 = vmul.f32 %v437, %v441
      %v443 = vpack.c.bf16 %v442, %v442
      %444 = vrot.lane.b32.xlu0 %v379, 64
      %v445 = vpop.permute.xlu0 %444
      %v447 = vsel %vm383, %v443, 0
      %vm449 = vcmask 1043456
      %v451 = vsel %vm449, %v445, 0
      %453 = vmatprep.subr.bf16.mxu0 0
      %454 = vmatpush1.bf16.msra.mxu0 0
      %455 = vmatprep.subr.bf16.mxu0 0
      %456 = vmatpush1.bf16.msra.mxu0 0
      %457 = vmatprep.subr.bf16.mxu0 0
      %458 = vmatpush1.bf16.msra.mxu0 0
      %459 = vmatprep.subr.bf16.mxu0 0
      %460 = vmatpush1.bf16.msra.mxu0 0
      %461 = vmatprep.subr.bf16.mxu0 0
      %462 = vmatpush1.bf16.msra.mxu0 0
      %463 = vmatprep.subr.bf16.mxu0 0
      %464 = vmatpush1.bf16.msra.mxu0 0
      %465 = vmatprep.subr.bf16.mxu0 0
      %466 = vmatpush1.bf16.msra.mxu0 0
      %467 = vmatprep.subr.bf16.mxu0 0
      %468 = vmatpush1.bf16.msra.mxu0 %v451
      %469 = vmatprep.subr.bf16.mxu0 0
      %470 = vmatpush2.bf16.msra.mxu0 0
      %471 = vmatprep.subr.bf16.mxu0 0
      %472 = vmatpush2.bf16.msra.mxu0 0
      %473 = vmatprep.subr.bf16.mxu0 0
      %474 = vmatpush2.bf16.msra.mxu0 0
      %475 = vmatprep.subr.bf16.mxu0 0
      %476 = vmatpush2.bf16.msra.mxu0 0
      %477 = vmatprep.subr.bf16.mxu0 0
      %478 = vmatpush2.bf16.msra.mxu0 0
      %479 = vmatprep.subr.bf16.mxu0 0
      %480 = vmatpush2.bf16.msra.mxu0 0
      %481 = vmatprep.subr.bf16.mxu0 0
      %482 = vmatpush2.bf16.msra.mxu0 0
      %483 = vmatprep.subr.bf16.mxu0 0
      %484 = vmatpush2.bf16.msra.mxu0 0
      %485 = vmatprep.mubr.bf16.mxu0 0
      %486 = vmatmul.mubr.bf16.gmra.mxu0 %v447
      %v487 = vpop.f32.mrf.mxu0
      %v488 = vadd.f32 0.0, %v487
      %v489 = vpop.f32.mrf.mxu0
      %v490 = vpop.f32.mrf.mxu0
      %v491 = vpop.f32.mrf.mxu0
      %492 = vdwg.mxu0
      %493 = vrot.lane.b32.xlu0 %v379, 120
      %v494 = vpop.permute.xlu0 %493
      %495 = vrot.lane.b32.xlu0 %v379, 88
      %v496 = vpop.permute.xlu0 %495
      %v498 = vsel %vm383, %v494, 0
      %v501 = vsel %vm383, %v496, 0
      %503 = vmatprep.subr.bf16.mxu0 0
      %504 = vmatpush1.bf16.xpose.msra.mxu0 0
      %505 = vmatprep.subr.bf16.mxu0 0
      %506 = vmatpush1.bf16.xpose.msra.mxu0 0
      %507 = vmatprep.subr.bf16.mxu0 0
      %508 = vmatpush1.bf16.xpose.msra.mxu0 0
      %509 = vmatprep.subr.bf16.mxu0 0
      %510 = vmatpush1.bf16.xpose.msra.mxu0 0
      %511 = vmatprep.subr.bf16.mxu0 0
      %512 = vmatpush1.bf16.xpose.msra.mxu0 0
      %513 = vmatprep.subr.bf16.mxu0 0
      %514 = vmatpush1.bf16.xpose.msra.mxu0 0
      %515 = vmatprep.subr.bf16.mxu0 0
      %516 = vmatpush1.bf16.xpose.msra.mxu0 0
      %517 = vmatprep.subr.bf16.mxu0 0
      %518 = vmatpush1.bf16.xpose.msra.mxu0 %v501
      %519 = vmatprep.subr.bf16.mxu0 0
      %520 = vmatpush2.bf16.xpose.msra.mxu0 0
      %521 = vmatprep.subr.bf16.mxu0 0
      %522 = vmatpush2.bf16.xpose.msra.mxu0 0
      %523 = vmatprep.subr.bf16.mxu0 0
      %524 = vmatpush2.bf16.xpose.msra.mxu0 0
      %525 = vmatprep.subr.bf16.mxu0 0
      %526 = vmatpush2.bf16.xpose.msra.mxu0 0
      %527 = vmatprep.subr.bf16.mxu0 0
      %528 = vmatpush2.bf16.xpose.msra.mxu0 0
      %529 = vmatprep.subr.bf16.mxu0 0
      %530 = vmatpush2.bf16.xpose.msra.mxu0 0
      %531 = vmatprep.subr.bf16.mxu0 0
      %532 = vmatpush2.bf16.xpose.msra.mxu0 0
      %533 = vmatprep.subr.bf16.mxu0 0
      %534 = vmatpush2.bf16.xpose.msra.mxu0 0
      %535 = vmatprep.mubr.bf16.mxu0 0
      %536 = vmatmul.mubr.bf16.gmra.mxu0 %v498
      %v537 = vpop.f32.mrf.mxu0
      %v538 = vadd.f32 0.0, %v537
      %v539 = vpop.f32.mrf.mxu0
      %v540 = vpop.f32.mrf.mxu0
      %v541 = vpop.f32.mrf.mxu0
      %542 = vdwg.mxu0
      %v543 = vmul.f32 %v538, 0.35355338
      %v544 = vsel %vm378, %v543, -inf
      %v545 = vsel %vm383, %v544, -inf
      %546 = vmax.xlane.f32.xlu0 %v545
      %v547 = vpop.xlane.xlu0 %546
      %v548 = vsub.f32 %v544, %v547
      %v549 = vmul.f32 %v548, 1.442695
      %v550 = vpow.pop %v549
      %v551 = vsel %vm383, %v550, 0.0
      %552 = vadd.xlane.f32.xlu0 %v551
      %v553 = vpop.xlane.xlu0 %552
      %v554 = vrcp.pop %v553
      %v555 = vmul.f32 %v550, %v554
      %v556 = vpack.c.bf16 %v555, %v555
      %557 = vrot.lane.b32.xlu0 %v379, 56
      %v558 = vpop.permute.xlu0 %557
      %v560 = vsel %vm383, %v556, 0
      %v563 = vsel %vm449, %v558, 0
      %565 = vmatprep.subr.bf16.mxu0 0
      %566 = vmatpush1.bf16.msra.mxu0 0
      %567 = vmatprep.subr.bf16.mxu0 0
      %568 = vmatpush1.bf16.msra.mxu0 0
      %569 = vmatprep.subr.bf16.mxu0 0
      %570 = vmatpush1.bf16.msra.mxu0 0
      %571 = vmatprep.subr.bf16.mxu0 0
      %572 = vmatpush1.bf16.msra.mxu0 0
      %573 = vmatprep.subr.bf16.mxu0 0
      %574 = vmatpush1.bf16.msra.mxu0 0
      %575 = vmatprep.subr.bf16.mxu0 0
      %576 = vmatpush1.bf16.msra.mxu0 0
      %577 = vmatprep.subr.bf16.mxu0 0
      %578 = vmatpush1.bf16.msra.mxu0 0
      %579 = vmatprep.subr.bf16.mxu0 0
      %580 = vmatpush1.bf16.msra.mxu0 %v563
      %581 = vmatprep.subr.bf16.mxu0 0
      %582 = vmatpush2.bf16.msra.mxu0 0
      %583 = vmatprep.subr.bf16.mxu0 0
      %584 = vmatpush2.bf16.msra.mxu0 0
      %585 = vmatprep.subr.bf16.mxu0 0
      %586 = vmatpush2.bf16.msra.mxu0 0
      %587 = vmatprep.subr.bf16.mxu0 0
      %588 = vmatpush2.bf16.msra.mxu0 0
      %589 = vmatprep.subr.bf16.mxu0 0
      %590 = vmatpush2.bf16.msra.mxu0 0
      %591 = vmatprep.subr.bf16.mxu0 0
      %592 = vmatpush2.bf16.msra.mxu0 0
      %593 = vmatprep.subr.bf16.mxu0 0
      %594 = vmatpush2.bf16.msra.mxu0 0
      %595 = vmatprep.subr.bf16.mxu0 0
      %596 = vmatpush2.bf16.msra.mxu0 0
      %597 = vmatprep.mubr.bf16.mxu0 0
      %598 = vmatmul.mubr.bf16.gmra.mxu0 %v560
      %v599 = vpop.f32.mrf.mxu0
      %v600 = vadd.f32 0.0, %v599
      %v601 = vpop.f32.mrf.mxu0
      %v602 = vpop.f32.mrf.mxu0
      %v603 = vpop.f32.mrf.mxu0
      %604 = vdwg.mxu0
      %605 = vrot.lane.b32.xlu0 %v379, 112
      %v606 = vpop.permute.xlu0 %605
      %607 = vrot.lane.b32.xlu0 %v379, 80
      %v608 = vpop.permute.xlu0 %607
      %v610 = vsel %vm383, %v606, 0
      %v613 = vsel %vm383, %v608, 0
      %615 = vmatprep.subr.bf16.mxu0 0
      %616 = vmatpush1.bf16.xpose.msra.mxu0 0
      %617 = vmatprep.subr.bf16.mxu0 0
      %618 = vmatpush1.bf16.xpose.msra.mxu0 0
      %619 = vmatprep.subr.bf16.mxu0 0
      %620 = vmatpush1.bf16.xpose.msra.mxu0 0
      %621 = vmatprep.subr.bf16.mxu0 0
      %622 = vmatpush1.bf16.xpose.msra.mxu0 0
      %623 = vmatprep.subr.bf16.mxu0 0
      %624 = vmatpush1.bf16.xpose.msra.mxu0 0
      %625 = vmatprep.subr.bf16.mxu0 0
      %626 = vmatpush1.bf16.xpose.msra.mxu0 0
      %627 = vmatprep.subr.bf16.mxu0 0
      %628 = vmatpush1.bf16.xpose.msra.mxu0 0
      %629 = vmatprep.subr.bf16.mxu0 0
      %630 = vmatpush1.bf16.xpose.msra.mxu0 %v613
      %631 = vmatprep.subr.bf16.mxu0 0
      %632 = vmatpush2.bf16.xpose.msra.mxu0 0
      %633 = vmatprep.subr.bf16.mxu0 0
      %634 = vmatpush2.bf16.xpose.msra.mxu0 0
      %635 = vmatprep.subr.bf16.mxu0 0
      %636 = vmatpush2.bf16.xpose.msra.mxu0 0
      %637 = vmatprep.subr.bf16.mxu0 0
      %638 = vmatpush2.bf16.xpose.msra.mxu0 0
      %639 = vmatprep.subr.bf16.mxu0 0
      %640 = vmatpush2.bf16.xpose.msra.mxu0 0
      %641 = vmatprep.subr.bf16.mxu0 0
      %642 = vmatpush2.bf16.xpose.msra.mxu0 0
      %643 = vmatprep.subr.bf16.mxu0 0
      %644 = vmatpush2.bf16.xpose.msra.mxu0 0
      %645 = vmatprep.subr.bf16.mxu0 0
      %646 = vmatpush2.bf16.xpose.msra.mxu0 0
      %647 = vmatprep.mubr.bf16.mxu0 0
      %648 = vmatmul.mubr.bf16.gmra.mxu0 %v610
      %v649 = vpop.f32.mrf.mxu0
      %v650 = vadd.f32 0.0, %v649
      %v651 = vpop.f32.mrf.mxu0
      %v652 = vpop.f32.mrf.mxu0
      %v653 = vpop.f32.mrf.mxu0
      %654 = vdwg.mxu0
      %v655 = vmul.f32 %v650, 0.35355338
      %v656 = vsel %vm378, %v655, -inf
      %v657 = vsel %vm383, %v656, -inf
      %658 = vmax.xlane.f32.xlu0 %v657
      %v659 = vpop.xlane.xlu0 %658
      %v660 = vsub.f32 %v656, %v659
      %v661 = vmul.f32 %v660, 1.442695
      %v662 = vpow.pop %v661
      %v663 = vsel %vm383, %v662, 0.0
      %664 = vadd.xlane.f32.xlu0 %v663
      %v665 = vpop.xlane.xlu0 %664
      %v666 = vrcp.pop %v665
      %v667 = vmul.f32 %v662, %v666
      %v668 = vpack.c.bf16 %v667, %v667
      %669 = vrot.lane.b32.xlu0 %v379, 48
      %v670 = vpop.permute.xlu0 %669
      %v672 = vsel %vm383, %v668, 0
      %v675 = vsel %vm449, %v670, 0
      %677 = vmatprep.subr.bf16.mxu0 0
      %678 = vmatpush1.bf16.msra.mxu0 0
      %679 = vmatprep.subr.bf16.mxu0 0
      %680 = vmatpush1.bf16.msra.mxu0 0
      %681 = vmatprep.subr.bf16.mxu0 0
      %682 = vmatpush1.bf16.msra.mxu0 0
      %683 = vmatprep.subr.bf16.mxu0 0
      %684 = vmatpush1.bf16.msra.mxu0 0
      %685 = vmatprep.subr.bf16.mxu0 0
      %686 = vmatpush1.bf16.msra.mxu0 0
      %687 = vmatprep.subr.bf16.mxu0 0
      %688 = vmatpush1.bf16.msra.mxu0 0
      %689 = vmatprep.subr.bf16.mxu0 0
      %690 = vmatpush1.bf16.msra.mxu0 0
      %691 = vmatprep.subr.bf16.mxu0 0
      %692 = vmatpush1.bf16.msra.mxu0 %v675
      %693 = vmatprep.subr.bf16.mxu0 0
      %694 = vmatpush2.bf16.msra.mxu0 0
      %695 = vmatprep.subr.bf16.mxu0 0
      %696 = vmatpush2.bf16.msra.mxu0 0
      %697 = vmatprep.subr.bf16.mxu0 0
      %698 = vmatpush2.bf16.msra.mxu0 0
      %699 = vmatprep.subr.bf16.mxu0 0
      %700 = vmatpush2.bf16.msra.mxu0 0
      %701 = vmatprep.subr.bf16.mxu0 0
      %702 = vmatpush2.bf16.msra.mxu0 0
      %703 = vmatprep.subr.bf16.mxu0 0
      %704 = vmatpush2.bf16.msra.mxu0 0
      %705 = vmatprep.subr.bf16.mxu0 0
      %706 = vmatpush2.bf16.msra.mxu0 0
      %707 = vmatprep.subr.bf16.mxu0 0
      %708 = vmatpush2.bf16.msra.mxu0 0
      %709 = vmatprep.mubr.bf16.mxu0 0
      %710 = vmatmul.mubr.bf16.gmra.mxu0 %v672
      %v711 = vpop.f32.mrf.mxu0
      %v712 = vadd.f32 0.0, %v711
      %v713 = vpop.f32.mrf.mxu0
      %v714 = vpop.f32.mrf.mxu0
      %v715 = vpop.f32.mrf.mxu0
      %716 = vdwg.mxu0
      %717 = vrot.lane.b32.xlu0 %v379, 104
      %v718 = vpop.permute.xlu0 %717
      %719 = vrot.lane.b32.xlu0 %v379, 72
      %v720 = vpop.permute.xlu0 %719
      %v722 = vsel %vm383, %v718, 0
      %v725 = vsel %vm383, %v720, 0
      %727 = vmatprep.subr.bf16.mxu0 0
      %728 = vmatpush1.bf16.xpose.msra.mxu0 0
      %729 = vmatprep.subr.bf16.mxu0 0
      %730 = vmatpush1.bf16.xpose.msra.mxu0 0
      %731 = vmatprep.subr.bf16.mxu0 0
      %732 = vmatpush1.bf16.xpose.msra.mxu0 0
      %733 = vmatprep.subr.bf16.mxu0 0
      %734 = vmatpush1.bf16.xpose.msra.mxu0 0
      %735 = vmatprep.subr.bf16.mxu0 0
      %736 = vmatpush1.bf16.xpose.msra.mxu0 0
      %737 = vmatprep.subr.bf16.mxu0 0
      %738 = vmatpush1.bf16.xpose.msra.mxu0 0
      %739 = vmatprep.subr.bf16.mxu0 0
      %740 = vmatpush1.bf16.xpose.msra.mxu0 0
      %741 = vmatprep.subr.bf16.mxu0 0
      %742 = vmatpush1.bf16.xpose.msra.mxu0 %v725
      %743 = vmatprep.subr.bf16.mxu0 0
      %744 = vmatpush2.bf16.xpose.msra.mxu0 0
      %745 = vmatprep.subr.bf16.mxu0 0
      %746 = vmatpush2.bf16.xpose.msra.mxu0 0
      %747 = vmatprep.subr.bf16.mxu0 0
      %748 = vmatpush2.bf16.xpose.msra.mxu0 0
      %749 = vmatprep.subr.bf16.mxu0 0
      %750 = vmatpush2.bf16.xpose.msra.mxu0 0
      %751 = vmatprep.subr.bf16.mxu0 0
      %752 = vmatpush2.bf16.xpose.msra.mxu0 0
      %753 = vmatprep.subr.bf16.mxu0 0
      %754 = vmatpush2.bf16.xpose.msra.mxu0 0
      %755 = vmatprep.subr.bf16.mxu0 0
      %756 = vmatpush2.bf16.xpose.msra.mxu0 0
      %757 = vmatprep.subr.bf16.mxu0 0
      %758 = vmatpush2.bf16.xpose.msra.mxu0 0
      %759 = vmatprep.mubr.bf16.mxu0 0
      %760 = vmatmul.mubr.bf16.gmra.mxu0 %v722
      %v761 = vpop.f32.mrf.mxu0
      %v762 = vadd.f32 0.0, %v761
      %v763 = vpop.f32.mrf.mxu0
      %v764 = vpop.f32.mrf.mxu0
      %v765 = vpop.f32.mrf.mxu0
      %766 = vdwg.mxu0
      %v767 = vmul.f32 %v762, 0.35355338
      %v768 = vsel %vm378, %v767, -inf
      %v769 = vsel %vm383, %v768, -inf
      %770 = vmax.xlane.f32.xlu0 %v769
      %v771 = vpop.xlane.xlu0 %770
      %v772 = vsub.f32 %v768, %v771
      %v773 = vmul.f32 %v772, 1.442695
      %v774 = vpow.pop %v773
      %v775 = vsel %vm383, %v774, 0.0
      %776 = vadd.xlane.f32.xlu0 %v775
      %v777 = vpop.xlane.xlu0 %776
      %v778 = vrcp.pop %v777
      %v779 = vmul.f32 %v774, %v778
      %v780 = vpack.c.bf16 %v779, %v779
      %781 = vrot.lane.b32.xlu0 %v379, 40
      %v782 = vpop.permute.xlu0 %781
      %v784 = vsel %vm383, %v780, 0
      %v787 = vsel %vm449, %v782, 0
      %789 = vmatprep.subr.bf16.mxu0 0
      %790 = vmatpush1.bf16.msra.mxu0 0
      %791 = vmatprep.subr.bf16.mxu0 0
      %792 = vmatpush1.bf16.msra.mxu0 0
      %793 = vmatprep.subr.bf16.mxu0 0
      %794 = vmatpush1.bf16.msra.mxu0 0
      %795 = vmatprep.subr.bf16.mxu0 0
      %796 = vmatpush1.bf16.msra.mxu0 0
      %797 = vmatprep.subr.bf16.mxu0 0
      %798 = vmatpush1.bf16.msra.mxu0 0
      %799 = vmatprep.subr.bf16.mxu0 0
      %800 = vmatpush1.bf16.msra.mxu0 0
      %801 = vmatprep.subr.bf16.mxu0 0
      %802 = vmatpush1.bf16.msra.mxu0 0
      %803 = vmatprep.subr.bf16.mxu0 0
      %804 = vmatpush1.bf16.msra.mxu0 %v787
      %805 = vmatprep.subr.bf16.mxu0 0
      %806 = vmatpush2.bf16.msra.mxu0 0
      %807 = vmatprep.subr.bf16.mxu0 0
      %808 = vmatpush2.bf16.msra.mxu0 0
      %809 = vmatprep.subr.bf16.mxu0 0
      %810 = vmatpush2.bf16.msra.mxu0 0
      %811 = vmatprep.subr.bf16.mxu0 0
      %812 = vmatpush2.bf16.msra.mxu0 0
      %813 = vmatprep.subr.bf16.mxu0 0
      %814 = vmatpush2.bf16.msra.mxu0 0
      %815 = vmatprep.subr.bf16.mxu0 0
      %816 = vmatpush2.bf16.msra.mxu0 0
      %817 = vmatprep.subr.bf16.mxu0 0
      %818 = vmatpush2.bf16.msra.mxu0 0
      %819 = vmatprep.subr.bf16.mxu0 0
      %820 = vmatpush2.bf16.msra.mxu0 0
      %821 = vmatprep.mubr.bf16.mxu0 0
      %822 = vmatmul.mubr.bf16.gmra.mxu0 %v784
      %v823 = vpop.f32.mrf.mxu0
      %v824 = vadd.f32 0.0, %v823
      %v825 = vpop.f32.mrf.mxu0
      %v826 = vpop.f32.mrf.mxu0
      %v827 = vpop.f32.mrf.mxu0
      %828 = vdwg.mxu0
      %830 = vrot.lane.b32.xlu0 %v600, 8
      %v831 = vpop.permute.xlu0 %830
      %834 = vrot.lane.b32.xlu0 %v712, 16
      %v835 = vpop.permute.xlu0 %834
      %838 = vrot.lane.b32.xlu0 %v824, 24
      %v839 = vpop.permute.xlu0 %838
      %v841 = vsel %vm383, %v488, %v831
      %vm842 = vcmask 130048
      %v843 = vsel %vm842, %v841, %v835
      %vm844 = vcmask 195584
      %v845 = vsel %vm844, %v843, %v839
      %v846 = vpack.c.bf16 %v845, %v845
      %v847 = vld [vmem:[%s5] sm:$0xf]
      %v848 = vld [vmem:[%s5 + $0x4] sm:$0xf]
      %v849 = vld [vmem:[%s5 + $0x8] sm:$0xf]
      %v850 = vld [vmem:[%s5 + $0xc] sm:$0xf]
      %v851 = vld [vmem:[%s6] sm:$0x1]
      %v853 = vlaneseq
      %v854 = vshrl.u32 %v853, 7
      %v855 = vsub.s32 0, %v854
      %v856 = vrot.slane %v851, %v855
      %v862 = vunpack.c.l.b16 %v847
      %v863 = vunpack.c.l.b16 %v848
      %v864 = vunpack.c.l.b16 %v849
      %v865 = vunpack.c.l.b16 %v850
      %v866 = vpack.c.b16 %v863, %v862
      %v867 = vpack.c.b16 %v865, %v864
      %v871 = vsel %vm278, %v846, 0
      %873 = vmatprep.subr.bf16.mxu0 0
      %874 = vmatpush1.bf16.msra.mxu0 0
      %875 = vmatprep.subr.bf16.mxu0 0
      %876 = vmatpush1.bf16.msra.mxu0 0
      %877 = vmatprep.subr.bf16.mxu0 0
      %878 = vmatpush1.bf16.msra.mxu0 0
      %879 = vmatprep.subr.bf16.mxu0 0
      %880 = vmatpush1.bf16.msra.mxu0 0
      %881 = vmatprep.subr.bf16.mxu0 0
      %882 = vmatpush1.bf16.msra.mxu0 0
      %883 = vmatprep.subr.bf16.mxu0 0
      %884 = vmatpush1.bf16.msra.mxu0 0
      %885 = vmatprep.subr.bf16.mxu0 0
      %886 = vmatpush1.bf16.msra.mxu0 %v867
      %887 = vmatprep.subr.bf16.mxu0 0
      %888 = vmatpush1.bf16.msra.mxu0 %v866
      %889 = vmatprep.subr.bf16.mxu0 0
      %890 = vmatpush2.bf16.msra.mxu0 0
      %891 = vmatprep.subr.bf16.mxu0 0
      %892 = vmatpush2.bf16.msra.mxu0 0
      %893 = vmatprep.subr.bf16.mxu0 0
      %894 = vmatpush2.bf16.msra.mxu0 0
      %895 = vmatprep.subr.bf16.mxu0 0
      %896 = vmatpush2.bf16.msra.mxu0 0
      %897 = vmatprep.subr.bf16.mxu0 0
      %898 = vmatpush2.bf16.msra.mxu0 0
      %899 = vmatprep.subr.bf16.mxu0 0
      %900 = vmatpush2.bf16.msra.mxu0 0
      %901 = vmatprep.subr.bf16.mxu0 0
      %902 = vmatpush2.bf16.msra.mxu0 0
      %903 = vmatprep.subr.bf16.mxu0 0
      %904 = vmatpush2.bf16.msra.mxu0 0
      %905 = vmatprep.mubr.bf16.mxu0 0
      %906 = vmatmul.mubr.bf16.gmra.mxu0 %v871
      %v907 = vpop.f32.mrf.mxu0
      %v908 = vadd.f32 %v856, %v907
      %v909 = vpop.f32.mrf.mxu0
      %v910 = vpop.f32.mrf.mxu0
      %v911 = vpop.f32.mrf.mxu0
      %912 = vdwg.mxu0
      %v913 = vadd.f32 %v275, %v908
      %914 = vst.msk [vmem:[%s273] sm:$0xff] %vm278, %v913
      %p915 = scmp.lt.s32.totalorder %s18, 1
      %s916 = scalar_select %p915, %s18, 1
      %s917 = smul.addr %s916, 8
      %s918 = scalar_lea.vmem %s7, %s917
      // Predicated region
      $region49: #{text_encoder_forward.7} parent=47 // pred_check
        %p919 = pneg %p188
      $region50: #{text_encoder_forward.7} parent=47 // pred_check_branch
        %921 = sbr.rel (%p919) target = $region52
      $region51: #{text_encoder_forward.7} parent=47 // pred_region
        _
      $region52: #{text_encoder_forward.7} parent=47 // pred_fallthru
        _
    $region48: #{text_encoder_forward.7} parent=5 // pred_fallthru
      _
    %p922 = scmp.le.s32.totalorder 2, %s13
    // Predicated region
    $region53: #{text_encoder_forward.7} parent=5 // pred_check
      %p923 = pneg %p922
    $region54: #{text_encoder_forward.7} parent=5 // pred_check_branch
      %925 = sbr.rel (%p923) target = $region56
    $region55: #{text_encoder_forward.7} parent=5 // pred_region
      %s926 = ssub.s32 %s13, 2
      // Predicated region
      $region57: #{text_encoder_forward.7} parent=55 // pred_check
        %p927 = pneg %p194
      $region58: #{text_encoder_forward.7} parent=55 // pred_check_branch
        %929 = sbr.rel (%p927) target = $region60
      $region59: #{text_encoder_forward.7} parent=55 // pred_region
        %p930 = scmp.lt.s32.totalorder %s19, 1
        %s931 = scalar_select %p930, %s19, 1
        %s932 = smul.addr %s931, 8
        %s933 = scalar_lea.vmem %s7, %s932
      $region60: #{text_encoder_forward.7} parent=55 // pred_fallthru
        _
    $region56: #{text_encoder_forward.7} parent=5 // pred_fallthru
      _
  $region6: #{text_encoder_forward.7} parent=0 // loop_footer
    %s17 = sadd.s32 1, %s13
  $region7: #{text_encoder_forward.7} parent=0 // loop_footer_branch
    %12 = sbr.rel target = $region3
  $region8: #{text_encoder_forward.7} parent=0 // loop_exit
    _

</llo_original>
